<compile_context>
chip_gen: v5e
topology: v5e:2x2
jax: 0.10.0
libtpu: 0.0.40
codegen_flags: <defaults>
</compile_context>

<pallas_src>
import math

import jax
import jax.numpy as jnp
from jax.experimental import pallas as pl
from jax.experimental.pallas import tpu as pltpu


_K0 = math.sqrt(2.0 / math.pi)
_K1 = 0.044715 * _K0


def _gelu_tanh(x):
    # torch.nn.GELU('tanh'): 0.5*x*(1 + tanh(sqrt(2/pi)*(x + 0.044715*x^3)))
    # Inner polynomial refactored as x*(k0 + k1*x^2): one fewer VALU op per element
    # (matters on v5e's f32-only VPU tail, free elsewhere). tanh goes to the EUP slot.
    u = x * (_K0 + _K1 * x * x)
    return 0.5 * x * (1.0 + jnp.tanh(u))


def _ffn_kernel(x_ref, w_ig_ref, w_out_ref, o_ref, acc_ref):
    """One (tm, dim_model) row tile x one ff tile of the fused FFN.

    x_ref    : (tm, dim_model)        bf16
    w_ig_ref : (dim_model, 2*tff)     bf16  [in-tile | gate-tile], 1/sqrt(dm) folded
    w_out_ref: (tff, dim_model)       bf16  1/sqrt(dim_ff) folded
    o_ref    : (tm, dim_model)        out dtype
    acc_ref  : (tm, dim_model)        f32 accumulator scratch (reduction over ff tiles)
    """
    k = pl.program_id(1)

    @pl.when(k == 0)
    def _():
        acc_ref[...] = jnp.zeros_like(acc_ref)

    tff = w_out_ref.shape[0]
    x = x_ref[...]                                                        # bf16
    # Single fused matmul -> (tm, 2*tff) f32: first tff cols feed GELU, last tff are the gate.
    h = jnp.dot(x, w_ig_ref[...], preferred_element_type=jnp.float32)
    gate = _gelu_tanh(h[:, :tff])                                         # f32
    g = (gate * h[:, tff:]).astype(w_out_ref.dtype)                       # bf16 into the MXU
    acc_ref[...] += jnp.dot(g, w_out_ref[...], preferred_element_type=jnp.float32)

    @pl.when(k == pl.num_programs(1) - 1)
    def _():
        o_ref[...] = acc_ref[...].astype(o_ref.dtype)


def _vmem_budget_bytes():
    """Generation-aware per-TensorCore VMEM budget (~3/4 of physical)."""
    cap = 64 << 20  # conservative default == per-TC VMEM of the smallest part (v7x)
    try:
        info = pltpu.get_tpu_info()
        cap = int(info.vmem_capacity_bytes)
        # v7x has 2 TensorCores with 64 MiB each; don't trust a per-chip number.
        name = str(getattr(info, "chip_version", "")).upper()
        if "7" in name:
            cap = min(cap, 64 << 20)
        cap = min(cap, 128 << 20)
    except Exception:
        pass
    return (cap * 3) // 4


def _tile_footprint_bytes(tm, tff, dim_model, nk, itemsize=2):
    """Realistic per-step VMEM footprint for a (tm, tff) tile choice."""
    wbuf = 1 if nk == 1 else 2                       # resident weights get single-buffered
    x_b = 2 * tm * dim_model * itemsize              # x tile, double-buffered
    o_b = 2 * tm * dim_model * itemsize              # out tile, double-buffered
    w_b = wbuf * 3 * dim_model * tff * itemsize      # fused in|gate (dm,2tff) + w_out (tff,dm)
    acc_b = tm * dim_model * 4                       # f32 accumulator scratch
    mid_b = tm * tff * 16                            # h_in/h_gate f32 + gate f32 + bf16 gated
    return x_b + o_b + w_b + acc_b + mid_b


def _choose_tff(dim_model, dim_ff, vmem_budget, itemsize=2):
    """Largest ff tile whose weight buffers stay within ~half the VMEM budget."""
    def w_bytes(tff, nk):
        wbuf = 1 if nk == 1 else 2
        return wbuf * 3 * dim_model * tff * itemsize

    if w_bytes(dim_ff, 1) <= vmem_budget // 2:
        return dim_ff                                # fully resident weights
    for tff in (4096, 2048, 1024, 512, 256, 128):
        if tff < dim_ff and dim_ff % tff == 0 and w_bytes(tff, 2) <= vmem_budget // 2:
            return tff
    # TODO(synk): dim_ff with no multiple-of-128 divisor falls back to resident weights.
    return dim_ff


def _choose_tm(m, dim_model, tff, nk, vmem_budget):
    """Largest row tile whose real footprint fits with ~20% headroom; prefer an even,
    >=2 tile count so pipelining and v7x megacore splitting always engage."""
    candidates = [t for t in (1024, 512, 256, 128, 64, 32, 16, 8) if t <= m]
    if not candidates:
        candidates = [8]                             # tiny M: one padded 8-row tile
    limit = (vmem_budget * 4) // 5
    fitting = [t for t in candidates
               if _tile_footprint_bytes(t, tff, dim_model, nk) <= limit]
    if not fitting:
        fitting = [candidates[-1]]
    for t in fitting:                                # even tile count first (v7x balance)
        n = pl.cdiv(m, t)
        if n >= 2 and n % 2 == 0:
            return t
    for t in fitting:                                # then at least 2 tiles
        if pl.cdiv(m, t) >= 2:
            return t
    return fitting[0]


def prepare_ffn_params(w_in, w_gated, w_out, *, vmem_budget=None):
    """One-time (init-style) weight preprocessing.

    * transpose PyTorch-layout (dim_out, dim_in) -> (dim_in, dim_out),
    * fold the Linear `scale_before` 1/sqrt(dim_in) factors into the weights,
    * fuse w_in / w_gated into one (dim_model, 2*dim_ff) slab, block-interleaved per
      ff tile of width tff: columns [k*2*tff, (k+1)*2*tff) = [in-tile-k | gate-tile-k].

    Returns (w_ig_fused, w_out_t, tff).
    """
    dim_ff, dim_model = w_in.shape
    dt = w_in.dtype
    if vmem_budget is None:
        vmem_budget = _vmem_budget_bytes()
    tff = _choose_tff(dim_model, dim_ff, vmem_budget)
    nk = dim_ff // tff

    in_scale = 1.0 / math.sqrt(dim_model)
    out_scale = 1.0 / math.sqrt(dim_ff)
    w_in_t = (jnp.transpose(w_in).astype(jnp.float32) * in_scale).astype(dt)
    w_gated_t = (jnp.transpose(w_gated).astype(jnp.float32) * in_scale).astype(dt)
    w_out_t = (jnp.transpose(w_out).astype(jnp.float32) * out_scale).astype(dt)

    w_ig = jnp.concatenate(
        [w_in_t.reshape(dim_model, nk, tff), w_gated_t.reshape(dim_model, nk, tff)],
        axis=2,
    ).reshape(dim_model, 2 * dim_ff)
    return w_ig, w_out_t, tff


def _build_call(out_shape, grid, tm, tff, dim_model, vmem_budget, cost,
                single_buffer_weights):
    w_kwargs = {}
    if single_buffer_weights:
        # Resident weights: one VMEM buffer instead of Pallas's default two.
        w_kwargs = dict(pipeline_mode=pl.Buffered(1))
    in_specs = [
        pl.BlockSpec((tm, dim_model), lambda i, k: (i, 0)),                 # x row tile
        pl.BlockSpec((dim_model, 2 * tff), lambda i, k: (0, k), **w_kwargs),  # fused in|gate
        pl.BlockSpec((tff, dim_model), lambda i, k: (k, 0), **w_kwargs),      # w_out slice
    ]
    return pl.pallas_call(
        _ffn_kernel,
        out_shape=out_shape,
        grid=grid,
        in_specs=in_specs,
        out_specs=pl.BlockSpec((tm, dim_model), lambda i, k: (i, 0)),
        scratch_shapes=[pltpu.VMEM((tm, dim_model), jnp.float32)],
        compiler_params=pltpu.CompilerParams(
            dimension_semantics=("parallel", "arbitrary"),
            vmem_limit_bytes=int(vmem_budget),
        ),
        cost_estimate=cost,
    )


def feedforward(x, w_ig, w_out_t, tff):
    """x: (batch, seq, dim_model); weights already processed by prepare_ffn_params."""
    batch, seq, dim_model = x.shape
    dim_ff = w_ig.shape[1] // 2
    nk = dim_ff // tff
    m = batch * seq
    x2d = x.reshape(m, dim_model)

    vmem_budget = _vmem_budget_bytes()
    tm = _choose_tm(m, dim_model, tff, nk, vmem_budget)
    n_m = pl.cdiv(m, tm)
    m_pad = n_m * tm
    if m_pad != m:
        # Pad rows so every tile is full -> pipelining + megacore split always engage.
        x2d = jnp.pad(x2d, ((0, m_pad - m), (0, 0)))

    itemsize = jnp.dtype(x.dtype).itemsize
    w_reads = 1 if nk == 1 else n_m  # streamed weights are re-read once per row tile
    cost = pl.CostEstimate(
        flops=int(6 * m_pad * dim_model * dim_ff),
        transcendentals=int(m_pad * dim_ff),
        bytes_accessed=int(2 * m_pad * dim_model * itemsize
                           + (w_ig.size + w_out_t.size) * itemsize * w_reads),
    )

    out_shape = jax.ShapeDtypeStruct((m_pad, dim_model), x.dtype)
    grid = (n_m, nk)
    single = nk == 1
    try:
        out2d = _build_call(out_shape, grid, tm, tff, dim_model, vmem_budget,
                            cost, single)(x2d, w_ig, w_out_t)
    except Exception:
        if not single:
            raise
        # Fallback if this JAX build rejects pl.Buffered(1): default double-buffering.
        out2d = _build_call(out_shape, grid, tm, tff, dim_model, vmem_budget,
                            cost, False)(x2d, w_ig, w_out_t)

    if m_pad != m:
        out2d = out2d[:m]
    return out2d.reshape(batch, seq, dim_model)


if __name__ == "__main__":
    # Small but lane-dense shapes (multiples of 128 so vregs / MXU are full).
    batch, seq, dim_model, dim_ff = 2, 256, 128, 256
    dtype = jnp.bfloat16  # torch.half analogue on TPU

    key = jax.random.PRNGKey(0)
    kx, k_in, k_gate, k_out = jax.random.split(key, 4)

    x = jax.random.normal(kx, (batch, seq, dim_model), dtype=jnp.float32).astype(dtype)
    # Linear init: weight ~ N(0, 1), PyTorch layout (dim_out, dim_in).
    w_in = jax.random.normal(k_in, (dim_ff, dim_model), dtype=jnp.float32).astype(dtype)
    w_gated = jax.random.normal(k_gate, (dim_ff, dim_model), dtype=jnp.float32).astype(dtype)
    w_out = jax.random.normal(k_out, (dim_model, dim_ff), dtype=jnp.float32).astype(dtype)

    # One-time parameter preparation (lives at module init in a real model).
    w_ig, w_out_t, tff = prepare_ffn_params(w_in, w_gated, w_out)

    out = feedforward(x, w_ig, w_out_t, tff)
    jax.block_until_ready(out)

    # Pure-JAX f32 reference using the original (unfolded, PyTorch-layout) weights.
    def ref(x, w_in, w_gated, w_out):
        xs = x.astype(jnp.float32) / math.sqrt(dim_model)
        h_in = xs @ w_in.astype(jnp.float32).T
        gate = 0.5 * h_in * (1.0 + jnp.tanh(math.sqrt(2.0 / math.pi)
                                            * (h_in + 0.044715 * h_in ** 3)))
        h_gate = xs @ w_gated.astype(jnp.float32).T
        h = gate * h_gate
        return (h / math.sqrt(dim_ff)) @ w_out.astype(jnp.float32).T

    # TODO(synk): dropout (dropout_p) not implemented — module default is None (identity).
    r = ref(x, w_in, w_gated, w_out)
    assert out.shape == (batch, seq, dim_model)
    assert out.dtype == dtype
    assert jnp.allclose(out.astype(jnp.float32), r, atol=2e-1, rtol=2e-1), (
        float(jnp.max(jnp.abs(out.astype(jnp.float32) - r))))

    print("KERNEL_OK")
</pallas_src>

<mosaic_0001>
module attributes {stable_mosaic.version = 11 : i64} {
  func.func @_ffn_kernel(%arg0: i32, %arg1: i32, %arg2: memref<256x128xbf16, #tpu.memory_space<vmem>>, %arg3: memref<128x512xbf16, #tpu.memory_space<vmem>>, %arg4: memref<256x128xbf16, #tpu.memory_space<vmem>>, %arg5: memref<256x128xbf16, #tpu.memory_space<vmem>>, %arg6: memref<256x128xf32, #tpu.memory_space<vmem>>) attributes {dimension_semantics = [#tpu.dimension_semantics<parallel>, #tpu.dimension_semantics<arbitrary>], iteration_bounds = array<i64: 2, 1>, scalar_prefetch = 0 : i64, scratch_operands = 1 : i64, tpu.core_type = #tpu.core_type<tc>, window_params = [{transform_indices = @transform_0, window_bounds = array<i64: 256, 128>}, {pipeline_mode = #tpu.pipeline_mode<synchronous>, transform_indices = @transform_1, window_bounds = array<i64: 128, 512>}, {pipeline_mode = #tpu.pipeline_mode<synchronous>, transform_indices = @transform_2, window_bounds = array<i64: 256, 128>}, {transform_indices = @transform_3, window_bounds = array<i64: 256, 128>}]} {
    %c0_i32 = arith.constant 0 : i32
    %0 = arith.cmpi eq, %arg1, %c0_i32 : i32
    %1 = arith.extui %0 : i1 to i32
    %c0_i32_0 = arith.constant 0 : i32
    %2 = arith.cmpi ne, %1, %c0_i32_0 : i32
    scf.if %2 {
      %cst_17 = arith.constant 0.000000e+00 : f32
      %30 = vector.broadcast %cst_17 : f32 to vector<256x128xf32>
      %c0_18 = arith.constant 0 : index
      %c0_19 = arith.constant 0 : index
      %31 = vector.load %arg6[%c0_18, %c0_19] : memref<256x128xf32, #tpu.memory_space<vmem>>, vector<256x128xf32>
      tpu.vector_store %arg6[%c0_18, %c0_19], %30 {strides = array<i32>} : memref<256x128xf32, #tpu.memory_space<vmem>>, vector<256x128xf32>,
    } else {
    }
    %c0 = arith.constant 0 : index
    %c0_1 = arith.constant 0 : index
    %3 = vector.load %arg2[%c0, %c0_1] : memref<256x128xbf16, #tpu.memory_space<vmem>>, vector<256x128xbf16>
    %c0_2 = arith.constant 0 : index
    %c0_3 = arith.constant 0 : index
    %4 = vector.load %arg3[%c0_2, %c0_3] : memref<128x512xbf16, #tpu.memory_space<vmem>>, vector<128x512xbf16>
    %cst = arith.constant dense<0.000000e+00> : vector<256x512xf32>
    %5 = tpu.matmul %3, %4, %cst {dimension_numbers = #tpu.dot_dimension_numbers<[1], [0], [0], [1], [0, 0, 1, 1], [], []>} : vector<256x128xbf16>, vector<128x512xbf16>, vector<256x512xf32> -> vector<256x512xf32>
    %6 = vector.extract_strided_slice %5 {offsets = [0, 0], sizes = [256, 256], strides = [1, 1]} : vector<256x512xf32> to vector<256x256xf32>
    %cst_4 = arith.constant 0.0356774069 : f32
    %7 = vector.broadcast %cst_4 : f32 to vector<256x256xf32>
    %8 = arith.mulf %7, %6 : vector<256x256xf32>
    %9 = arith.mulf %8, %6 : vector<256x256xf32>
    %cst_5 = arith.constant 0.797884583 : f32
    %10 = vector.broadcast %cst_5 : f32 to vector<256x256xf32>
    %11 = arith.addf %10, %9 : vector<256x256xf32>
    %12 = arith.mulf %6, %11 : vector<256x256xf32>
    %cst_6 = arith.constant 5.000000e-01 : f32
    %13 = vector.broadcast %cst_6 : f32 to vector<256x256xf32>
    %14 = arith.mulf %13, %6 : vector<256x256xf32>
    %15 = math.tanh %12 : vector<256x256xf32>
    %cst_7 = arith.constant 1.000000e+00 : f32
    %16 = vector.broadcast %cst_7 : f32 to vector<256x256xf32>
    %17 = arith.addf %16, %15 : vector<256x256xf32>
    %18 = arith.mulf %14, %17 : vector<256x256xf32>
    %19 = vector.extract_strided_slice %5 {offsets = [0, 256], sizes = [256, 256], strides = [1, 1]} : vector<256x512xf32> to vector<256x256xf32>
    %20 = arith.mulf %18, %19 : vector<256x256xf32>
    %21 = arith.truncf %20 : vector<256x256xf32> to vector<256x256xbf16>
    %c0_8 = arith.constant 0 : index
    %c0_9 = arith.constant 0 : index
    %22 = vector.load %arg6[%c0_8, %c0_9] : memref<256x128xf32, #tpu.memory_space<vmem>>, vector<256x128xf32>
    %c0_10 = arith.constant 0 : index
    %c0_11 = arith.constant 0 : index
    %23 = vector.load %arg4[%c0_10, %c0_11] : memref<256x128xbf16, #tpu.memory_space<vmem>>, vector<256x128xbf16>
    %cst_12 = arith.constant dense<0.000000e+00> : vector<256x128xf32>
    %24 = tpu.matmul %21, %23, %cst_12 {dimension_numbers = #tpu.dot_dimension_numbers<[1], [0], [0], [1], [0, 0, 1, 1], [], []>} : vector<256x256xbf16>, vector<256x128xbf16>, vector<256x128xf32> -> vector<256x128xf32>
    %25 = arith.addf %22, %24 : vector<256x128xf32>
    %c0_13 = arith.constant 0 : index
    %c0_14 = arith.constant 0 : index
    %26 = vector.load %arg6[%c0_13, %c0_14] : memref<256x128xf32, #tpu.memory_space<vmem>>, vector<256x128xf32>
    tpu.vector_store %arg6[%c0_13, %c0_14], %25 {strides = array<i32>} : memref<256x128xf32, #tpu.memory_space<vmem>>, vector<256x128xf32>,
    %c0_i32_15 = arith.constant 0 : i32
    %27 = arith.cmpi eq, %arg1, %c0_i32_15 : i32
    %28 = arith.extui %27 : i1 to i32
    %c0_i32_16 = arith.constant 0 : i32
    %29 = arith.cmpi ne, %28, %c0_i32_16 : i32
    scf.if %29 {
      %c0_17 = arith.constant 0 : index
      %c0_18 = arith.constant 0 : index
      %30 = vector.load %arg6[%c0_17, %c0_18] : memref<256x128xf32, #tpu.memory_space<vmem>>, vector<256x128xf32>
      %31 = arith.truncf %30 : vector<256x128xf32> to vector<256x128xbf16>
      %c0_19 = arith.constant 0 : index
      %c0_20 = arith.constant 0 : index
      %32 = vector.load %arg5[%c0_19, %c0_20] : memref<256x128xbf16, #tpu.memory_space<vmem>>, vector<256x128xbf16>
      tpu.vector_store %arg5[%c0_19, %c0_20], %31 {strides = array<i32>} : memref<256x128xbf16, #tpu.memory_space<vmem>>, vector<256x128xbf16>,
    } else {
    }
    return
  }
  func.func @transform_0(%arg0: i32, %arg1: i32) -> (i32, i32) {
    %c0_i32 = arith.constant 0 : i32
    %c0_i32_0 = arith.constant 0 : i32
    return %arg0, %c0_i32 : i32, i32
  }
  func.func @transform_1(%arg0: i32, %arg1: i32) -> (i32, i32) {
    %c0_i32 = arith.constant 0 : i32
    %c0_i32_0 = arith.constant 0 : i32
    return %c0_i32, %arg1 : i32, i32
  }
  func.func @transform_2(%arg0: i32, %arg1: i32) -> (i32, i32) {
    %c0_i32 = arith.constant 0 : i32
    %c0_i32_0 = arith.constant 0 : i32
    return %arg1, %c0_i32 : i32, i32
  }
  func.func @transform_3(%arg0: i32, %arg1: i32) -> (i32, i32) {
    %c0_i32 = arith.constant 0 : i32
    %c0_i32_0 = arith.constant 0 : i32
    return %arg0, %c0_i32 : i32, i32
  }
}

module attributes {stable_mosaic.version = 11 : i64} {
  func.func @_ffn_kernel(%arg0: i32, %arg1: i32, %arg2: memref<256x128xbf16, #tpu.memory_space<vmem>>, %arg3: memref<128x512xbf16, #tpu.memory_space<vmem>>, %arg4: memref<256x128xbf16, #tpu.memory_space<vmem>>, %arg5: memref<256x128xbf16, #tpu.memory_space<vmem>>, %arg6: memref<256x128xf32, #tpu.memory_space<vmem>>) attributes {dimension_semantics = [#tpu.dimension_semantics<parallel>, #tpu.dimension_semantics<arbitrary>], iteration_bounds = array<i64: 2, 1>, scalar_prefetch = 0 : i64, scratch_operands = 1 : i64, tpu.core_type = #tpu.core_type<tc>, window_params = [{transform_indices = @transform_0, window_bounds = array<i64: 256, 128>}, {transform_indices = @transform_1, window_bounds = array<i64: 128, 512>}, {transform_indices = @transform_2, window_bounds = array<i64: 256, 128>}, {transform_indices = @transform_3, window_bounds = array<i64: 256, 128>}]} {
    %c0_i32 = arith.constant 0 : i32
    %0 = arith.cmpi eq, %arg1, %c0_i32 : i32
    %1 = arith.extui %0 : i1 to i32
    %c0_i32_0 = arith.constant 0 : i32
    %2 = arith.cmpi ne, %1, %c0_i32_0 : i32
    scf.if %2 {
      %cst_17 = arith.constant 0.000000e+00 : f32
      %30 = vector.broadcast %cst_17 : f32 to vector<256x128xf32>
      %c0_18 = arith.constant 0 : index
      %c0_19 = arith.constant 0 : index
      %31 = vector.load %arg6[%c0_18, %c0_19] : memref<256x128xf32, #tpu.memory_space<vmem>>, vector<256x128xf32>
      tpu.vector_store %arg6[%c0_18, %c0_19], %30 {strides = array<i32>} : memref<256x128xf32, #tpu.memory_space<vmem>>, vector<256x128xf32>,
    } else {
    }
    %c0 = arith.constant 0 : index
    %c0_1 = arith.constant 0 : index
    %3 = vector.load %arg2[%c0, %c0_1] : memref<256x128xbf16, #tpu.memory_space<vmem>>, vector<256x128xbf16>
    %c0_2 = arith.constant 0 : index
    %c0_3 = arith.constant 0 : index
    %4 = vector.load %arg3[%c0_2, %c0_3] : memref<128x512xbf16, #tpu.memory_space<vmem>>, vector<128x512xbf16>
    %cst = arith.constant dense<0.000000e+00> : vector<256x512xf32>
    %5 = tpu.matmul %3, %4, %cst {dimension_numbers = #tpu.dot_dimension_numbers<[1], [0], [0], [1], [0, 0, 1, 1], [], []>} : vector<256x128xbf16>, vector<128x512xbf16>, vector<256x512xf32> -> vector<256x512xf32>
    %6 = vector.extract_strided_slice %5 {offsets = [0, 0], sizes = [256, 256], strides = [1, 1]} : vector<256x512xf32> to vector<256x256xf32>
    %cst_4 = arith.constant 0.0356774069 : f32
    %7 = vector.broadcast %cst_4 : f32 to vector<256x256xf32>
    %8 = arith.mulf %7, %6 : vector<256x256xf32>
    %9 = arith.mulf %8, %6 : vector<256x256xf32>
    %cst_5 = arith.constant 0.797884583 : f32
    %10 = vector.broadcast %cst_5 : f32 to vector<256x256xf32>
    %11 = arith.addf %10, %9 : vector<256x256xf32>
    %12 = arith.mulf %6, %11 : vector<256x256xf32>
    %cst_6 = arith.constant 5.000000e-01 : f32
    %13 = vector.broadcast %cst_6 : f32 to vector<256x256xf32>
    %14 = arith.mulf %13, %6 : vector<256x256xf32>
    %15 = math.tanh %12 : vector<256x256xf32>
    %cst_7 = arith.constant 1.000000e+00 : f32
    %16 = vector.broadcast %cst_7 : f32 to vector<256x256xf32>
    %17 = arith.addf %16, %15 : vector<256x256xf32>
    %18 = arith.mulf %14, %17 : vector<256x256xf32>
    %19 = vector.extract_strided_slice %5 {offsets = [0, 256], sizes = [256, 256], strides = [1, 1]} : vector<256x512xf32> to vector<256x256xf32>
    %20 = arith.mulf %18, %19 : vector<256x256xf32>
    %21 = arith.truncf %20 : vector<256x256xf32> to vector<256x256xbf16>
    %c0_8 = arith.constant 0 : index
    %c0_9 = arith.constant 0 : index
    %22 = vector.load %arg6[%c0_8, %c0_9] : memref<256x128xf32, #tpu.memory_space<vmem>>, vector<256x128xf32>
    %c0_10 = arith.constant 0 : index
    %c0_11 = arith.constant 0 : index
    %23 = vector.load %arg4[%c0_10, %c0_11] : memref<256x128xbf16, #tpu.memory_space<vmem>>, vector<256x128xbf16>
    %cst_12 = arith.constant dense<0.000000e+00> : vector<256x128xf32>
    %24 = tpu.matmul %21, %23, %cst_12 {dimension_numbers = #tpu.dot_dimension_numbers<[1], [0], [0], [1], [0, 0, 1, 1], [], []>} : vector<256x256xbf16>, vector<256x128xbf16>, vector<256x128xf32> -> vector<256x128xf32>
    %25 = arith.addf %22, %24 : vector<256x128xf32>
    %c0_13 = arith.constant 0 : index
    %c0_14 = arith.constant 0 : index
    %26 = vector.load %arg6[%c0_13, %c0_14] : memref<256x128xf32, #tpu.memory_space<vmem>>, vector<256x128xf32>
    tpu.vector_store %arg6[%c0_13, %c0_14], %25 {strides = array<i32>} : memref<256x128xf32, #tpu.memory_space<vmem>>, vector<256x128xf32>,
    %c0_i32_15 = arith.constant 0 : i32
    %27 = arith.cmpi eq, %arg1, %c0_i32_15 : i32
    %28 = arith.extui %27 : i1 to i32
    %c0_i32_16 = arith.constant 0 : i32
    %29 = arith.cmpi ne, %28, %c0_i32_16 : i32
    scf.if %29 {
      %c0_17 = arith.constant 0 : index
      %c0_18 = arith.constant 0 : index
      %30 = vector.load %arg6[%c0_17, %c0_18] : memref<256x128xf32, #tpu.memory_space<vmem>>, vector<256x128xf32>
      %31 = arith.truncf %30 : vector<256x128xf32> to vector<256x128xbf16>
      %c0_19 = arith.constant 0 : index
      %c0_20 = arith.constant 0 : index
      %32 = vector.load %arg5[%c0_19, %c0_20] : memref<256x128xbf16, #tpu.memory_space<vmem>>, vector<256x128xbf16>
      tpu.vector_store %arg5[%c0_19, %c0_20], %31 {strides = array<i32>} : memref<256x128xbf16, #tpu.memory_space<vmem>>, vector<256x128xbf16>,
    } else {
    }
    return
  }
  func.func @transform_0(%arg0: i32, %arg1: i32) -> (i32, i32) {
    %c0_i32 = arith.constant 0 : i32
    %c0_i32_0 = arith.constant 0 : i32
    return %arg0, %c0_i32 : i32, i32
  }
  func.func @transform_1(%arg0: i32, %arg1: i32) -> (i32, i32) {
    %c0_i32 = arith.constant 0 : i32
    %c0_i32_0 = arith.constant 0 : i32
    return %c0_i32, %arg1 : i32, i32
  }
  func.func @transform_2(%arg0: i32, %arg1: i32) -> (i32, i32) {
    %c0_i32 = arith.constant 0 : i32
    %c0_i32_0 = arith.constant 0 : i32
    return %arg1, %c0_i32 : i32, i32
  }
  func.func @transform_3(%arg0: i32, %arg1: i32) -> (i32, i32) {
    %c0_i32 = arith.constant 0 : i32
    %c0_i32_0 = arith.constant 0 : i32
    return %arg0, %c0_i32 : i32, i32
  }
}

</mosaic_0001>

<llo_original>
// kernel: tpu_custom_call.1
$region0: #{tpu_custom_call.1}
  #allocation0 [shape = 'u32[]', space=smem, size = 0x4, offset = 0x4, fixed_abs, tag = 'smem constant byte address 0x4 - core index']
  #allocation1 [shape = 'u32[72,128]{1,0:T(1,128)}', space=vmem, size = 0x9000, scoped, tag = 'internal scratch']
  #allocation2 [shape = 'f32[256,128]{1,0:T(8,128)}', space=vmem, size = 0x20000, scoped, tag = 'scratch operand']
  %s0 = inlined_call_operand.hbm [shape: bf16[512,128], index: 0, kind: input, shape index: {}]
  %s1 = inlined_call_operand.hbm [shape: bf16[128,512], index: 1, kind: input, shape index: {}]
  %s2 = inlined_call_operand.hbm [shape: bf16[256,128], index: 2, kind: input, shape index: {}]
  %s3 = inlined_call_operand.hbm [shape: bf16[512,128], index: 3, kind: output, shape index: {}]
  %s4 = sld [smem:[#allocation0]]
  $region65: #{tpu_custom_call.1} parent=0
    _
  %s6 = ssub.s32 1, %s4
  %s7 = scalar_select 0, %s6, %s4
  $region1: #{tpu_custom_call.1} parent=0
    #allocation3 [shape = 'u8[131072]{0}', space=vmem, size = 0x20000, scoped, tag = 'input window, operand 0']
    #allocation4 [shape = 's32[2]{0}', space=sflag, size = 0x8, scoped, tag = 'scoped memory for tpu_custom_call.1']
    #allocation5 [shape = 's32[2]{0}', space=sflag, size = 0x8, scoped, tag = 'scoped memory for tpu_custom_call.1']
    #allocation6 [shape = 'u8[131072]{0}', space=vmem, size = 0x20000, scoped, tag = 'input window, operand 1, single buffered']
    #allocation7 [shape = 's32[1]{0}', space=sflag, size = 0x4, scoped, tag = 'scoped memory for tpu_custom_call.1']
    #allocation8 [shape = 'u8[65536]{0}', space=vmem, size = 0x10000, scoped, tag = 'input window, operand 2, single buffered']
    #allocation9 [shape = 'u8[131072]{0}', space=vmem, size = 0x20000, scoped, tag = 'output window, operand 0']
    %8 = vsyncpa [#allocation4], 0
    %s9 = scalar_lea.sflag [#allocation4], 1
    %10 = vsyncpa %s9, 0
    %11 = vsyncpa [#allocation7], 0
    %12 = vsyncpa [#allocation5], 0
    %s13 = scalar_lea.sflag [#allocation5], 1
    %14 = vsyncpa %s13, 0
    loop: start=0, step=1, limit=4
    $region2: #{tpu_custom_call.1} parent=1 // loop_pre_header
      _
    $region3: #{tpu_custom_call.1} parent=1 // loop_header
      %s16 = sphi 0, %s20
      %p17 = scmp.ge.s32.totalorder %s16, 4
      %s23 = sphi 0, %s35
      %s24 = sphi 0, %s31
      %s25 = sphi 0, %s23
      %s26 = sphi 0, %s24
      %s27 = sphi 0, %s25
      %s28 = sphi 0, %s26
      %s38 = sphi 0, %s40
      %s41 = sphi 0, %s38
      %s42 = sphi 0, %s41
      %s58 = sphi 0, %s42
      %s64 = sphi 0, %s66
      %s67 = sphi 0, %s64
      %s68 = sphi 0, %s67
      %s84 = sphi 0, %s68
      %s90 = sphi 0, %s92
      %s93 = sphi 0, %s90
      %s94 = sphi 0, %s93
      %s110 = sphi 0, %s94
      %s116 = sphi 0, %s118
      %s119 = sphi 0, %s116
      %s120 = sphi 0, %s119
      %s136 = sphi 0, %s120
    $region4: #{tpu_custom_call.1} parent=1 // loop_header_branch
      %19 = sbr.rel (%p17) target = $region8
    $region5: #{tpu_custom_call.1} parent=1 // loop_body
      %s21 = ssub.s32 %s16, 1
      %s22 = ssub.s32 %s16, 2
      %s29 = sadd.s32 1, %s24
      %p30 = scmp.ge.s32.totalorder %s29, 1
      %s31 = scalar_select %p30, 0, %s29
      %s32 = sadd.s32 1, %s23
      %s33 = scalar_select %p30, %s32, %s23
      %p34 = scmp.ge.s32.totalorder %s33, 2
      %s35 = scalar_select %p34, 0, %s33
      %s36 = ssub.s32 %s23, %s35
      %p37 = scmp.eq.s32.totalorder %s36, 0
      %s39 = sadd.s32 %s38, 1
      %s40 = scalar_select %p37, %s38, %s39
      %p43 = pneg %p37
      %p44 = scmp.eq.s32.totalorder %s16, 1
      %p45 = por %p43, %p44
      %p46 = scmp.ne.s32.totalorder %s38, %s41
      %p47 = scmp.eq.s32.totalorder %s16, 0
      %p48 = por %p46, %p47
      %p49 = scmp.ne.s32.totalorder %s38, %s41
      %p50 = scmp.eq.s32.totalorder %s21, 1
      %p51 = por %p49, %p50
      %p52 = scmp.ne.s32.totalorder %s41, %s42
      %p53 = scmp.eq.s32.totalorder %s21, 0
      %p54 = por %p52, %p53
      %p55 = scmp.ne.s32.totalorder %s41, %s42
      %p56 = scmp.eq.s32.totalorder %s22, 1
      %p57 = por %p55, %p56
      %p59 = scmp.ne.s32.totalorder %s42, %s58
      %p60 = scmp.eq.s32.totalorder %s22, 0
      %p61 = por %p59, %p60
      %s62 = ssub.s32 %s24, %s31
      %p63 = scmp.eq.s32.totalorder %s62, 0
      %s65 = sadd.s32 %s64, 1
      %s66 = scalar_select %p63, %s64, %s65
      %p69 = pneg %p63
      %p70 = scmp.eq.s32.totalorder %s16, 1
      %p71 = por %p69, %p70
      %p72 = scmp.ne.s32.totalorder %s64, %s67
      %p73 = scmp.eq.s32.totalorder %s16, 0
      %p74 = por %p72, %p73
      %p75 = scmp.ne.s32.totalorder %s64, %s67
      %p76 = scmp.eq.s32.totalorder %s21, 1
      %p77 = por %p75, %p76
      %p78 = scmp.ne.s32.totalorder %s67, %s68
      %p79 = scmp.eq.s32.totalorder %s21, 0
      %p80 = por %p78, %p79
      %p81 = scmp.ne.s32.totalorder %s67, %s68
      %p82 = scmp.eq.s32.totalorder %s22, 1
      %p83 = por %p81, %p82
      %p85 = scmp.ne.s32.totalorder %s68, %s84
      %p86 = scmp.eq.s32.totalorder %s22, 0
      %p87 = por %p85, %p86
      %s88 = ssub.s32 %s24, %s31
      %p89 = scmp.eq.s32.totalorder %s88, 0
      %s91 = sadd.s32 %s90, 1
      %s92 = scalar_select %p89, %s90, %s91
      %p95 = pneg %p89
      %p96 = scmp.eq.s32.totalorder %s16, 1
      %p97 = por %p95, %p96
      %p98 = scmp.ne.s32.totalorder %s90, %s93
      %p99 = scmp.eq.s32.totalorder %s16, 0
      %p100 = por %p98, %p99
      %p101 = scmp.ne.s32.totalorder %s90, %s93
      %p102 = scmp.eq.s32.totalorder %s21, 1
      %p103 = por %p101, %p102
      %p104 = scmp.ne.s32.totalorder %s93, %s94
      %p105 = scmp.eq.s32.totalorder %s21, 0
      %p106 = por %p104, %p105
      %p107 = scmp.ne.s32.totalorder %s93, %s94
      %p108 = scmp.eq.s32.totalorder %s22, 1
      %p109 = por %p107, %p108
      %p111 = scmp.ne.s32.totalorder %s94, %s110
      %p112 = scmp.eq.s32.totalorder %s22, 0
      %p113 = por %p111, %p112
      %s114 = ssub.s32 %s23, %s35
      %p115 = scmp.eq.s32.totalorder %s114, 0
      %s117 = sadd.s32 %s116, 1
      %s118 = scalar_select %p115, %s116, %s117
      %p121 = pneg %p115
      %p122 = scmp.eq.s32.totalorder %s16, 1
      %p123 = por %p121, %p122
      %p124 = scmp.ne.s32.totalorder %s116, %s119
      %p125 = scmp.eq.s32.totalorder %s16, 0
      %p126 = por %p124, %p125
      %p127 = scmp.ne.s32.totalorder %s116, %s119
      %p128 = scmp.eq.s32.totalorder %s21, 1
      %p129 = por %p127, %p128
      %p130 = scmp.ne.s32.totalorder %s119, %s120
      %p131 = scmp.eq.s32.totalorder %s21, 0
      %p132 = por %p130, %p131
      %p133 = scmp.ne.s32.totalorder %s119, %s120
      %p134 = scmp.eq.s32.totalorder %s22, 1
      %p135 = por %p133, %p134
      %p137 = scmp.ne.s32.totalorder %s120, %s136
      %p138 = scmp.eq.s32.totalorder %s22, 0
      %p139 = por %p137, %p138
      %p140 = scmp.le.s32.totalorder 1, %s16
      %p141 = scmp.lt.s32.totalorder %s16, 3
      %p142 = pnand %p140, %p141
      %p143 = pneg %p142
      // Predicated region
      $region9: #{tpu_custom_call.1} parent=5 // pred_check
        _
      $region10: #{tpu_custom_call.1} parent=5 // pred_check_branch
        %145 = sbr.rel (%p142) target = $region12
      $region11: #{tpu_custom_call.1} parent=5 // pred_region
        %s146 = ssub.s32 %s16, 1
        // Predicated region
        $region13: #{tpu_custom_call.1} parent=11 // pred_check
          %p147 = pneg %p80
        $region14: #{tpu_custom_call.1} parent=11 // pred_check_branch
          %149 = sbr.rel (%p147) target = $region16
        $region15: #{tpu_custom_call.1} parent=11 // pred_region
          %s150 = smul.u32 4, %s26
          %152 = vsyncadd [#allocation7], 0
          %s153 = smul.addr %s150, 4
          %s154 = scalar_lea.hbm %s1, %s153
          %s155 = sshll.u32 %s154, 4
          %s156 = int_to_ptr.hbm [resolvable:$true] %s155
          %s157 = sshll.u32 [#allocation6], 4
          %s158 = int_to_ptr.vmem [resolvable:$true] %s157
          %163 = dma.hbm_to_vmem [thread:$0]  %s156, 4096, %s158, [#allocation7], 256, 256, 16
        $region16: #{tpu_custom_call.1} parent=11 // pred_fallthru
          _
        // Predicated region
        $region17: #{tpu_custom_call.1} parent=11 // pred_check
          %p164 = pneg %p106
        $region18: #{tpu_custom_call.1} parent=11 // pred_check_branch
          %166 = sbr.rel (%p164) target = $region20
        $region19: #{tpu_custom_call.1} parent=11 // pred_region
          %s167 = smul.u32 32, %s26
          %169 = vsyncadd [#allocation7], 0
          %s170 = smul.addr %s167, 4
          %s171 = scalar_lea.hbm %s2, %s170
          %s172 = sshll.u32 %s171, 4
          %s173 = int_to_ptr.hbm [resolvable:$true] %s172
          %s174 = sshll.u32 [#allocation8], 4
          %s175 = int_to_ptr.vmem [resolvable:$true] %s174
          %180 = dma.hbm_to_vmem [thread:$0]  %s173, 2048, %s175, [#allocation7], 64, 64, 4
        $region20: #{tpu_custom_call.1} parent=11 // pred_fallthru
          _
      $region12: #{tpu_custom_call.1} parent=5 // pred_fallthru
        _
      %p181 = scmp.lt.s32.totalorder %s16, 2
      // Predicated region
      $region21: #{tpu_custom_call.1} parent=5 // pred_check
        %p182 = pneg %p181
      $region22: #{tpu_custom_call.1} parent=5 // pred_check_branch
        %184 = sbr.rel (%p182) target = $region24
      $region23: #{tpu_custom_call.1} parent=5 // pred_region
        // Predicated region
        $region25: #{tpu_custom_call.1} parent=23 // pred_check
          %p185 = pneg %p48
        $region26: #{tpu_custom_call.1} parent=23 // pred_check_branch
          %187 = sbr.rel (%p185) target = $region28
        $region27: #{tpu_custom_call.1} parent=23 // pred_region
          %s188 = sand.u32 %s38, 1
          %s189 = scalar_lea.sflag [#allocation4], %s188
          %s190 = sand.u32 %s38, 1
          %s191 = smul.addr %s190, 128
          %s192 = scalar_lea.vmem [#allocation3], %s191
          %s193 = smul.u32 32, %s23
          %195 = vsyncadd %s189, 0
          %s196 = smul.addr %s193, 4
          %s197 = scalar_lea.hbm %s0, %s196
          %s198 = sshll.u32 %s197, 4
          %s199 = int_to_ptr.hbm [resolvable:$true] %s198
          %s200 = sshll.u32 %s192, 4
          %s201 = int_to_ptr.vmem [resolvable:$true] %s200
          %206 = dma.hbm_to_vmem [thread:$0]  %s199, 2048, %s201, %s189, 64, 64, 4
        $region28: #{tpu_custom_call.1} parent=23 // pred_fallthru
          _
      $region24: #{tpu_custom_call.1} parent=5 // pred_fallthru
        _
      %p207 = scmp.le.s32.totalorder 1, %s16
      %p208 = scmp.lt.s32.totalorder %s16, 3
      %p209 = pnand %p207, %p208
      %p210 = pneg %p209
      // Predicated region
      $region29: #{tpu_custom_call.1} parent=5 // pred_check
        _
      $region30: #{tpu_custom_call.1} parent=5 // pred_check_branch
        %212 = sbr.rel (%p209) target = $region32
      $region31: #{tpu_custom_call.1} parent=5 // pred_region
        %s213 = ssub.s32 %s16, 1
        %s214 = sand.u32 %s41, 1
        %s215 = scalar_lea.sflag [#allocation4], %s214
        %s216 = sand.u32 %s41, 1
        %s217 = smul.addr %s216, 128
        %s218 = scalar_lea.vmem [#allocation3], %s217
        // Predicated region
        $region33: #{tpu_custom_call.1} parent=31 // pred_check
          %p219 = pneg %p54
        $region34: #{tpu_custom_call.1} parent=31 // pred_check_branch
          %221 = sbr.rel (%p219) target = $region36
        $region35: #{tpu_custom_call.1} parent=31 // pred_region
          %223 = dma.done %s215, 2048
        $region36: #{tpu_custom_call.1} parent=31 // pred_fallthru
          _
        // Predicated region
        $region37: #{tpu_custom_call.1} parent=31 // pred_check
          %p224 = pneg %p80
        $region38: #{tpu_custom_call.1} parent=31 // pred_check_branch
          %226 = sbr.rel (%p224) target = $region40
        $region39: #{tpu_custom_call.1} parent=31 // pred_region
          %228 = dma.done [#allocation7], 4096
        $region40: #{tpu_custom_call.1} parent=31 // pred_fallthru
          _
        // Predicated region
        $region41: #{tpu_custom_call.1} parent=31 // pred_check
          %p229 = pneg %p106
        $region42: #{tpu_custom_call.1} parent=31 // pred_check_branch
          %231 = sbr.rel (%p229) target = $region44
        $region43: #{tpu_custom_call.1} parent=31 // pred_region
          %233 = dma.done [#allocation7], 2048
        $region44: #{tpu_custom_call.1} parent=31 // pred_fallthru
          _
        %s234 = sand.u32 %s41, 1
        %s235 = scalar_lea.sflag [#allocation4], %s234
        %s236 = sand.u32 %s41, 1
        %s237 = smul.addr %s236, 128
        %s238 = scalar_lea.vmem [#allocation3], %s237
        %p239 = pneg %p54
        %p240 = pneg %p51
        %p241 = pneg %p80
        %p242 = pneg %p77
        %p243 = pneg %p106
        %p244 = pneg %p103
        %p245 = pneg %p132
        %p246 = pneg %p129
        %s247 = sand.u32 %s119, 1
        %s248 = scalar_lea.sflag [#allocation5], %s247
        %s249 = sand.u32 %s119, 1
        %s250 = smul.addr %s249, 128
        %s251 = scalar_lea.vmem [#allocation9], %s250
        %s252 = smul.u32 32, %s25
        %s253 = smul.u32 4, %s26
        %s254 = smul.u32 32, %s26
        %s255 = smul.u32 32, %s25
        %p256 = scmp.eq.s32.totalorder %s26, 0
        // Predicated region
        $region45: #{tpu_custom_call.1} parent=31 // pred_check
          %p257 = pneg %p256
        $region46: #{tpu_custom_call.1} parent=31 // pred_check_branch
          %259 = sbr.rel (%p257) target = $region48
        $region47: #{tpu_custom_call.1} parent=31 // pred_region
          %260 = vst [vmem:[#allocation2] sm:$0xff] 0.0
          %261 = vst [vmem:[#allocation2 + $0x8] sm:$0xff] 0.0
          %262 = vst [vmem:[#allocation2 + $0x10] sm:$0xff] 0.0
          %263 = vst [vmem:[#allocation2 + $0x18] sm:$0xff] 0.0
          %264 = vst [vmem:[#allocation2 + $0x20] sm:$0xff] 0.0
          %265 = vst [vmem:[#allocation2 + $0x28] sm:$0xff] 0.0
          %266 = vst [vmem:[#allocation2 + $0x30] sm:$0xff] 0.0
          %267 = vst [vmem:[#allocation2 + $0x38] sm:$0xff] 0.0
          %268 = vst [vmem:[#allocation2 + $0x40] sm:$0xff] 0.0
          %269 = vst [vmem:[#allocation2 + $0x48] sm:$0xff] 0.0
          %270 = vst [vmem:[#allocation2 + $0x50] sm:$0xff] 0.0
          %271 = vst [vmem:[#allocation2 + $0x58] sm:$0xff] 0.0
          %272 = vst [vmem:[#allocation2 + $0x60] sm:$0xff] 0.0
          %273 = vst [vmem:[#allocation2 + $0x68] sm:$0xff] 0.0
          %274 = vst [vmem:[#allocation2 + $0x70] sm:$0xff] 0.0
          %275 = vst [vmem:[#allocation2 + $0x78] sm:$0xff] 0.0
          %276 = vst [vmem:[#allocation2 + $0x80] sm:$0xff] 0.0
          %277 = vst [vmem:[#allocation2 + $0x88] sm:$0xff] 0.0
          %278 = vst [vmem:[#allocation2 + $0x90] sm:$0xff] 0.0
          %279 = vst [vmem:[#allocation2 + $0x98] sm:$0xff] 0.0
          %280 = vst [vmem:[#allocation2 + $0xa0] sm:$0xff] 0.0
          %281 = vst [vmem:[#allocation2 + $0xa8] sm:$0xff] 0.0
          %282 = vst [vmem:[#allocation2 + $0xb0] sm:$0xff] 0.0
          %283 = vst [vmem:[#allocation2 + $0xb8] sm:$0xff] 0.0
          %284 = vst [vmem:[#allocation2 + $0xc0] sm:$0xff] 0.0
          %285 = vst [vmem:[#allocation2 + $0xc8] sm:$0xff] 0.0
          %286 = vst [vmem:[#allocation2 + $0xd0] sm:$0xff] 0.0
          %287 = vst [vmem:[#allocation2 + $0xd8] sm:$0xff] 0.0
          %288 = vst [vmem:[#allocation2 + $0xe0] sm:$0xff] 0.0
          %289 = vst [vmem:[#allocation2 + $0xe8] sm:$0xff] 0.0
          %290 = vst [vmem:[#allocation2 + $0xf0] sm:$0xff] 0.0
          %291 = vst [vmem:[#allocation2 + $0xf8] sm:$0xff] 0.0
        $region48: #{tpu_custom_call.1} parent=31 // pred_fallthru
          _
        %v292 = vld [vmem:[%s218] sm:$0xf]
        %v293 = vld [vmem:[%s218 + $0x4] sm:$0xf]
        %v294 = vld [vmem:[%s218 + $0x8] sm:$0xf]
        %v295 = vld [vmem:[%s218 + $0xc] sm:$0xf]
        %v296 = vld [vmem:[%s218 + $0x10] sm:$0xf]
        %v297 = vld [vmem:[%s218 + $0x14] sm:$0xf]
        %v298 = vld [vmem:[%s218 + $0x18] sm:$0xf]
        %v299 = vld [vmem:[%s218 + $0x1c] sm:$0xf]
        %v300 = vld [vmem:[%s218 + $0x20] sm:$0xf]
        %v301 = vld [vmem:[%s218 + $0x24] sm:$0xf]
        %v302 = vld [vmem:[%s218 + $0x28] sm:$0xf]
        %v303 = vld [vmem:[%s218 + $0x2c] sm:$0xf]
        %v304 = vld [vmem:[%s218 + $0x30] sm:$0xf]
        %v305 = vld [vmem:[%s218 + $0x34] sm:$0xf]
        %v306 = vld [vmem:[%s218 + $0x38] sm:$0xf]
        %v307 = vld [vmem:[%s218 + $0x3c] sm:$0xf]
        %v308 = vld [vmem:[%s218 + $0x40] sm:$0xf]
        %v309 = vld [vmem:[%s218 + $0x44] sm:$0xf]
        %v310 = vld [vmem:[%s218 + $0x48] sm:$0xf]
        %v311 = vld [vmem:[%s218 + $0x4c] sm:$0xf]
        %v312 = vld [vmem:[%s218 + $0x50] sm:$0xf]
        %v313 = vld [vmem:[%s218 + $0x54] sm:$0xf]
        %v314 = vld [vmem:[%s218 + $0x58] sm:$0xf]
        %v315 = vld [vmem:[%s218 + $0x5c] sm:$0xf]
        %v316 = vld [vmem:[%s218 + $0x60] sm:$0xf]
        %v317 = vld [vmem:[%s218 + $0x64] sm:$0xf]
        %v318 = vld [vmem:[%s218 + $0x68] sm:$0xf]
        %v319 = vld [vmem:[%s218 + $0x6c] sm:$0xf]
        %v320 = vld [vmem:[%s218 + $0x70] sm:$0xf]
        %v321 = vld [vmem:[%s218 + $0x74] sm:$0xf]
        %v322 = vld [vmem:[%s218 + $0x78] sm:$0xf]
        %v323 = vld [vmem:[%s218 + $0x7c] sm:$0xf]
        %v324 = vld [vmem:[#allocation6] sm:$0xff]
        %v325 = vld [vmem:[#allocation6 + $0x8] sm:$0xff]
        %v326 = vld [vmem:[#allocation6 + $0x10] sm:$0xff]
        %v327 = vld [vmem:[#allocation6 + $0x18] sm:$0xff]
        %v328 = vld [vmem:[#allocation6 + $0x20] sm:$0xff]
        %v329 = vld [vmem:[#allocation6 + $0x28] sm:$0xff]
        %v330 = vld [vmem:[#allocation6 + $0x30] sm:$0xff]
        %v331 = vld [vmem:[#allocation6 + $0x38] sm:$0xff]
        %v332 = vld [vmem:[#allocation6 + $0x40] sm:$0xff]
        %v333 = vld [vmem:[#allocation6 + $0x48] sm:$0xff]
        %v334 = vld [vmem:[#allocation6 + $0x50] sm:$0xff]
        %v335 = vld [vmem:[#allocation6 + $0x58] sm:$0xff]
        %v336 = vld [vmem:[#allocation6 + $0x60] sm:$0xff]
        %v337 = vld [vmem:[#allocation6 + $0x68] sm:$0xff]
        %v338 = vld [vmem:[#allocation6 + $0x70] sm:$0xff]
        %v339 = vld [vmem:[#allocation6 + $0x78] sm:$0xff]
        %v340 = vld [vmem:[#allocation6 + $0x80] sm:$0xff]
        %v341 = vld [vmem:[#allocation6 + $0x88] sm:$0xff]
        %v342 = vld [vmem:[#allocation6 + $0x90] sm:$0xff]
        %v343 = vld [vmem:[#allocation6 + $0x98] sm:$0xff]
        %v344 = vld [vmem:[#allocation6 + $0xa0] sm:$0xff]
        %v345 = vld [vmem:[#allocation6 + $0xa8] sm:$0xff]
        %v346 = vld [vmem:[#allocation6 + $0xb0] sm:$0xff]
        %v347 = vld [vmem:[#allocation6 + $0xb8] sm:$0xff]
        %v348 = vld [vmem:[#allocation6 + $0xc0] sm:$0xff]
        %v349 = vld [vmem:[#allocation6 + $0xc8] sm:$0xff]
        %v350 = vld [vmem:[#allocation6 + $0xd0] sm:$0xff]
        %v351 = vld [vmem:[#allocation6 + $0xd8] sm:$0xff]
        %v352 = vld [vmem:[#allocation6 + $0xe0] sm:$0xff]
        %v353 = vld [vmem:[#allocation6 + $0xe8] sm:$0xff]
        %v354 = vld [vmem:[#allocation6 + $0xf0] sm:$0xff]
        %v355 = vld [vmem:[#allocation6 + $0xf8] sm:$0xff]
        %v388 = vunpack.c.l.b16 %v292
        %v389 = vunpack.c.l.b16 %v293
        %v390 = vunpack.c.l.b16 %v294
        %v391 = vunpack.c.l.b16 %v295
        %v392 = vunpack.c.l.b16 %v296
        %v393 = vunpack.c.l.b16 %v297
        %v394 = vunpack.c.l.b16 %v298
        %v395 = vunpack.c.l.b16 %v299
        %v396 = vunpack.c.l.b16 %v300
        %v397 = vunpack.c.l.b16 %v301
        %v398 = vunpack.c.l.b16 %v302
        %v399 = vunpack.c.l.b16 %v303
        %v400 = vunpack.c.l.b16 %v304
        %v401 = vunpack.c.l.b16 %v305
        %v402 = vunpack.c.l.b16 %v306
        %v403 = vunpack.c.l.b16 %v307
        %v404 = vunpack.c.l.b16 %v308
        %v405 = vunpack.c.l.b16 %v309
        %v406 = vunpack.c.l.b16 %v310
        %v407 = vunpack.c.l.b16 %v311
        %v408 = vunpack.c.l.b16 %v312
        %v409 = vunpack.c.l.b16 %v313
        %v410 = vunpack.c.l.b16 %v314
        %v411 = vunpack.c.l.b16 %v315
        %v412 = vunpack.c.l.b16 %v316
        %v413 = vunpack.c.l.b16 %v317
        %v414 = vunpack.c.l.b16 %v318
        %v415 = vunpack.c.l.b16 %v319
        %v416 = vunpack.c.l.b16 %v320
        %v417 = vunpack.c.l.b16 %v321
        %v418 = vunpack.c.l.b16 %v322
        %v419 = vunpack.c.l.b16 %v323
        %v420 = vpack.c.b16 %v389, %v388
        %v421 = vpack.c.b16 %v391, %v390
        %v422 = vpack.c.b16 %v393, %v392
        %v423 = vpack.c.b16 %v395, %v394
        %v424 = vpack.c.b16 %v397, %v396
        %v425 = vpack.c.b16 %v399, %v398
        %v426 = vpack.c.b16 %v401, %v400
        %v427 = vpack.c.b16 %v403, %v402
        %v428 = vpack.c.b16 %v405, %v404
        %v429 = vpack.c.b16 %v407, %v406
        %v430 = vpack.c.b16 %v409, %v408
        %v431 = vpack.c.b16 %v411, %v410
        %v432 = vpack.c.b16 %v413, %v412
        %v433 = vpack.c.b16 %v415, %v414
        %v434 = vpack.c.b16 %v417, %v416
        %v435 = vpack.c.b16 %v419, %v418
        %v484 = vunpack.c.l.b16 %v324
        %v485 = vunpack.c.h.b16 %v324
        %v486 = vunpack.c.l.b16 %v325
        %v487 = vunpack.c.h.b16 %v325
        %v488 = vunpack.c.l.b16 %v326
        %v489 = vunpack.c.h.b16 %v326
        %v490 = vunpack.c.l.b16 %v327
        %v491 = vunpack.c.h.b16 %v327
        %v492 = vunpack.c.l.b16 %v328
        %v493 = vunpack.c.h.b16 %v328
        %v494 = vunpack.c.l.b16 %v329
        %v495 = vunpack.c.h.b16 %v329
        %v496 = vunpack.c.l.b16 %v330
        %v497 = vunpack.c.h.b16 %v330
        %v498 = vunpack.c.l.b16 %v331
        %v499 = vunpack.c.h.b16 %v331
        %v500 = vunpack.c.l.b16 %v332
        %v501 = vunpack.c.h.b16 %v332
        %v502 = vunpack.c.l.b16 %v333
        %v503 = vunpack.c.h.b16 %v333
        %v504 = vunpack.c.l.b16 %v334
        %v505 = vunpack.c.h.b16 %v334
        %v506 = vunpack.c.l.b16 %v335
        %v507 = vunpack.c.h.b16 %v335
        %v508 = vunpack.c.l.b16 %v336
        %v509 = vunpack.c.h.b16 %v336
        %v510 = vunpack.c.l.b16 %v337
        %v511 = vunpack.c.h.b16 %v337
        %v512 = vunpack.c.l.b16 %v338
        %v513 = vunpack.c.h.b16 %v338
        %v514 = vunpack.c.l.b16 %v339
        %v515 = vunpack.c.h.b16 %v339
        %v516 = vunpack.c.l.b16 %v340
        %v517 = vunpack.c.h.b16 %v340
        %v518 = vunpack.c.l.b16 %v341
        %v519 = vunpack.c.h.b16 %v341
        %v520 = vunpack.c.l.b16 %v342
        %v521 = vunpack.c.h.b16 %v342
        %v522 = vunpack.c.l.b16 %v343
        %v523 = vunpack.c.h.b16 %v343
        %v524 = vunpack.c.l.b16 %v344
        %v525 = vunpack.c.h.b16 %v344
        %v526 = vunpack.c.l.b16 %v345
        %v527 = vunpack.c.h.b16 %v345
        %v528 = vunpack.c.l.b16 %v346
        %v529 = vunpack.c.h.b16 %v346
        %v530 = vunpack.c.l.b16 %v347
        %v531 = vunpack.c.h.b16 %v347
        %v532 = vunpack.c.l.b16 %v348
        %v533 = vunpack.c.h.b16 %v348
        %v534 = vunpack.c.l.b16 %v349
        %v535 = vunpack.c.h.b16 %v349
        %v536 = vunpack.c.l.b16 %v350
        %v537 = vunpack.c.h.b16 %v350
        %v538 = vunpack.c.l.b16 %v351
        %v539 = vunpack.c.h.b16 %v351
        %v540 = vunpack.c.l.b16 %v352
        %v541 = vunpack.c.h.b16 %v352
        %v542 = vunpack.c.l.b16 %v353
        %v543 = vunpack.c.h.b16 %v353
        %v544 = vunpack.c.l.b16 %v354
        %v545 = vunpack.c.h.b16 %v354
        %v546 = vunpack.c.l.b16 %v355
        %v547 = vunpack.c.h.b16 %v355
        %v548 = vpack.c.b16 %v488, %v484
        %v549 = vpack.c.b16 %v489, %v485
        %v550 = vpack.c.b16 %v490, %v486
        %v551 = vpack.c.b16 %v491, %v487
        %v552 = vpack.c.b16 %v496, %v492
        %v553 = vpack.c.b16 %v497, %v493
        %v554 = vpack.c.b16 %v498, %v494
        %v555 = vpack.c.b16 %v499, %v495
        %v556 = vpack.c.b16 %v504, %v500
        %v557 = vpack.c.b16 %v505, %v501
        %v558 = vpack.c.b16 %v506, %v502
        %v559 = vpack.c.b16 %v507, %v503
        %v560 = vpack.c.b16 %v512, %v508
        %v561 = vpack.c.b16 %v513, %v509
        %v562 = vpack.c.b16 %v514, %v510
        %v563 = vpack.c.b16 %v515, %v511
        %v564 = vpack.c.b16 %v520, %v516
        %v565 = vpack.c.b16 %v521, %v517
        %v566 = vpack.c.b16 %v522, %v518
        %v567 = vpack.c.b16 %v523, %v519
        %v568 = vpack.c.b16 %v528, %v524
        %v569 = vpack.c.b16 %v529, %v525
        %v570 = vpack.c.b16 %v530, %v526
        %v571 = vpack.c.b16 %v531, %v527
        %v572 = vpack.c.b16 %v536, %v532
        %v573 = vpack.c.b16 %v537, %v533
        %v574 = vpack.c.b16 %v538, %v534
        %v575 = vpack.c.b16 %v539, %v535
        %v576 = vpack.c.b16 %v544, %v540
        %v577 = vpack.c.b16 %v545, %v541
        %v578 = vpack.c.b16 %v546, %v542
        %v579 = vpack.c.b16 %v547, %v543
        %612 = vmatpush.bf16.msra.mxu0 %v576
        %613 = vmatpush.bf16.msra.mxu0 %v572
        %614 = vmatpush.bf16.msra.mxu0 %v568
        %615 = vmatpush.bf16.msra.mxu0 %v564
        %616 = vmatpush.bf16.msra.mxu0 %v560
        %617 = vmatpush.bf16.msra.mxu0 %v556
        %618 = vmatpush.bf16.msra.mxu0 %v552
        %619 = vmatpush.bf16.msra.mxu0 %v548
        %620 = vmatmul.bf16.gmra.mxu0 %v420
        %v621 = vpop.f32.mrf.mxu0
        %v622 = vadd.f32 0.0, %v621
        %v623 = vpop.f32.mrf.mxu0
        %v624 = vadd.f32 0.0, %v623
        %625 = vmatmul.bf16.gmra.mxu0 %v421
        %v626 = vpop.f32.mrf.mxu0
        %v627 = vadd.f32 0.0, %v626
        %v628 = vpop.f32.mrf.mxu0
        %v629 = vadd.f32 0.0, %v628
        %630 = vmatmul.bf16.gmra.mxu0 %v422
        %v631 = vpop.f32.mrf.mxu0
        %v632 = vadd.f32 0.0, %v631
        %v633 = vpop.f32.mrf.mxu0
        %v634 = vadd.f32 0.0, %v633
        %635 = vmatmul.bf16.gmra.mxu0 %v423
        %v636 = vpop.f32.mrf.mxu0
        %v637 = vadd.f32 0.0, %v636
        %v638 = vpop.f32.mrf.mxu0
        %v639 = vadd.f32 0.0, %v638
        %640 = vmatmul.bf16.gmra.mxu0 %v424
        %v641 = vpop.f32.mrf.mxu0
        %v642 = vadd.f32 0.0, %v641
        %v643 = vpop.f32.mrf.mxu0
        %v644 = vadd.f32 0.0, %v643
        %645 = vmatmul.bf16.gmra.mxu0 %v425
        %v646 = vpop.f32.mrf.mxu0
        %v647 = vadd.f32 0.0, %v646
        %v648 = vpop.f32.mrf.mxu0
        %v649 = vadd.f32 0.0, %v648
        %650 = vmatmul.bf16.gmra.mxu0 %v426
        %v651 = vpop.f32.mrf.mxu0
        %v652 = vadd.f32 0.0, %v651
        %v653 = vpop.f32.mrf.mxu0
        %v654 = vadd.f32 0.0, %v653
        %655 = vmatmul.bf16.gmra.mxu0 %v427
        %v656 = vpop.f32.mrf.mxu0
        %v657 = vadd.f32 0.0, %v656
        %v658 = vpop.f32.mrf.mxu0
        %v659 = vadd.f32 0.0, %v658
        %660 = vmatmul.bf16.gmra.mxu0 %v428
        %v661 = vpop.f32.mrf.mxu0
        %v662 = vadd.f32 0.0, %v661
        %v663 = vpop.f32.mrf.mxu0
        %v664 = vadd.f32 0.0, %v663
        %665 = vmatmul.bf16.gmra.mxu0 %v429
        %v666 = vpop.f32.mrf.mxu0
        %v667 = vadd.f32 0.0, %v666
        %v668 = vpop.f32.mrf.mxu0
        %v669 = vadd.f32 0.0, %v668
        %670 = vmatmul.bf16.gmra.mxu0 %v430
        %v671 = vpop.f32.mrf.mxu0
        %v672 = vadd.f32 0.0, %v671
        %v673 = vpop.f32.mrf.mxu0
        %v674 = vadd.f32 0.0, %v673
        %675 = vmatmul.bf16.gmra.mxu0 %v431
        %v676 = vpop.f32.mrf.mxu0
        %v677 = vadd.f32 0.0, %v676
        %v678 = vpop.f32.mrf.mxu0
        %v679 = vadd.f32 0.0, %v678
        %680 = vmatmul.bf16.gmra.mxu0 %v432
        %v681 = vpop.f32.mrf.mxu0
        %v682 = vadd.f32 0.0, %v681
        %v683 = vpop.f32.mrf.mxu0
        %v684 = vadd.f32 0.0, %v683
        %685 = vmatmul.bf16.gmra.mxu0 %v433
        %v686 = vpop.f32.mrf.mxu0
        %v687 = vadd.f32 0.0, %v686
        %v688 = vpop.f32.mrf.mxu0
        %v689 = vadd.f32 0.0, %v688
        %690 = vmatmul.bf16.gmra.mxu0 %v434
        %v691 = vpop.f32.mrf.mxu0
        %v692 = vadd.f32 0.0, %v691
        %v693 = vpop.f32.mrf.mxu0
        %v694 = vadd.f32 0.0, %v693
        %695 = vmatmul.bf16.gmra.mxu0 %v435
        %v696 = vpop.f32.mrf.mxu0
        %v697 = vadd.f32 0.0, %v696
        %v698 = vpop.f32.mrf.mxu0
        %v699 = vadd.f32 0.0, %v698
        %700 = vdwg.mxu0
        %701 = vmatpush.bf16.msra.mxu0 %v577
        %702 = vmatpush.bf16.msra.mxu0 %v573
        %703 = vmatpush.bf16.msra.mxu0 %v569
        %704 = vmatpush.bf16.msra.mxu0 %v565
        %705 = vmatpush.bf16.msra.mxu0 %v561
        %706 = vmatpush.bf16.msra.mxu0 %v557
        %707 = vmatpush.bf16.msra.mxu0 %v553
        %708 = vmatpush.bf16.msra.mxu0 %v549
        %709 = vmatmul.bf16.gmra.mxu0 %v420
        %v710 = vpop.f32.mrf.mxu0
        %v711 = vadd.f32 0.0, %v710
        %v712 = vpop.f32.mrf.mxu0
        %v713 = vadd.f32 0.0, %v712
        %714 = vmatmul.bf16.gmra.mxu0 %v421
        %v715 = vpop.f32.mrf.mxu0
        %v716 = vadd.f32 0.0, %v715
        %v717 = vpop.f32.mrf.mxu0
        %v718 = vadd.f32 0.0, %v717
        %719 = vmatmul.bf16.gmra.mxu0 %v422
        %v720 = vpop.f32.mrf.mxu0
        %v721 = vadd.f32 0.0, %v720
        %v722 = vpop.f32.mrf.mxu0
        %v723 = vadd.f32 0.0, %v722
        %724 = vmatmul.bf16.gmra.mxu0 %v423
        %v725 = vpop.f32.mrf.mxu0
        %v726 = vadd.f32 0.0, %v725
        %v727 = vpop.f32.mrf.mxu0
        %v728 = vadd.f32 0.0, %v727
        %729 = vmatmul.bf16.gmra.mxu0 %v424
        %v730 = vpop.f32.mrf.mxu0
        %v731 = vadd.f32 0.0, %v730
        %v732 = vpop.f32.mrf.mxu0
        %v733 = vadd.f32 0.0, %v732
        %734 = vmatmul.bf16.gmra.mxu0 %v425
        %v735 = vpop.f32.mrf.mxu0
        %v736 = vadd.f32 0.0, %v735
        %v737 = vpop.f32.mrf.mxu0
        %v738 = vadd.f32 0.0, %v737
        %739 = vmatmul.bf16.gmra.mxu0 %v426
        %v740 = vpop.f32.mrf.mxu0
        %v741 = vadd.f32 0.0, %v740
        %v742 = vpop.f32.mrf.mxu0
        %v743 = vadd.f32 0.0, %v742
        %744 = vmatmul.bf16.gmra.mxu0 %v427
        %v745 = vpop.f32.mrf.mxu0
        %v746 = vadd.f32 0.0, %v745
        %v747 = vpop.f32.mrf.mxu0
        %v748 = vadd.f32 0.0, %v747
        %749 = vmatmul.bf16.gmra.mxu0 %v428
        %v750 = vpop.f32.mrf.mxu0
        %v751 = vadd.f32 0.0, %v750
        %v752 = vpop.f32.mrf.mxu0
        %v753 = vadd.f32 0.0, %v752
        %754 = vmatmul.bf16.gmra.mxu0 %v429
        %v755 = vpop.f32.mrf.mxu0
        %v756 = vadd.f32 0.0, %v755
        %v757 = vpop.f32.mrf.mxu0
        %v758 = vadd.f32 0.0, %v757
        %759 = vmatmul.bf16.gmra.mxu0 %v430
        %v760 = vpop.f32.mrf.mxu0
        %v761 = vadd.f32 0.0, %v760
        %v762 = vpop.f32.mrf.mxu0
        %v763 = vadd.f32 0.0, %v762
        %764 = vmatmul.bf16.gmra.mxu0 %v431
        %v765 = vpop.f32.mrf.mxu0
        %v766 = vadd.f32 0.0, %v765
        %v767 = vpop.f32.mrf.mxu0
        %v768 = vadd.f32 0.0, %v767
        %769 = vmatmul.bf16.gmra.mxu0 %v432
        %v770 = vpop.f32.mrf.mxu0
        %v771 = vadd.f32 0.0, %v770
        %v772 = vpop.f32.mrf.mxu0
        %v773 = vadd.f32 0.0, %v772
        %774 = vmatmul.bf16.gmra.mxu0 %v433
        %v775 = vpop.f32.mrf.mxu0
        %v776 = vadd.f32 0.0, %v775
        %v777 = vpop.f32.mrf.mxu0
        %v778 = vadd.f32 0.0, %v777
        %779 = vmatmul.bf16.gmra.mxu0 %v434
        %v780 = vpop.f32.mrf.mxu0
        %v781 = vadd.f32 0.0, %v780
        %v782 = vpop.f32.mrf.mxu0
        %v783 = vadd.f32 0.0, %v782
        %784 = vmatmul.bf16.gmra.mxu0 %v435
        %v785 = vpop.f32.mrf.mxu0
        %v786 = vadd.f32 0.0, %v785
        %v787 = vpop.f32.mrf.mxu0
        %v788 = vadd.f32 0.0, %v787
        %789 = vdwg.mxu0
        %790 = vmatpush.bf16.msra.mxu0 %v578
        %791 = vmatpush.bf16.msra.mxu0 %v574
        %792 = vmatpush.bf16.msra.mxu0 %v570
        %793 = vmatpush.bf16.msra.mxu0 %v566
        %794 = vmatpush.bf16.msra.mxu0 %v562
        %795 = vmatpush.bf16.msra.mxu0 %v558
        %796 = vmatpush.bf16.msra.mxu0 %v554
        %797 = vmatpush.bf16.msra.mxu0 %v550
        %798 = vmatmul.bf16.gmra.mxu0 %v420
        %v799 = vpop.f32.mrf.mxu0
        %v800 = vadd.f32 0.0, %v799
        %v801 = vpop.f32.mrf.mxu0
        %v802 = vadd.f32 0.0, %v801
        %803 = vmatmul.bf16.gmra.mxu0 %v421
        %v804 = vpop.f32.mrf.mxu0
        %v805 = vadd.f32 0.0, %v804
        %v806 = vpop.f32.mrf.mxu0
        %v807 = vadd.f32 0.0, %v806
        %808 = vmatmul.bf16.gmra.mxu0 %v422
        %v809 = vpop.f32.mrf.mxu0
        %v810 = vadd.f32 0.0, %v809
        %v811 = vpop.f32.mrf.mxu0
        %v812 = vadd.f32 0.0, %v811
        %813 = vmatmul.bf16.gmra.mxu0 %v423
        %v814 = vpop.f32.mrf.mxu0
        %v815 = vadd.f32 0.0, %v814
        %v816 = vpop.f32.mrf.mxu0
        %v817 = vadd.f32 0.0, %v816
        %818 = vmatmul.bf16.gmra.mxu0 %v424
        %v819 = vpop.f32.mrf.mxu0
        %v820 = vadd.f32 0.0, %v819
        %v821 = vpop.f32.mrf.mxu0
        %v822 = vadd.f32 0.0, %v821
        %823 = vmatmul.bf16.gmra.mxu0 %v425
        %v824 = vpop.f32.mrf.mxu0
        %v825 = vadd.f32 0.0, %v824
        %v826 = vpop.f32.mrf.mxu0
        %v827 = vadd.f32 0.0, %v826
        %828 = vmatmul.bf16.gmra.mxu0 %v426
        %v829 = vpop.f32.mrf.mxu0
        %v830 = vadd.f32 0.0, %v829
        %v831 = vpop.f32.mrf.mxu0
        %v832 = vadd.f32 0.0, %v831
        %833 = vmatmul.bf16.gmra.mxu0 %v427
        %v834 = vpop.f32.mrf.mxu0
        %v835 = vadd.f32 0.0, %v834
        %v836 = vpop.f32.mrf.mxu0
        %v837 = vadd.f32 0.0, %v836
        %838 = vmatmul.bf16.gmra.mxu0 %v428
        %v839 = vpop.f32.mrf.mxu0
        %v840 = vadd.f32 0.0, %v839
        %v841 = vpop.f32.mrf.mxu0
        %v842 = vadd.f32 0.0, %v841
        %843 = vmatmul.bf16.gmra.mxu0 %v429
        %v844 = vpop.f32.mrf.mxu0
        %v845 = vadd.f32 0.0, %v844
        %v846 = vpop.f32.mrf.mxu0
        %v847 = vadd.f32 0.0, %v846
        %848 = vmatmul.bf16.gmra.mxu0 %v430
        %v849 = vpop.f32.mrf.mxu0
        %v850 = vadd.f32 0.0, %v849
        %v851 = vpop.f32.mrf.mxu0
        %v852 = vadd.f32 0.0, %v851
        %853 = vmatmul.bf16.gmra.mxu0 %v431
        %v854 = vpop.f32.mrf.mxu0
        %v855 = vadd.f32 0.0, %v854
        %v856 = vpop.f32.mrf.mxu0
        %v857 = vadd.f32 0.0, %v856
        %858 = vmatmul.bf16.gmra.mxu0 %v432
        %v859 = vpop.f32.mrf.mxu0
        %v860 = vadd.f32 0.0, %v859
        %v861 = vpop.f32.mrf.mxu0
        %v862 = vadd.f32 0.0, %v861
        %863 = vmatmul.bf16.gmra.mxu0 %v433
        %v864 = vpop.f32.mrf.mxu0
        %v865 = vadd.f32 0.0, %v864
        %v866 = vpop.f32.mrf.mxu0
        %v867 = vadd.f32 0.0, %v866
        %868 = vmatmul.bf16.gmra.mxu0 %v434
        %v869 = vpop.f32.mrf.mxu0
        %v870 = vadd.f32 0.0, %v869
        %v871 = vpop.f32.mrf.mxu0
        %v872 = vadd.f32 0.0, %v871
        %873 = vmatmul.bf16.gmra.mxu0 %v435
        %v874 = vpop.f32.mrf.mxu0
        %v875 = vadd.f32 0.0, %v874
        %v876 = vpop.f32.mrf.mxu0
        %v877 = vadd.f32 0.0, %v876
        %878 = vdwg.mxu0
        %879 = vmatpush.bf16.msra.mxu0 %v579
        %880 = vmatpush.bf16.msra.mxu0 %v575
        %881 = vmatpush.bf16.msra.mxu0 %v571
        %882 = vmatpush.bf16.msra.mxu0 %v567
        %883 = vmatpush.bf16.msra.mxu0 %v563
        %884 = vmatpush.bf16.msra.mxu0 %v559
        %885 = vmatpush.bf16.msra.mxu0 %v555
        %886 = vmatpush.bf16.msra.mxu0 %v551
        %887 = vmatmul.bf16.gmra.mxu0 %v420
        %v888 = vpop.f32.mrf.mxu0
        %v889 = vadd.f32 0.0, %v888
        %v890 = vpop.f32.mrf.mxu0
        %v891 = vadd.f32 0.0, %v890
        %892 = vmatmul.bf16.gmra.mxu0 %v421
        %v893 = vpop.f32.mrf.mxu0
        %v894 = vadd.f32 0.0, %v893
        %v895 = vpop.f32.mrf.mxu0
        %v896 = vadd.f32 0.0, %v895
        %897 = vmatmul.bf16.gmra.mxu0 %v422
        %v898 = vpop.f32.mrf.mxu0
        %v899 = vadd.f32 0.0, %v898
        %v900 = vpop.f32.mrf.mxu0
        %v901 = vadd.f32 0.0, %v900
        %902 = vmatmul.bf16.gmra.mxu0 %v423
        %v903 = vpop.f32.mrf.mxu0
        %v904 = vadd.f32 0.0, %v903
        %v905 = vpop.f32.mrf.mxu0
        %v906 = vadd.f32 0.0, %v905
        %907 = vmatmul.bf16.gmra.mxu0 %v424
        %v908 = vpop.f32.mrf.mxu0
        %v909 = vadd.f32 0.0, %v908
        %v910 = vpop.f32.mrf.mxu0
        %v911 = vadd.f32 0.0, %v910
        %912 = vmatmul.bf16.gmra.mxu0 %v425
        %v913 = vpop.f32.mrf.mxu0
        %v914 = vadd.f32 0.0, %v913
        %v915 = vpop.f32.mrf.mxu0
        %v916 = vadd.f32 0.0, %v915
        %917 = vmatmul.bf16.gmra.mxu0 %v426
        %v918 = vpop.f32.mrf.mxu0
        %v919 = vadd.f32 0.0, %v918
        %v920 = vpop.f32.mrf.mxu0
        %v921 = vadd.f32 0.0, %v920
        %922 = vmatmul.bf16.gmra.mxu0 %v427
        %v923 = vpop.f32.mrf.mxu0
        %v924 = vadd.f32 0.0, %v923
        %v925 = vpop.f32.mrf.mxu0
        %v926 = vadd.f32 0.0, %v925
        %927 = vmatmul.bf16.gmra.mxu0 %v428
        %v928 = vpop.f32.mrf.mxu0
        %v929 = vadd.f32 0.0, %v928
        %v930 = vpop.f32.mrf.mxu0
        %v931 = vadd.f32 0.0, %v930
        %932 = vmatmul.bf16.gmra.mxu0 %v429
        %v933 = vpop.f32.mrf.mxu0
        %v934 = vadd.f32 0.0, %v933
        %v935 = vpop.f32.mrf.mxu0
        %v936 = vadd.f32 0.0, %v935
        %937 = vmatmul.bf16.gmra.mxu0 %v430
        %v938 = vpop.f32.mrf.mxu0
        %v939 = vadd.f32 0.0, %v938
        %v940 = vpop.f32.mrf.mxu0
        %v941 = vadd.f32 0.0, %v940
        %942 = vmatmul.bf16.gmra.mxu0 %v431
        %v943 = vpop.f32.mrf.mxu0
        %v944 = vadd.f32 0.0, %v943
        %v945 = vpop.f32.mrf.mxu0
        %v946 = vadd.f32 0.0, %v945
        %947 = vmatmul.bf16.gmra.mxu0 %v432
        %v948 = vpop.f32.mrf.mxu0
        %v949 = vadd.f32 0.0, %v948
        %v950 = vpop.f32.mrf.mxu0
        %v951 = vadd.f32 0.0, %v950
        %952 = vmatmul.bf16.gmra.mxu0 %v433
        %v953 = vpop.f32.mrf.mxu0
        %v954 = vadd.f32 0.0, %v953
        %v955 = vpop.f32.mrf.mxu0
        %v956 = vadd.f32 0.0, %v955
        %957 = vmatmul.bf16.gmra.mxu0 %v434
        %v958 = vpop.f32.mrf.mxu0
        %v959 = vadd.f32 0.0, %v958
        %v960 = vpop.f32.mrf.mxu0
        %v961 = vadd.f32 0.0, %v960
        %962 = vmatmul.bf16.gmra.mxu0 %v435
        %v963 = vpop.f32.mrf.mxu0
        %v964 = vadd.f32 0.0, %v963
        %v965 = vpop.f32.mrf.mxu0
        %v966 = vadd.f32 0.0, %v965
        %967 = vdwg.mxu0
        %v968 = vmul.f32 %v622, 0.035677407
        %v969 = vmul.f32 %v711, 0.035677407
        %v970 = vmul.f32 %v624, 0.035677407
        %v971 = vmul.f32 %v713, 0.035677407
        %v972 = vmul.f32 %v627, 0.035677407
        %v973 = vmul.f32 %v716, 0.035677407
        %v974 = vmul.f32 %v629, 0.035677407
        %v975 = vmul.f32 %v718, 0.035677407
        %v976 = vmul.f32 %v632, 0.035677407
        %v977 = vmul.f32 %v721, 0.035677407
        %v978 = vmul.f32 %v634, 0.035677407
        %v979 = vmul.f32 %v723, 0.035677407
        %v980 = vmul.f32 %v637, 0.035677407
        %v981 = vmul.f32 %v726, 0.035677407
        %v982 = vmul.f32 %v639, 0.035677407
        %v983 = vmul.f32 %v728, 0.035677407
        %v984 = vmul.f32 %v642, 0.035677407
        %v985 = vmul.f32 %v731, 0.035677407
        %v986 = vmul.f32 %v644, 0.035677407
        %v987 = vmul.f32 %v733, 0.035677407
        %v988 = vmul.f32 %v647, 0.035677407
        %v989 = vmul.f32 %v736, 0.035677407
        %v990 = vmul.f32 %v649, 0.035677407
        %v991 = vmul.f32 %v738, 0.035677407
        %v992 = vmul.f32 %v652, 0.035677407
        %v993 = vmul.f32 %v741, 0.035677407
        %v994 = vmul.f32 %v654, 0.035677407
        %v995 = vmul.f32 %v743, 0.035677407
        %v996 = vmul.f32 %v657, 0.035677407
        %v997 = vmul.f32 %v746, 0.035677407
        %v998 = vmul.f32 %v659, 0.035677407
        %v999 = vmul.f32 %v748, 0.035677407
        %v1000 = vmul.f32 %v662, 0.035677407
        %v1001 = vmul.f32 %v751, 0.035677407
        %v1002 = vmul.f32 %v664, 0.035677407
        %v1003 = vmul.f32 %v753, 0.035677407
        %v1004 = vmul.f32 %v667, 0.035677407
        %v1005 = vmul.f32 %v756, 0.035677407
        %v1006 = vmul.f32 %v669, 0.035677407
        %v1007 = vmul.f32 %v758, 0.035677407
        %v1008 = vmul.f32 %v672, 0.035677407
        %v1009 = vmul.f32 %v761, 0.035677407
        %v1010 = vmul.f32 %v674, 0.035677407
        %v1011 = vmul.f32 %v763, 0.035677407
        %v1012 = vmul.f32 %v677, 0.035677407
        %v1013 = vmul.f32 %v766, 0.035677407
        %v1014 = vmul.f32 %v679, 0.035677407
        %v1015 = vmul.f32 %v768, 0.035677407
        %v1016 = vmul.f32 %v682, 0.035677407
        %v1017 = vmul.f32 %v771, 0.035677407
        %v1018 = vmul.f32 %v684, 0.035677407
        %v1019 = vmul.f32 %v773, 0.035677407
        %v1020 = vmul.f32 %v687, 0.035677407
        %v1021 = vmul.f32 %v776, 0.035677407
        %v1022 = vmul.f32 %v689, 0.035677407
        %v1023 = vmul.f32 %v778, 0.035677407
        %v1024 = vmul.f32 %v692, 0.035677407
        %v1025 = vmul.f32 %v781, 0.035677407
        %v1026 = vmul.f32 %v694, 0.035677407
        %v1027 = vmul.f32 %v783, 0.035677407
        %v1028 = vmul.f32 %v697, 0.035677407
        %v1029 = vmul.f32 %v786, 0.035677407
        %v1030 = vmul.f32 %v699, 0.035677407
        %v1031 = vmul.f32 %v788, 0.035677407
        %v1032 = vmul.f32 %v968, %v622
        %v1033 = vmul.f32 %v969, %v711
        %v1034 = vmul.f32 %v970, %v624
        %v1035 = vmul.f32 %v971, %v713
        %v1036 = vmul.f32 %v972, %v627
        %v1037 = vmul.f32 %v973, %v716
        %v1038 = vmul.f32 %v974, %v629
        %v1039 = vmul.f32 %v975, %v718
        %v1040 = vmul.f32 %v976, %v632
        %v1041 = vmul.f32 %v977, %v721
        %v1042 = vmul.f32 %v978, %v634
        %v1043 = vmul.f32 %v979, %v723
        %v1044 = vmul.f32 %v980, %v637
        %v1045 = vmul.f32 %v981, %v726
        %v1046 = vmul.f32 %v982, %v639
        %v1047 = vmul.f32 %v983, %v728
        %v1048 = vmul.f32 %v984, %v642
        %v1049 = vmul.f32 %v985, %v731
        %v1050 = vmul.f32 %v986, %v644
        %v1051 = vmul.f32 %v987, %v733
        %v1052 = vmul.f32 %v988, %v647
        %v1053 = vmul.f32 %v989, %v736
        %v1054 = vmul.f32 %v990, %v649
        %v1055 = vmul.f32 %v991, %v738
        %v1056 = vmul.f32 %v992, %v652
        %v1057 = vmul.f32 %v993, %v741
        %v1058 = vmul.f32 %v994, %v654
        %v1059 = vmul.f32 %v995, %v743
        %v1060 = vmul.f32 %v996, %v657
        %v1061 = vmul.f32 %v997, %v746
        %v1062 = vmul.f32 %v998, %v659
        %v1063 = vmul.f32 %v999, %v748
        %v1064 = vmul.f32 %v1000, %v662
        %v1065 = vmul.f32 %v1001, %v751
        %v1066 = vmul.f32 %v1002, %v664
        %v1067 = vmul.f32 %v1003, %v753
        %v1068 = vmul.f32 %v1004, %v667
        %v1069 = vmul.f32 %v1005, %v756
        %v1070 = vmul.f32 %v1006, %v669
        %v1071 = vmul.f32 %v1007, %v758
        %v1072 = vmul.f32 %v1008, %v672
        %v1073 = vmul.f32 %v1009, %v761
        %v1074 = vmul.f32 %v1010, %v674
        %v1075 = vmul.f32 %v1011, %v763
        %v1076 = vmul.f32 %v1012, %v677
        %v1077 = vmul.f32 %v1013, %v766
        %v1078 = vmul.f32 %v1014, %v679
        %v1079 = vmul.f32 %v1015, %v768
        %v1080 = vmul.f32 %v1016, %v682
        %v1081 = vmul.f32 %v1017, %v771
        %v1082 = vmul.f32 %v1018, %v684
        %v1083 = vmul.f32 %v1019, %v773
        %v1084 = vmul.f32 %v1020, %v687
        %v1085 = vmul.f32 %v1021, %v776
        %v1086 = vmul.f32 %v1022, %v689
        %v1087 = vmul.f32 %v1023, %v778
        %v1088 = vmul.f32 %v1024, %v692
        %v1089 = vmul.f32 %v1025, %v781
        %v1090 = vmul.f32 %v1026, %v694
        %v1091 = vmul.f32 %v1027, %v783
        %v1092 = vmul.f32 %v1028, %v697
        %v1093 = vmul.f32 %v1029, %v786
        %v1094 = vmul.f32 %v1030, %v699
        %v1095 = vmul.f32 %v1031, %v788
        %v1096 = vadd.f32 %v1032, 0.7978846
        %v1097 = vadd.f32 %v1033, 0.7978846
        %v1098 = vadd.f32 %v1034, 0.7978846
        %v1099 = vadd.f32 %v1035, 0.7978846
        %v1100 = vadd.f32 %v1036, 0.7978846
        %v1101 = vadd.f32 %v1037, 0.7978846
        %v1102 = vadd.f32 %v1038, 0.7978846
        %v1103 = vadd.f32 %v1039, 0.7978846
        %v1104 = vadd.f32 %v1040, 0.7978846
        %v1105 = vadd.f32 %v1041, 0.7978846
        %v1106 = vadd.f32 %v1042, 0.7978846
        %v1107 = vadd.f32 %v1043, 0.7978846
        %v1108 = vadd.f32 %v1044, 0.7978846
        %v1109 = vadd.f32 %v1045, 0.7978846
        %v1110 = vadd.f32 %v1046, 0.7978846
        %v1111 = vadd.f32 %v1047, 0.7978846
        %v1112 = vadd.f32 %v1048, 0.7978846
        %v1113 = vadd.f32 %v1049, 0.7978846
        %v1114 = vadd.f32 %v1050, 0.7978846
        %v1115 = vadd.f32 %v1051, 0.7978846
        %v1116 = vadd.f32 %v1052, 0.7978846
        %v1117 = vadd.f32 %v1053, 0.7978846
        %v1118 = vadd.f32 %v1054, 0.7978846
        %v1119 = vadd.f32 %v1055, 0.7978846
        %v1120 = vadd.f32 %v1056, 0.7978846
        %v1121 = vadd.f32 %v1057, 0.7978846
        %v1122 = vadd.f32 %v1058, 0.7978846
        %v1123 = vadd.f32 %v1059, 0.7978846
        %v1124 = vadd.f32 %v1060, 0.7978846
        %v1125 = vadd.f32 %v1061, 0.7978846
        %v1126 = vadd.f32 %v1062, 0.7978846
        %v1127 = vadd.f32 %v1063, 0.7978846
        %v1128 = vadd.f32 %v1064, 0.7978846
        %v1129 = vadd.f32 %v1065, 0.7978846
        %v1130 = vadd.f32 %v1066, 0.7978846
        %v1131 = vadd.f32 %v1067, 0.7978846
        %v1132 = vadd.f32 %v1068, 0.7978846
        %v1133 = vadd.f32 %v1069, 0.7978846
        %v1134 = vadd.f32 %v1070, 0.7978846
        %v1135 = vadd.f32 %v1071, 0.7978846
        %v1136 = vadd.f32 %v1072, 0.7978846
        %v1137 = vadd.f32 %v1073, 0.7978846
        %v1138 = vadd.f32 %v1074, 0.7978846
        %v1139 = vadd.f32 %v1075, 0.7978846
        %v1140 = vadd.f32 %v1076, 0.7978846
        %v1141 = vadd.f32 %v1077, 0.7978846
        %v1142 = vadd.f32 %v1078, 0.7978846
        %v1143 = vadd.f32 %v1079, 0.7978846
        %v1144 = vadd.f32 %v1080, 0.7978846
        %v1145 = vadd.f32 %v1081, 0.7978846
        %v1146 = vadd.f32 %v1082, 0.7978846
        %v1147 = vadd.f32 %v1083, 0.7978846
        %v1148 = vadd.f32 %v1084, 0.7978846
        %v1149 = vadd.f32 %v1085, 0.7978846
        %v1150 = vadd.f32 %v1086, 0.7978846
        %v1151 = vadd.f32 %v1087, 0.7978846
        %v1152 = vadd.f32 %v1088, 0.7978846
        %v1153 = vadd.f32 %v1089, 0.7978846
        %v1154 = vadd.f32 %v1090, 0.7978846
        %v1155 = vadd.f32 %v1091, 0.7978846
        %v1156 = vadd.f32 %v1092, 0.7978846
        %v1157 = vadd.f32 %v1093, 0.7978846
        %v1158 = vadd.f32 %v1094, 0.7978846
        %v1159 = vadd.f32 %v1095, 0.7978846
        %v1160 = vmul.f32 %v622, %v1096
        %v1161 = vmul.f32 %v711, %v1097
        %v1162 = vmul.f32 %v624, %v1098
        %v1163 = vmul.f32 %v713, %v1099
        %v1164 = vmul.f32 %v627, %v1100
        %v1165 = vmul.f32 %v716, %v1101
        %v1166 = vmul.f32 %v629, %v1102
        %v1167 = vmul.f32 %v718, %v1103
        %v1168 = vmul.f32 %v632, %v1104
        %v1169 = vmul.f32 %v721, %v1105
        %v1170 = vmul.f32 %v634, %v1106
        %v1171 = vmul.f32 %v723, %v1107
        %v1172 = vmul.f32 %v637, %v1108
        %v1173 = vmul.f32 %v726, %v1109
        %v1174 = vmul.f32 %v639, %v1110
        %v1175 = vmul.f32 %v728, %v1111
        %v1176 = vmul.f32 %v642, %v1112
        %v1177 = vmul.f32 %v731, %v1113
        %v1178 = vmul.f32 %v644, %v1114
        %v1179 = vmul.f32 %v733, %v1115
        %v1180 = vmul.f32 %v647, %v1116
        %v1181 = vmul.f32 %v736, %v1117
        %v1182 = vmul.f32 %v649, %v1118
        %v1183 = vmul.f32 %v738, %v1119
        %v1184 = vmul.f32 %v652, %v1120
        %v1185 = vmul.f32 %v741, %v1121
        %v1186 = vmul.f32 %v654, %v1122
        %v1187 = vmul.f32 %v743, %v1123
        %v1188 = vmul.f32 %v657, %v1124
        %v1189 = vmul.f32 %v746, %v1125
        %v1190 = vmul.f32 %v659, %v1126
        %v1191 = vmul.f32 %v748, %v1127
        %v1192 = vmul.f32 %v662, %v1128
        %v1193 = vmul.f32 %v751, %v1129
        %v1194 = vmul.f32 %v664, %v1130
        %v1195 = vmul.f32 %v753, %v1131
        %v1196 = vmul.f32 %v667, %v1132
        %v1197 = vmul.f32 %v756, %v1133
        %v1198 = vmul.f32 %v669, %v1134
        %v1199 = vmul.f32 %v758, %v1135
        %v1200 = vmul.f32 %v672, %v1136
        %v1201 = vmul.f32 %v761, %v1137
        %v1202 = vmul.f32 %v674, %v1138
        %v1203 = vmul.f32 %v763, %v1139
        %v1204 = vmul.f32 %v677, %v1140
        %v1205 = vmul.f32 %v766, %v1141
        %v1206 = vmul.f32 %v679, %v1142
        %v1207 = vmul.f32 %v768, %v1143
        %v1208 = vmul.f32 %v682, %v1144
        %v1209 = vmul.f32 %v771, %v1145
        %v1210 = vmul.f32 %v684, %v1146
        %v1211 = vmul.f32 %v773, %v1147
        %v1212 = vmul.f32 %v687, %v1148
        %v1213 = vmul.f32 %v776, %v1149
        %v1214 = vmul.f32 %v689, %v1150
        %v1215 = vmul.f32 %v778, %v1151
        %v1216 = vmul.f32 %v692, %v1152
        %v1217 = vmul.f32 %v781, %v1153
        %v1218 = vmul.f32 %v694, %v1154
        %v1219 = vmul.f32 %v783, %v1155
        %v1220 = vmul.f32 %v697, %v1156
        %v1221 = vmul.f32 %v786, %v1157
        %v1222 = vmul.f32 %v699, %v1158
        %v1223 = vmul.f32 %v788, %v1159
        %v1224 = vmul.f32 %v622, 0.5
        %v1225 = vmul.f32 %v711, 0.5
        %v1226 = vmul.f32 %v624, 0.5
        %v1227 = vmul.f32 %v713, 0.5
        %v1228 = vmul.f32 %v627, 0.5
        %v1229 = vmul.f32 %v716, 0.5
        %v1230 = vmul.f32 %v629, 0.5
        %v1231 = vmul.f32 %v718, 0.5
        %v1232 = vmul.f32 %v632, 0.5
        %v1233 = vmul.f32 %v721, 0.5
        %v1234 = vmul.f32 %v634, 0.5
        %v1235 = vmul.f32 %v723, 0.5
        %v1236 = vmul.f32 %v637, 0.5
        %v1237 = vmul.f32 %v726, 0.5
        %v1238 = vmul.f32 %v639, 0.5
        %v1239 = vmul.f32 %v728, 0.5
        %v1240 = vmul.f32 %v642, 0.5
        %v1241 = vmul.f32 %v731, 0.5
        %v1242 = vmul.f32 %v644, 0.5
        %v1243 = vmul.f32 %v733, 0.5
        %v1244 = vmul.f32 %v647, 0.5
        %v1245 = vmul.f32 %v736, 0.5
        %v1246 = vmul.f32 %v649, 0.5
        %v1247 = vmul.f32 %v738, 0.5
        %v1248 = vmul.f32 %v652, 0.5
        %v1249 = vmul.f32 %v741, 0.5
        %v1250 = vmul.f32 %v654, 0.5
        %v1251 = vmul.f32 %v743, 0.5
        %v1252 = vmul.f32 %v657, 0.5
        %v1253 = vmul.f32 %v746, 0.5
        %v1254 = vmul.f32 %v659, 0.5
        %v1255 = vmul.f32 %v748, 0.5
        %v1256 = vmul.f32 %v662, 0.5
        %v1257 = vmul.f32 %v751, 0.5
        %v1258 = vmul.f32 %v664, 0.5
        %v1259 = vmul.f32 %v753, 0.5
        %v1260 = vmul.f32 %v667, 0.5
        %v1261 = vmul.f32 %v756, 0.5
        %v1262 = vmul.f32 %v669, 0.5
        %v1263 = vmul.f32 %v758, 0.5
        %v1264 = vmul.f32 %v672, 0.5
        %v1265 = vmul.f32 %v761, 0.5
        %v1266 = vmul.f32 %v674, 0.5
        %v1267 = vmul.f32 %v763, 0.5
        %v1268 = vmul.f32 %v677, 0.5
        %v1269 = vmul.f32 %v766, 0.5
        %v1270 = vmul.f32 %v679, 0.5
        %v1271 = vmul.f32 %v768, 0.5
        %v1272 = vmul.f32 %v682, 0.5
        %v1273 = vmul.f32 %v771, 0.5
        %v1274 = vmul.f32 %v684, 0.5
        %v1275 = vmul.f32 %v773, 0.5
        %v1276 = vmul.f32 %v687, 0.5
        %v1277 = vmul.f32 %v776, 0.5
        %v1278 = vmul.f32 %v689, 0.5
        %v1279 = vmul.f32 %v778, 0.5
        %v1280 = vmul.f32 %v692, 0.5
        %v1281 = vmul.f32 %v781, 0.5
        %v1282 = vmul.f32 %v694, 0.5
        %v1283 = vmul.f32 %v783, 0.5
        %v1284 = vmul.f32 %v697, 0.5
        %v1285 = vmul.f32 %v786, 0.5
        %v1286 = vmul.f32 %v699, 0.5
        %v1287 = vmul.f32 %v788, 0.5
        %v1288 = vtanh.pop %v1160
        %v1289 = vtanh.pop %v1161
        %v1290 = vtanh.pop %v1162
        %v1291 = vtanh.pop %v1163
        %v1292 = vtanh.pop %v1164
        %v1293 = vtanh.pop %v1165
        %v1294 = vtanh.pop %v1166
        %v1295 = vtanh.pop %v1167
        %v1296 = vtanh.pop %v1168
        %v1297 = vtanh.pop %v1169
        %v1298 = vtanh.pop %v1170
        %v1299 = vtanh.pop %v1171
        %v1300 = vtanh.pop %v1172
        %v1301 = vtanh.pop %v1173
        %v1302 = vtanh.pop %v1174
        %v1303 = vtanh.pop %v1175
        %v1304 = vtanh.pop %v1176
        %v1305 = vtanh.pop %v1177
        %v1306 = vtanh.pop %v1178
        %v1307 = vtanh.pop %v1179
        %v1308 = vtanh.pop %v1180
        %v1309 = vtanh.pop %v1181
        %v1310 = vtanh.pop %v1182
        %v1311 = vtanh.pop %v1183
        %v1312 = vtanh.pop %v1184
        %v1313 = vtanh.pop %v1185
        %v1314 = vtanh.pop %v1186
        %v1315 = vtanh.pop %v1187
        %v1316 = vtanh.pop %v1188
        %v1317 = vtanh.pop %v1189
        %v1318 = vtanh.pop %v1190
        %v1319 = vtanh.pop %v1191
        %v1320 = vtanh.pop %v1192
        %v1321 = vtanh.pop %v1193
        %v1322 = vtanh.pop %v1194
        %v1323 = vtanh.pop %v1195
        %v1324 = vtanh.pop %v1196
        %v1325 = vtanh.pop %v1197
        %v1326 = vtanh.pop %v1198
        %v1327 = vtanh.pop %v1199
        %v1328 = vtanh.pop %v1200
        %v1329 = vtanh.pop %v1201
        %v1330 = vtanh.pop %v1202
        %v1331 = vtanh.pop %v1203
        %v1332 = vtanh.pop %v1204
        %v1333 = vtanh.pop %v1205
        %v1334 = vtanh.pop %v1206
        %v1335 = vtanh.pop %v1207
        %v1336 = vtanh.pop %v1208
        %v1337 = vtanh.pop %v1209
        %v1338 = vtanh.pop %v1210
        %v1339 = vtanh.pop %v1211
        %v1340 = vtanh.pop %v1212
        %v1341 = vtanh.pop %v1213
        %v1342 = vtanh.pop %v1214
        %v1343 = vtanh.pop %v1215
        %v1344 = vtanh.pop %v1216
        %v1345 = vtanh.pop %v1217
        %v1346 = vtanh.pop %v1218
        %v1347 = vtanh.pop %v1219
        %v1348 = vtanh.pop %v1220
        %v1349 = vtanh.pop %v1221
        %v1350 = vtanh.pop %v1222
        %v1351 = vtanh.pop %v1223
        %v1352 = vadd.f32 %v1288, 1.0
        %v1353 = vadd.f32 %v1289, 1.0
        %v1354 = vadd.f32 %v1290, 1.0
        %v1355 = vadd.f32 %v1291, 1.0
        %v1356 = vadd.f32 %v1292, 1.0
        %v1357 = vadd.f32 %v1293, 1.0
        %v1358 = vadd.f32 %v1294, 1.0
        %v1359 = vadd.f32 %v1295, 1.0
        %v1360 = vadd.f32 %v1296, 1.0
        %v1361 = vadd.f32 %v1297, 1.0
        %v1362 = vadd.f32 %v1298, 1.0
        %v1363 = vadd.f32 %v1299, 1.0
        %v1364 = vadd.f32 %v1300, 1.0
        %v1365 = vadd.f32 %v1301, 1.0
        %v1366 = vadd.f32 %v1302, 1.0
        %v1367 = vadd.f32 %v1303, 1.0
        %v1368 = vadd.f32 %v1304, 1.0
        %v1369 = vadd.f32 %v1305, 1.0
        %v1370 = vadd.f32 %v1306, 1.0
        %v1371 = vadd.f32 %v1307, 1.0
        %v1372 = vadd.f32 %v1308, 1.0
        %v1373 = vadd.f32 %v1309, 1.0
        %v1374 = vadd.f32 %v1310, 1.0
        %v1375 = vadd.f32 %v1311, 1.0
        %v1376 = vadd.f32 %v1312, 1.0
        %v1377 = vadd.f32 %v1313, 1.0
        %v1378 = vadd.f32 %v1314, 1.0
        %v1379 = vadd.f32 %v1315, 1.0
        %v1380 = vadd.f32 %v1316, 1.0
        %v1381 = vadd.f32 %v1317, 1.0
        %v1382 = vadd.f32 %v1318, 1.0
        %v1383 = vadd.f32 %v1319, 1.0
        %v1384 = vadd.f32 %v1320, 1.0
        %v1385 = vadd.f32 %v1321, 1.0
        %v1386 = vadd.f32 %v1322, 1.0
        %v1387 = vadd.f32 %v1323, 1.0
        %v1388 = vadd.f32 %v1324, 1.0
        %v1389 = vadd.f32 %v1325, 1.0
        %v1390 = vadd.f32 %v1326, 1.0
        %v1391 = vadd.f32 %v1327, 1.0
        %v1392 = vadd.f32 %v1328, 1.0
        %v1393 = vadd.f32 %v1329, 1.0
        %v1394 = vadd.f32 %v1330, 1.0
        %v1395 = vadd.f32 %v1331, 1.0
        %v1396 = vadd.f32 %v1332, 1.0
        %v1397 = vadd.f32 %v1333, 1.0
        %v1398 = vadd.f32 %v1334, 1.0
        %v1399 = vadd.f32 %v1335, 1.0
        %v1400 = vadd.f32 %v1336, 1.0
        %v1401 = vadd.f32 %v1337, 1.0
        %v1402 = vadd.f32 %v1338, 1.0
        %v1403 = vadd.f32 %v1339, 1.0
        %v1404 = vadd.f32 %v1340, 1.0
        %v1405 = vadd.f32 %v1341, 1.0
        %v1406 = vadd.f32 %v1342, 1.0
        %v1407 = vadd.f32 %v1343, 1.0
        %v1408 = vadd.f32 %v1344, 1.0
        %v1409 = vadd.f32 %v1345, 1.0
        %v1410 = vadd.f32 %v1346, 1.0
        %v1411 = vadd.f32 %v1347, 1.0
        %v1412 = vadd.f32 %v1348, 1.0
        %v1413 = vadd.f32 %v1349, 1.0
        %v1414 = vadd.f32 %v1350, 1.0
        %v1415 = vadd.f32 %v1351, 1.0
        %v1416 = vmul.f32 %v1224, %v1352
        %v1417 = vmul.f32 %v1225, %v1353
        %v1418 = vmul.f32 %v1226, %v1354
        %v1419 = vmul.f32 %v1227, %v1355
        %v1420 = vmul.f32 %v1228, %v1356
        %v1421 = vmul.f32 %v1229, %v1357
        %v1422 = vmul.f32 %v1230, %v1358
        %v1423 = vmul.f32 %v1231, %v1359
        %v1424 = vmul.f32 %v1232, %v1360
        %v1425 = vmul.f32 %v1233, %v1361
        %v1426 = vmul.f32 %v1234, %v1362
        %v1427 = vmul.f32 %v1235, %v1363
        %v1428 = vmul.f32 %v1236, %v1364
        %v1429 = vmul.f32 %v1237, %v1365
        %v1430 = vmul.f32 %v1238, %v1366
        %v1431 = vmul.f32 %v1239, %v1367
        %v1432 = vmul.f32 %v1240, %v1368
        %v1433 = vmul.f32 %v1241, %v1369
        %v1434 = vmul.f32 %v1242, %v1370
        %v1435 = vmul.f32 %v1243, %v1371
        %v1436 = vmul.f32 %v1244, %v1372
        %v1437 = vmul.f32 %v1245, %v1373
        %v1438 = vmul.f32 %v1246, %v1374
        %v1439 = vmul.f32 %v1247, %v1375
        %v1440 = vmul.f32 %v1248, %v1376
        %v1441 = vmul.f32 %v1249, %v1377
        %v1442 = vmul.f32 %v1250, %v1378
        %v1443 = vmul.f32 %v1251, %v1379
        %v1444 = vmul.f32 %v1252, %v1380
        %v1445 = vmul.f32 %v1253, %v1381
        %v1446 = vmul.f32 %v1254, %v1382
        %v1447 = vmul.f32 %v1255, %v1383
        %v1448 = vmul.f32 %v1256, %v1384
        %v1449 = vmul.f32 %v1257, %v1385
        %v1450 = vmul.f32 %v1258, %v1386
        %v1451 = vmul.f32 %v1259, %v1387
        %v1452 = vmul.f32 %v1260, %v1388
        %v1453 = vmul.f32 %v1261, %v1389
        %v1454 = vmul.f32 %v1262, %v1390
        %v1455 = vmul.f32 %v1263, %v1391
        %v1456 = vmul.f32 %v1264, %v1392
        %v1457 = vmul.f32 %v1265, %v1393
        %v1458 = vmul.f32 %v1266, %v1394
        %v1459 = vmul.f32 %v1267, %v1395
        %v1460 = vmul.f32 %v1268, %v1396
        %v1461 = vmul.f32 %v1269, %v1397
        %v1462 = vmul.f32 %v1270, %v1398
        %v1463 = vmul.f32 %v1271, %v1399
        %v1464 = vmul.f32 %v1272, %v1400
        %v1465 = vmul.f32 %v1273, %v1401
        %v1466 = vmul.f32 %v1274, %v1402
        %v1467 = vmul.f32 %v1275, %v1403
        %v1468 = vmul.f32 %v1276, %v1404
        %v1469 = vmul.f32 %v1277, %v1405
        %v1470 = vmul.f32 %v1278, %v1406
        %v1471 = vmul.f32 %v1279, %v1407
        %v1472 = vmul.f32 %v1280, %v1408
        %v1473 = vmul.f32 %v1281, %v1409
        %v1474 = vmul.f32 %v1282, %v1410
        %v1475 = vmul.f32 %v1283, %v1411
        %v1476 = vmul.f32 %v1284, %v1412
        %v1477 = vmul.f32 %v1285, %v1413
        %v1478 = vmul.f32 %v1286, %v1414
        %v1479 = vmul.f32 %v1287, %v1415
        %v1480 = vmul.f32 %v1416, %v800
        %v1481 = vmul.f32 %v1417, %v889
        %v1482 = vmul.f32 %v1418, %v802
        %v1483 = vmul.f32 %v1419, %v891
        %v1484 = vmul.f32 %v1420, %v805
        %v1485 = vmul.f32 %v1421, %v894
        %v1486 = vmul.f32 %v1422, %v807
        %v1487 = vmul.f32 %v1423, %v896
        %v1488 = vmul.f32 %v1424, %v810
        %v1489 = vmul.f32 %v1425, %v899
        %v1490 = vmul.f32 %v1426, %v812
        %v1491 = vmul.f32 %v1427, %v901
        %v1492 = vmul.f32 %v1428, %v815
        %v1493 = vmul.f32 %v1429, %v904
        %v1494 = vmul.f32 %v1430, %v817
        %v1495 = vmul.f32 %v1431, %v906
        %v1496 = vmul.f32 %v1432, %v820
        %v1497 = vmul.f32 %v1433, %v909
        %v1498 = vmul.f32 %v1434, %v822
        %v1499 = vmul.f32 %v1435, %v911
        %v1500 = vmul.f32 %v1436, %v825
        %v1501 = vmul.f32 %v1437, %v914
        %v1502 = vmul.f32 %v1438, %v827
        %v1503 = vmul.f32 %v1439, %v916
        %v1504 = vmul.f32 %v1440, %v830
        %v1505 = vmul.f32 %v1441, %v919
        %v1506 = vmul.f32 %v1442, %v832
        %v1507 = vmul.f32 %v1443, %v921
        %v1508 = vmul.f32 %v1444, %v835
        %v1509 = vmul.f32 %v1445, %v924
        %v1510 = vmul.f32 %v1446, %v837
        %v1511 = vmul.f32 %v1447, %v926
        %v1512 = vmul.f32 %v1448, %v840
        %v1513 = vmul.f32 %v1449, %v929
        %v1514 = vmul.f32 %v1450, %v842
        %v1515 = vmul.f32 %v1451, %v931
        %v1516 = vmul.f32 %v1452, %v845
        %v1517 = vmul.f32 %v1453, %v934
        %v1518 = vmul.f32 %v1454, %v847
        %v1519 = vmul.f32 %v1455, %v936
        %v1520 = vmul.f32 %v1456, %v850
        %v1521 = vmul.f32 %v1457, %v939
        %v1522 = vmul.f32 %v1458, %v852
        %v1523 = vmul.f32 %v1459, %v941
        %v1524 = vmul.f32 %v1460, %v855
        %v1525 = vmul.f32 %v1461, %v944
        %v1526 = vmul.f32 %v1462, %v857
        %v1527 = vmul.f32 %v1463, %v946
        %v1528 = vmul.f32 %v1464, %v860
        %v1529 = vmul.f32 %v1465, %v949
        %v1530 = vmul.f32 %v1466, %v862
        %v1531 = vmul.f32 %v1467, %v951
        %v1532 = vmul.f32 %v1468, %v865
        %v1533 = vmul.f32 %v1469, %v954
        %v1534 = vmul.f32 %v1470, %v867
        %v1535 = vmul.f32 %v1471, %v956
        %v1536 = vmul.f32 %v1472, %v870
        %v1537 = vmul.f32 %v1473, %v959
        %v1538 = vmul.f32 %v1474, %v872
        %v1539 = vmul.f32 %v1475, %v961
        %v1540 = vmul.f32 %v1476, %v875
        %v1541 = vmul.f32 %v1477, %v964
        %v1542 = vmul.f32 %v1478, %v877
        %v1543 = vmul.f32 %v1479, %v966
        %v1544 = vpack.c.bf16 %v1482, %v1480
        %v1545 = vpack.c.bf16 %v1483, %v1481
        %v1546 = vpack.c.bf16 %v1486, %v1484
        %v1547 = vpack.c.bf16 %v1487, %v1485
        %v1548 = vpack.c.bf16 %v1490, %v1488
        %v1549 = vpack.c.bf16 %v1491, %v1489
        %v1550 = vpack.c.bf16 %v1494, %v1492
        %v1551 = vpack.c.bf16 %v1495, %v1493
        %v1552 = vpack.c.bf16 %v1498, %v1496
        %v1553 = vpack.c.bf16 %v1499, %v1497
        %v1554 = vpack.c.bf16 %v1502, %v1500
        %v1555 = vpack.c.bf16 %v1503, %v1501
        %v1556 = vpack.c.bf16 %v1506, %v1504
        %v1557 = vpack.c.bf16 %v1507, %v1505
        %v1558 = vpack.c.bf16 %v1510, %v1508
        %v1559 = vpack.c.bf16 %v1511, %v1509
        %v1560 = vpack.c.bf16 %v1514, %v1512
        %v1561 = vpack.c.bf16 %v1515, %v1513
        %v1562 = vpack.c.bf16 %v1518, %v1516
        %v1563 = vpack.c.bf16 %v1519, %v1517
        %v1564 = vpack.c.bf16 %v1522, %v1520
        %v1565 = vpack.c.bf16 %v1523, %v1521
        %v1566 = vpack.c.bf16 %v1526, %v1524
        %v1567 = vpack.c.bf16 %v1527, %v1525
        %v1568 = vpack.c.bf16 %v1530, %v1528
        %v1569 = vpack.c.bf16 %v1531, %v1529
        %v1570 = vpack.c.bf16 %v1534, %v1532
        %v1571 = vpack.c.bf16 %v1535, %v1533
        %v1572 = vpack.c.bf16 %v1538, %v1536
        %v1573 = vpack.c.bf16 %v1539, %v1537
        %v1574 = vpack.c.bf16 %v1542, %v1540
        %v1575 = vpack.c.bf16 %v1543, %v1541
        %v1576 = vld [vmem:[#allocation2] sm:$0xff]
        %v1577 = vld [vmem:[#allocation2 + $0x8] sm:$0xff]
        %v1578 = vld [vmem:[#allocation2 + $0x10] sm:$0xff]
        %v1579 = vld [vmem:[#allocation2 + $0x18] sm:$0xff]
        %v1580 = vld [vmem:[#allocation2 + $0x20] sm:$0xff]
        %v1581 = vld [vmem:[#allocation2 + $0x28] sm:$0xff]
        %v1582 = vld [vmem:[#allocation2 + $0x30] sm:$0xff]
        %v1583 = vld [vmem:[#allocation2 + $0x38] sm:$0xff]
        %v1584 = vld [vmem:[#allocation2 + $0x40] sm:$0xff]
        %v1585 = vld [vmem:[#allocation2 + $0x48] sm:$0xff]
        %v1586 = vld [vmem:[#allocation2 + $0x50] sm:$0xff]
        %v1587 = vld [vmem:[#allocation2 + $0x58] sm:$0xff]
        %v1588 = vld [vmem:[#allocation2 + $0x60] sm:$0xff]
        %v1589 = vld [vmem:[#allocation2 + $0x68] sm:$0xff]
        %v1590 = vld [vmem:[#allocation2 + $0x70] sm:$0xff]
        %v1591 = vld [vmem:[#allocation2 + $0x78] sm:$0xff]
        %v1592 = vld [vmem:[#allocation2 + $0x80] sm:$0xff]
        %v1593 = vld [vmem:[#allocation2 + $0x88] sm:$0xff]
        %v1594 = vld [vmem:[#allocation2 + $0x90] sm:$0xff]
        %v1595 = vld [vmem:[#allocation2 + $0x98] sm:$0xff]
        %v1596 = vld [vmem:[#allocation2 + $0xa0] sm:$0xff]
        %v1597 = vld [vmem:[#allocation2 + $0xa8] sm:$0xff]
        %v1598 = vld [vmem:[#allocation2 + $0xb0] sm:$0xff]
        %v1599 = vld [vmem:[#allocation2 + $0xb8] sm:$0xff]
        %v1600 = vld [vmem:[#allocation2 + $0xc0] sm:$0xff]
        %v1601 = vld [vmem:[#allocation2 + $0xc8] sm:$0xff]
        %v1602 = vld [vmem:[#allocation2 + $0xd0] sm:$0xff]
        %v1603 = vld [vmem:[#allocation2 + $0xd8] sm:$0xff]
        %v1604 = vld [vmem:[#allocation2 + $0xe0] sm:$0xff]
        %v1605 = vld [vmem:[#allocation2 + $0xe8] sm:$0xff]
        %v1606 = vld [vmem:[#allocation2 + $0xf0] sm:$0xff]
        %v1607 = vld [vmem:[#allocation2 + $0xf8] sm:$0xff]
        %v1608 = vld [vmem:[#allocation8] sm:$0xf]
        %v1609 = vld [vmem:[#allocation8 + $0x4] sm:$0xf]
        %v1610 = vld [vmem:[#allocation8 + $0x8] sm:$0xf]
        %v1611 = vld [vmem:[#allocation8 + $0xc] sm:$0xf]
        %v1612 = vld [vmem:[#allocation8 + $0x10] sm:$0xf]
        %v1613 = vld [vmem:[#allocation8 + $0x14] sm:$0xf]
        %v1614 = vld [vmem:[#allocation8 + $0x18] sm:$0xf]
        %v1615 = vld [vmem:[#allocation8 + $0x1c] sm:$0xf]
        %v1616 = vld [vmem:[#allocation8 + $0x20] sm:$0xf]
        %v1617 = vld [vmem:[#allocation8 + $0x24] sm:$0xf]
        %v1618 = vld [vmem:[#allocation8 + $0x28] sm:$0xf]
        %v1619 = vld [vmem:[#allocation8 + $0x2c] sm:$0xf]
        %v1620 = vld [vmem:[#allocation8 + $0x30] sm:$0xf]
        %v1621 = vld [vmem:[#allocation8 + $0x34] sm:$0xf]
        %v1622 = vld [vmem:[#allocation8 + $0x38] sm:$0xf]
        %v1623 = vld [vmem:[#allocation8 + $0x3c] sm:$0xf]
        %v1624 = vld [vmem:[#allocation8 + $0x40] sm:$0xf]
        %v1625 = vld [vmem:[#allocation8 + $0x44] sm:$0xf]
        %v1626 = vld [vmem:[#allocation8 + $0x48] sm:$0xf]
        %v1627 = vld [vmem:[#allocation8 + $0x4c] sm:$0xf]
        %v1628 = vld [vmem:[#allocation8 + $0x50] sm:$0xf]
        %v1629 = vld [vmem:[#allocation8 + $0x54] sm:$0xf]
        %v1630 = vld [vmem:[#allocation8 + $0x58] sm:$0xf]
        %v1631 = vld [vmem:[#allocation8 + $0x5c] sm:$0xf]
        %v1632 = vld [vmem:[#allocation8 + $0x60] sm:$0xf]
        %v1633 = vld [vmem:[#allocation8 + $0x64] sm:$0xf]
        %v1634 = vld [vmem:[#allocation8 + $0x68] sm:$0xf]
        %v1635 = vld [vmem:[#allocation8 + $0x6c] sm:$0xf]
        %v1636 = vld [vmem:[#allocation8 + $0x70] sm:$0xf]
        %v1637 = vld [vmem:[#allocation8 + $0x74] sm:$0xf]
        %v1638 = vld [vmem:[#allocation8 + $0x78] sm:$0xf]
        %v1639 = vld [vmem:[#allocation8 + $0x7c] sm:$0xf]
        %v1672 = vunpack.c.l.b16 %v1608
        %v1673 = vunpack.c.l.b16 %v1609
        %v1674 = vunpack.c.l.b16 %v1610
        %v1675 = vunpack.c.l.b16 %v1611
        %v1676 = vunpack.c.l.b16 %v1612
        %v1677 = vunpack.c.l.b16 %v1613
        %v1678 = vunpack.c.l.b16 %v1614
        %v1679 = vunpack.c.l.b16 %v1615
        %v1680 = vunpack.c.l.b16 %v1616
        %v1681 = vunpack.c.l.b16 %v1617
        %v1682 = vunpack.c.l.b16 %v1618
        %v1683 = vunpack.c.l.b16 %v1619
        %v1684 = vunpack.c.l.b16 %v1620
        %v1685 = vunpack.c.l.b16 %v1621
        %v1686 = vunpack.c.l.b16 %v1622
        %v1687 = vunpack.c.l.b16 %v1623
        %v1688 = vunpack.c.l.b16 %v1624
        %v1689 = vunpack.c.l.b16 %v1625
        %v1690 = vunpack.c.l.b16 %v1626
        %v1691 = vunpack.c.l.b16 %v1627
        %v1692 = vunpack.c.l.b16 %v1628
        %v1693 = vunpack.c.l.b16 %v1629
        %v1694 = vunpack.c.l.b16 %v1630
        %v1695 = vunpack.c.l.b16 %v1631
        %v1696 = vunpack.c.l.b16 %v1632
        %v1697 = vunpack.c.l.b16 %v1633
        %v1698 = vunpack.c.l.b16 %v1634
        %v1699 = vunpack.c.l.b16 %v1635
        %v1700 = vunpack.c.l.b16 %v1636
        %v1701 = vunpack.c.l.b16 %v1637
        %v1702 = vunpack.c.l.b16 %v1638
        %v1703 = vunpack.c.l.b16 %v1639
        %v1704 = vpack.c.b16 %v1673, %v1672
        %v1705 = vpack.c.b16 %v1675, %v1674
        %v1706 = vpack.c.b16 %v1677, %v1676
        %v1707 = vpack.c.b16 %v1679, %v1678
        %v1708 = vpack.c.b16 %v1681, %v1680
        %v1709 = vpack.c.b16 %v1683, %v1682
        %v1710 = vpack.c.b16 %v1685, %v1684
        %v1711 = vpack.c.b16 %v1687, %v1686
        %v1712 = vpack.c.b16 %v1689, %v1688
        %v1713 = vpack.c.b16 %v1691, %v1690
        %v1714 = vpack.c.b16 %v1693, %v1692
        %v1715 = vpack.c.b16 %v1695, %v1694
        %v1716 = vpack.c.b16 %v1697, %v1696
        %v1717 = vpack.c.b16 %v1699, %v1698
        %v1718 = vpack.c.b16 %v1701, %v1700
        %v1719 = vpack.c.b16 %v1703, %v1702
        %1736 = vmatpush.bf16.msra.mxu0 %v1711
        %1737 = vmatpush.bf16.msra.mxu0 %v1710
        %1738 = vmatpush.bf16.msra.mxu0 %v1709
        %1739 = vmatpush.bf16.msra.mxu0 %v1708
        %1740 = vmatpush.bf16.msra.mxu0 %v1707
        %1741 = vmatpush.bf16.msra.mxu0 %v1706
        %1742 = vmatpush.bf16.msra.mxu0 %v1705
        %1743 = vmatpush.bf16.msra.mxu0 %v1704
        %1744 = vmatmul.bf16.gmra.mxu0 %v1544
        %v1745 = vpop.f32.mrf.mxu0
        %v1746 = vadd.f32 0.0, %v1745
        %v1747 = vpop.f32.mrf.mxu0
        %v1748 = vadd.f32 0.0, %v1747
        %1749 = vmatmul.bf16.gmra.mxu0 %v1546
        %v1750 = vpop.f32.mrf.mxu0
        %v1751 = vadd.f32 0.0, %v1750
        %v1752 = vpop.f32.mrf.mxu0
        %v1753 = vadd.f32 0.0, %v1752
        %1754 = vmatmul.bf16.gmra.mxu0 %v1548
        %v1755 = vpop.f32.mrf.mxu0
        %v1756 = vadd.f32 0.0, %v1755
        %v1757 = vpop.f32.mrf.mxu0
        %v1758 = vadd.f32 0.0, %v1757
        %1759 = vmatmul.bf16.gmra.mxu0 %v1550
        %v1760 = vpop.f32.mrf.mxu0
        %v1761 = vadd.f32 0.0, %v1760
        %v1762 = vpop.f32.mrf.mxu0
        %v1763 = vadd.f32 0.0, %v1762
        %1764 = vmatmul.bf16.gmra.mxu0 %v1552
        %v1765 = vpop.f32.mrf.mxu0
        %v1766 = vadd.f32 0.0, %v1765
        %v1767 = vpop.f32.mrf.mxu0
        %v1768 = vadd.f32 0.0, %v1767
        %1769 = vmatmul.bf16.gmra.mxu0 %v1554
        %v1770 = vpop.f32.mrf.mxu0
        %v1771 = vadd.f32 0.0, %v1770
        %v1772 = vpop.f32.mrf.mxu0
        %v1773 = vadd.f32 0.0, %v1772
        %1774 = vmatmul.bf16.gmra.mxu0 %v1556
        %v1775 = vpop.f32.mrf.mxu0
        %v1776 = vadd.f32 0.0, %v1775
        %v1777 = vpop.f32.mrf.mxu0
        %v1778 = vadd.f32 0.0, %v1777
        %1779 = vmatmul.bf16.gmra.mxu0 %v1558
        %v1780 = vpop.f32.mrf.mxu0
        %v1781 = vadd.f32 0.0, %v1780
        %v1782 = vpop.f32.mrf.mxu0
        %v1783 = vadd.f32 0.0, %v1782
        %1784 = vmatmul.bf16.gmra.mxu0 %v1560
        %v1785 = vpop.f32.mrf.mxu0
        %v1786 = vadd.f32 0.0, %v1785
        %v1787 = vpop.f32.mrf.mxu0
        %v1788 = vadd.f32 0.0, %v1787
        %1789 = vmatmul.bf16.gmra.mxu0 %v1562
        %v1790 = vpop.f32.mrf.mxu0
        %v1791 = vadd.f32 0.0, %v1790
        %v1792 = vpop.f32.mrf.mxu0
        %v1793 = vadd.f32 0.0, %v1792
        %1794 = vmatmul.bf16.gmra.mxu0 %v1564
        %v1795 = vpop.f32.mrf.mxu0
        %v1796 = vadd.f32 0.0, %v1795
        %v1797 = vpop.f32.mrf.mxu0
        %v1798 = vadd.f32 0.0, %v1797
        %1799 = vmatmul.bf16.gmra.mxu0 %v1566
        %v1800 = vpop.f32.mrf.mxu0
        %v1801 = vadd.f32 0.0, %v1800
        %v1802 = vpop.f32.mrf.mxu0
        %v1803 = vadd.f32 0.0, %v1802
        %1804 = vmatmul.bf16.gmra.mxu0 %v1568
        %v1805 = vpop.f32.mrf.mxu0
        %v1806 = vadd.f32 0.0, %v1805
        %v1807 = vpop.f32.mrf.mxu0
        %v1808 = vadd.f32 0.0, %v1807
        %1809 = vmatmul.bf16.gmra.mxu0 %v1570
        %v1810 = vpop.f32.mrf.mxu0
        %v1811 = vadd.f32 0.0, %v1810
        %v1812 = vpop.f32.mrf.mxu0
        %v1813 = vadd.f32 0.0, %v1812
        %1814 = vmatmul.bf16.gmra.mxu0 %v1572
        %v1815 = vpop.f32.mrf.mxu0
        %v1816 = vadd.f32 0.0, %v1815
        %v1817 = vpop.f32.mrf.mxu0
        %v1818 = vadd.f32 0.0, %v1817
        %1819 = vmatmul.bf16.gmra.mxu0 %v1574
        %v1820 = vpop.f32.mrf.mxu0
        %v1821 = vadd.f32 0.0, %v1820
        %v1822 = vpop.f32.mrf.mxu0
        %v1823 = vadd.f32 0.0, %v1822
        %1824 = vdwg.mxu0
        %1825 = vmatpush.bf16.msra.mxu0 %v1719
        %1826 = vmatpush.bf16.msra.mxu0 %v1718
        %1827 = vmatpush.bf16.msra.mxu0 %v1717
        %1828 = vmatpush.bf16.msra.mxu0 %v1716
        %1829 = vmatpush.bf16.msra.mxu0 %v1715
        %1830 = vmatpush.bf16.msra.mxu0 %v1714
        %1831 = vmatpush.bf16.msra.mxu0 %v1713
        %1832 = vmatpush.bf16.msra.mxu0 %v1712
        %1833 = vmatmul.bf16.gmra.mxu0 %v1545
        %v1834 = vpop.f32.mrf.mxu0
        %v1835 = vadd.f32 %v1746, %v1834
        %v1836 = vpop.f32.mrf.mxu0
        %v1837 = vadd.f32 %v1748, %v1836
        %1838 = vmatmul.bf16.gmra.mxu0 %v1547
        %v1839 = vpop.f32.mrf.mxu0
        %v1840 = vadd.f32 %v1751, %v1839
        %v1841 = vpop.f32.mrf.mxu0
        %v1842 = vadd.f32 %v1753, %v1841
        %1843 = vmatmul.bf16.gmra.mxu0 %v1549
        %v1844 = vpop.f32.mrf.mxu0
        %v1845 = vadd.f32 %v1756, %v1844
        %v1846 = vpop.f32.mrf.mxu0
        %v1847 = vadd.f32 %v1758, %v1846
        %1848 = vmatmul.bf16.gmra.mxu0 %v1551
        %v1849 = vpop.f32.mrf.mxu0
        %v1850 = vadd.f32 %v1761, %v1849
        %v1851 = vpop.f32.mrf.mxu0
        %v1852 = vadd.f32 %v1763, %v1851
        %1853 = vmatmul.bf16.gmra.mxu0 %v1553
        %v1854 = vpop.f32.mrf.mxu0
        %v1855 = vadd.f32 %v1766, %v1854
        %v1856 = vpop.f32.mrf.mxu0
        %v1857 = vadd.f32 %v1768, %v1856
        %1858 = vmatmul.bf16.gmra.mxu0 %v1555
        %v1859 = vpop.f32.mrf.mxu0
        %v1860 = vadd.f32 %v1771, %v1859
        %v1861 = vpop.f32.mrf.mxu0
        %v1862 = vadd.f32 %v1773, %v1861
        %1863 = vmatmul.bf16.gmra.mxu0 %v1557
        %v1864 = vpop.f32.mrf.mxu0
        %v1865 = vadd.f32 %v1776, %v1864
        %v1866 = vpop.f32.mrf.mxu0
        %v1867 = vadd.f32 %v1778, %v1866
        %1868 = vmatmul.bf16.gmra.mxu0 %v1559
        %v1869 = vpop.f32.mrf.mxu0
        %v1870 = vadd.f32 %v1781, %v1869
        %v1871 = vpop.f32.mrf.mxu0
        %v1872 = vadd.f32 %v1783, %v1871
        %1873 = vmatmul.bf16.gmra.mxu0 %v1561
        %v1874 = vpop.f32.mrf.mxu0
        %v1875 = vadd.f32 %v1786, %v1874
        %v1876 = vpop.f32.mrf.mxu0
        %v1877 = vadd.f32 %v1788, %v1876
        %1878 = vmatmul.bf16.gmra.mxu0 %v1563
        %v1879 = vpop.f32.mrf.mxu0
        %v1880 = vadd.f32 %v1791, %v1879
        %v1881 = vpop.f32.mrf.mxu0
        %v1882 = vadd.f32 %v1793, %v1881
        %1883 = vmatmul.bf16.gmra.mxu0 %v1565
        %v1884 = vpop.f32.mrf.mxu0
        %v1885 = vadd.f32 %v1796, %v1884
        %v1886 = vpop.f32.mrf.mxu0
        %v1887 = vadd.f32 %v1798, %v1886
        %1888 = vmatmul.bf16.gmra.mxu0 %v1567
        %v1889 = vpop.f32.mrf.mxu0
        %v1890 = vadd.f32 %v1801, %v1889
        %v1891 = vpop.f32.mrf.mxu0
        %v1892 = vadd.f32 %v1803, %v1891
        %1893 = vmatmul.bf16.gmra.mxu0 %v1569
        %v1894 = vpop.f32.mrf.mxu0
        %v1895 = vadd.f32 %v1806, %v1894
        %v1896 = vpop.f32.mrf.mxu0
        %v1897 = vadd.f32 %v1808, %v1896
        %1898 = vmatmul.bf16.gmra.mxu0 %v1571
        %v1899 = vpop.f32.mrf.mxu0
        %v1900 = vadd.f32 %v1811, %v1899
        %v1901 = vpop.f32.mrf.mxu0
        %v1902 = vadd.f32 %v1813, %v1901
        %1903 = vmatmul.bf16.gmra.mxu0 %v1573
        %v1904 = vpop.f32.mrf.mxu0
        %v1905 = vadd.f32 %v1816, %v1904
        %v1906 = vpop.f32.mrf.mxu0
        %v1907 = vadd.f32 %v1818, %v1906
        %1908 = vmatmul.bf16.gmra.mxu0 %v1575
        %v1909 = vpop.f32.mrf.mxu0
        %v1910 = vadd.f32 %v1821, %v1909
        %v1911 = vpop.f32.mrf.mxu0
        %v1912 = vadd.f32 %v1823, %v1911
        %1913 = vdwg.mxu0
        %v1914 = vadd.f32 %v1576, %v1835
        %v1915 = vadd.f32 %v1577, %v1837
        %v1916 = vadd.f32 %v1578, %v1840
        %v1917 = vadd.f32 %v1579, %v1842
        %v1918 = vadd.f32 %v1580, %v1845
        %v1919 = vadd.f32 %v1581, %v1847
        %v1920 = vadd.f32 %v1582, %v1850
        %v1921 = vadd.f32 %v1583, %v1852
        %v1922 = vadd.f32 %v1584, %v1855
        %v1923 = vadd.f32 %v1585, %v1857
        %v1924 = vadd.f32 %v1586, %v1860
        %v1925 = vadd.f32 %v1587, %v1862
        %v1926 = vadd.f32 %v1588, %v1865
        %v1927 = vadd.f32 %v1589, %v1867
        %v1928 = vadd.f32 %v1590, %v1870
        %v1929 = vadd.f32 %v1591, %v1872
        %v1930 = vadd.f32 %v1592, %v1875
        %v1931 = vadd.f32 %v1593, %v1877
        %v1932 = vadd.f32 %v1594, %v1880
        %v1933 = vadd.f32 %v1595, %v1882
        %v1934 = vadd.f32 %v1596, %v1885
        %v1935 = vadd.f32 %v1597, %v1887
        %v1936 = vadd.f32 %v1598, %v1890
        %v1937 = vadd.f32 %v1599, %v1892
        %v1938 = vadd.f32 %v1600, %v1895
        %v1939 = vadd.f32 %v1601, %v1897
        %v1940 = vadd.f32 %v1602, %v1900
        %v1941 = vadd.f32 %v1603, %v1902
        %v1942 = vadd.f32 %v1604, %v1905
        %v1943 = vadd.f32 %v1605, %v1907
        %v1944 = vadd.f32 %v1606, %v1910
        %v1945 = vadd.f32 %v1607, %v1912
        %1946 = vst [vmem:[#allocation2] sm:$0xff] %v1914
        %1947 = vst [vmem:[#allocation2 + $0x8] sm:$0xff] %v1915
        %1948 = vst [vmem:[#allocation2 + $0x10] sm:$0xff] %v1916
        %1949 = vst [vmem:[#allocation2 + $0x18] sm:$0xff] %v1917
        %1950 = vst [vmem:[#allocation2 + $0x20] sm:$0xff] %v1918
        %1951 = vst [vmem:[#allocation2 + $0x28] sm:$0xff] %v1919
        %1952 = vst [vmem:[#allocation2 + $0x30] sm:$0xff] %v1920
        %1953 = vst [vmem:[#allocation2 + $0x38] sm:$0xff] %v1921
        %1954 = vst [vmem:[#allocation2 + $0x40] sm:$0xff] %v1922
        %1955 = vst [vmem:[#allocation2 + $0x48] sm:$0xff] %v1923
        %1956 = vst [vmem:[#allocation2 + $0x50] sm:$0xff] %v1924
        %1957 = vst [vmem:[#allocation2 + $0x58] sm:$0xff] %v1925
        %1958 = vst [vmem:[#allocation2 + $0x60] sm:$0xff] %v1926
        %1959 = vst [vmem:[#allocation2 + $0x68] sm:$0xff] %v1927
        %1960 = vst [vmem:[#allocation2 + $0x70] sm:$0xff] %v1928
        %1961 = vst [vmem:[#allocation2 + $0x78] sm:$0xff] %v1929
        %1962 = vst [vmem:[#allocation2 + $0x80] sm:$0xff] %v1930
        %1963 = vst [vmem:[#allocation2 + $0x88] sm:$0xff] %v1931
        %1964 = vst [vmem:[#allocation2 + $0x90] sm:$0xff] %v1932
        %1965 = vst [vmem:[#allocation2 + $0x98] sm:$0xff] %v1933
        %1966 = vst [vmem:[#allocation2 + $0xa0] sm:$0xff] %v1934
        %1967 = vst [vmem:[#allocation2 + $0xa8] sm:$0xff] %v1935
        %1968 = vst [vmem:[#allocation2 + $0xb0] sm:$0xff] %v1936
        %1969 = vst [vmem:[#allocation2 + $0xb8] sm:$0xff] %v1937
        %1970 = vst [vmem:[#allocation2 + $0xc0] sm:$0xff] %v1938
        %1971 = vst [vmem:[#allocation2 + $0xc8] sm:$0xff] %v1939
        %1972 = vst [vmem:[#allocation2 + $0xd0] sm:$0xff] %v1940
        %1973 = vst [vmem:[#allocation2 + $0xd8] sm:$0xff] %v1941
        %1974 = vst [vmem:[#allocation2 + $0xe0] sm:$0xff] %v1942
        %1975 = vst [vmem:[#allocation2 + $0xe8] sm:$0xff] %v1943
        %1976 = vst [vmem:[#allocation2 + $0xf0] sm:$0xff] %v1944
        %1977 = vst [vmem:[#allocation2 + $0xf8] sm:$0xff] %v1945
        // Predicated region
        $region49: #{tpu_custom_call.1} parent=31 // pred_check
          %p1978 = pneg %p256
        $region50: #{tpu_custom_call.1} parent=31 // pred_check_branch
          %1980 = sbr.rel (%p1978) target = $region52
        $region51: #{tpu_custom_call.1} parent=31 // pred_region
          %v1981 = vld [vmem:[#allocation2] sm:$0xff]
          %v1982 = vld [vmem:[#allocation2 + $0x8] sm:$0xff]
          %v1983 = vld [vmem:[#allocation2 + $0x10] sm:$0xff]
          %v1984 = vld [vmem:[#allocation2 + $0x18] sm:$0xff]
          %v1985 = vld [vmem:[#allocation2 + $0x20] sm:$0xff]
          %v1986 = vld [vmem:[#allocation2 + $0x28] sm:$0xff]
          %v1987 = vld [vmem:[#allocation2 + $0x30] sm:$0xff]
          %v1988 = vld [vmem:[#allocation2 + $0x38] sm:$0xff]
          %v1989 = vld [vmem:[#allocation2 + $0x40] sm:$0xff]
          %v1990 = vld [vmem:[#allocation2 + $0x48] sm:$0xff]
          %v1991 = vld [vmem:[#allocation2 + $0x50] sm:$0xff]
          %v1992 = vld [vmem:[#allocation2 + $0x58] sm:$0xff]
          %v1993 = vld [vmem:[#allocation2 + $0x60] sm:$0xff]
          %v1994 = vld [vmem:[#allocation2 + $0x68] sm:$0xff]
          %v1995 = vld [vmem:[#allocation2 + $0x70] sm:$0xff]
          %v1996 = vld [vmem:[#allocation2 + $0x78] sm:$0xff]
          %v1997 = vld [vmem:[#allocation2 + $0x80] sm:$0xff]
          %v1998 = vld [vmem:[#allocation2 + $0x88] sm:$0xff]
          %v1999 = vld [vmem:[#allocation2 + $0x90] sm:$0xff]
          %v2000 = vld [vmem:[#allocation2 + $0x98] sm:$0xff]
          %v2001 = vld [vmem:[#allocation2 + $0xa0] sm:$0xff]
          %v2002 = vld [vmem:[#allocation2 + $0xa8] sm:$0xff]
          %v2003 = vld [vmem:[#allocation2 + $0xb0] sm:$0xff]
          %v2004 = vld [vmem:[#allocation2 + $0xb8] sm:$0xff]
          %v2005 = vld [vmem:[#allocation2 + $0xc0] sm:$0xff]
          %v2006 = vld [vmem:[#allocation2 + $0xc8] sm:$0xff]
          %v2007 = vld [vmem:[#allocation2 + $0xd0] sm:$0xff]
          %v2008 = vld [vmem:[#allocation2 + $0xd8] sm:$0xff]
          %v2009 = vld [vmem:[#allocation2 + $0xe0] sm:$0xff]
          %v2010 = vld [vmem:[#allocation2 + $0xe8] sm:$0xff]
          %v2011 = vld [vmem:[#allocation2 + $0xf0] sm:$0xff]
          %v2012 = vld [vmem:[#allocation2 + $0xf8] sm:$0xff]
          %v2013 = vpack.c.bf16 %v1981, %v1981
          %v2014 = vpack.c.bf16 %v1982, %v1982
          %v2015 = vpack.c.bf16 %v1983, %v1983
          %v2016 = vpack.c.bf16 %v1984, %v1984
          %v2017 = vpack.c.bf16 %v1985, %v1985
          %v2018 = vpack.c.bf16 %v1986, %v1986
          %v2019 = vpack.c.bf16 %v1987, %v1987
          %v2020 = vpack.c.bf16 %v1988, %v1988
          %v2021 = vpack.c.bf16 %v1989, %v1989
          %v2022 = vpack.c.bf16 %v1990, %v1990
          %v2023 = vpack.c.bf16 %v1991, %v1991
          %v2024 = vpack.c.bf16 %v1992, %v1992
          %v2025 = vpack.c.bf16 %v1993, %v1993
          %v2026 = vpack.c.bf16 %v1994, %v1994
          %v2027 = vpack.c.bf16 %v1995, %v1995
          %v2028 = vpack.c.bf16 %v1996, %v1996
          %v2029 = vpack.c.bf16 %v1997, %v1997
          %v2030 = vpack.c.bf16 %v1998, %v1998
          %v2031 = vpack.c.bf16 %v1999, %v1999
          %v2032 = vpack.c.bf16 %v2000, %v2000
          %v2033 = vpack.c.bf16 %v2001, %v2001
          %v2034 = vpack.c.bf16 %v2002, %v2002
          %v2035 = vpack.c.bf16 %v2003, %v2003
          %v2036 = vpack.c.bf16 %v2004, %v2004
          %v2037 = vpack.c.bf16 %v2005, %v2005
          %v2038 = vpack.c.bf16 %v2006, %v2006
          %v2039 = vpack.c.bf16 %v2007, %v2007
          %v2040 = vpack.c.bf16 %v2008, %v2008
          %v2041 = vpack.c.bf16 %v2009, %v2009
          %v2042 = vpack.c.bf16 %v2010, %v2010
          %v2043 = vpack.c.bf16 %v2011, %v2011
          %v2044 = vpack.c.bf16 %v2012, %v2012
          %2045 = vst [vmem:[%s251] sm:$0xf] %v2013
          %2046 = vst [vmem:[%s251 + $0x4] sm:$0xf] %v2014
          %2047 = vst [vmem:[%s251 + $0x8] sm:$0xf] %v2015
          %2048 = vst [vmem:[%s251 + $0xc] sm:$0xf] %v2016
          %2049 = vst [vmem:[%s251 + $0x10] sm:$0xf] %v2017
          %2050 = vst [vmem:[%s251 + $0x14] sm:$0xf] %v2018
          %2051 = vst [vmem:[%s251 + $0x18] sm:$0xf] %v2019
          %2052 = vst [vmem:[%s251 + $0x1c] sm:$0xf] %v2020
          %2053 = vst [vmem:[%s251 + $0x20] sm:$0xf] %v2021
          %2054 = vst [vmem:[%s251 + $0x24] sm:$0xf] %v2022
          %2055 = vst [vmem:[%s251 + $0x28] sm:$0xf] %v2023
          %2056 = vst [vmem:[%s251 + $0x2c] sm:$0xf] %v2024
          %2057 = vst [vmem:[%s251 + $0x30] sm:$0xf] %v2025
          %2058 = vst [vmem:[%s251 + $0x34] sm:$0xf] %v2026
          %2059 = vst [vmem:[%s251 + $0x38] sm:$0xf] %v2027
          %2060 = vst [vmem:[%s251 + $0x3c] sm:$0xf] %v2028
          %2061 = vst [vmem:[%s251 + $0x40] sm:$0xf] %v2029
          %2062 = vst [vmem:[%s251 + $0x44] sm:$0xf] %v2030
          %2063 = vst [vmem:[%s251 + $0x48] sm:$0xf] %v2031
          %2064 = vst [vmem:[%s251 + $0x4c] sm:$0xf] %v2032
          %2065 = vst [vmem:[%s251 + $0x50] sm:$0xf] %v2033
          %2066 = vst [vmem:[%s251 + $0x54] sm:$0xf] %v2034
          %2067 = vst [vmem:[%s251 + $0x58] sm:$0xf] %v2035
          %2068 = vst [vmem:[%s251 + $0x5c] sm:$0xf] %v2036
          %2069 = vst [vmem:[%s251 + $0x60] sm:$0xf] %v2037
          %2070 = vst [vmem:[%s251 + $0x64] sm:$0xf] %v2038
          %2071 = vst [vmem:[%s251 + $0x68] sm:$0xf] %v2039
          %2072 = vst [vmem:[%s251 + $0x6c] sm:$0xf] %v2040
          %2073 = vst [vmem:[%s251 + $0x70] sm:$0xf] %v2041
          %2074 = vst [vmem:[%s251 + $0x74] sm:$0xf] %v2042
          %2075 = vst [vmem:[%s251 + $0x78] sm:$0xf] %v2043
          %2076 = vst [vmem:[%s251 + $0x7c] sm:$0xf] %v2044
        $region52: #{tpu_custom_call.1} parent=31 // pred_fallthru
          _
        %s2077 = sand.u32 %s119, 1
        %s2078 = scalar_lea.sflag [#allocation5], %s2077
        %s2079 = sand.u32 %s119, 1
        %s2080 = smul.addr %s2079, 128
        %s2081 = scalar_lea.vmem [#allocation9], %s2080
        // Predicated region
        $region53: #{tpu_custom_call.1} parent=31 // pred_check
          %p2082 = pneg %p129
        $region54: #{tpu_custom_call.1} parent=31 // pred_check_branch
          %2084 = sbr.rel (%p2082) target = $region56
        $region55: #{tpu_custom_call.1} parent=31 // pred_region
          %s2085 = smul.u32 32, %s25
          %2087 = vsyncadd %s2078, 0
          %s2088 = smul.addr %s2085, 4
          %s2089 = scalar_lea.hbm %s3, %s2088
          %s2090 = sshll.u32 %s2081, 4
          %s2091 = int_to_ptr.vmem [resolvable:$true] %s2090
          %s2092 = sshll.u32 %s2089, 4
          %s2093 = int_to_ptr.hbm [resolvable:$true] %s2092
          %2098 = dma.vmem_to_hbm [thread:$0]  %s2091, 2048, %s2093, %s2078, 64, 64, 4
        $region56: #{tpu_custom_call.1} parent=31 // pred_fallthru
          _
      $region32: #{tpu_custom_call.1} parent=5 // pred_fallthru
        _
      %p2099 = scmp.le.s32.totalorder 2, %s16
      // Predicated region
      $region57: #{tpu_custom_call.1} parent=5 // pred_check
        %p2100 = pneg %p2099
      $region58: #{tpu_custom_call.1} parent=5 // pred_check_branch
        %2102 = sbr.rel (%p2100) target = $region60
      $region59: #{tpu_custom_call.1} parent=5 // pred_region
        %s2103 = ssub.s32 %s16, 2
        // Predicated region
        $region61: #{tpu_custom_call.1} parent=59 // pred_check
          %p2104 = pneg %p135
        $region62: #{tpu_custom_call.1} parent=59 // pred_check_branch
          %2106 = sbr.rel (%p2104) target = $region64
        $region63: #{tpu_custom_call.1} parent=59 // pred_region
          %s2107 = sand.u32 %s120, 1
          %s2108 = scalar_lea.sflag [#allocation5], %s2107
          %s2109 = sand.u32 %s120, 1
          %s2110 = smul.addr %s2109, 128
          %s2111 = scalar_lea.vmem [#allocation9], %s2110
          %2113 = dma.done %s2108, 2048
        $region64: #{tpu_custom_call.1} parent=59 // pred_fallthru
          _
      $region60: #{tpu_custom_call.1} parent=5 // pred_fallthru
        _
    $region6: #{tpu_custom_call.1} parent=1 // loop_footer
      %s20 = sadd.s32 1, %s16
    $region7: #{tpu_custom_call.1} parent=1 // loop_footer_branch
      %15 = sbr.rel target = $region3
    $region8: #{tpu_custom_call.1} parent=1 // loop_exit
      _
    %2114 = vsyncpa [#allocation4], 1
    %s2115 = scalar_lea.sflag [#allocation4], 1
    %2116 = vsyncpa %s2115, 1
    %2117 = vsyncpa [#allocation7], 1
    %2118 = vsyncpa [#allocation5], 1
    %s2119 = scalar_lea.sflag [#allocation5], 1
    %2120 = vsyncpa %s2119, 1

// kernel: tpu_custom_call.1
$region0: #{tpu_custom_call.1}
  #allocation0 [shape = 'u32[]', space=smem, size = 0x4, offset = 0x4, fixed_abs, tag = 'smem constant byte address 0x4 - core index']
  #allocation1 [shape = 'u32[72,128]{1,0:T(1,128)}', space=vmem, size = 0x9000, scoped, tag = 'internal scratch']
  #allocation2 [shape = 'f32[256,128]{1,0:T(8,128)}', space=vmem, size = 0x20000, scoped, tag = 'scratch operand']
  %s0 = inlined_call_operand.hbm [shape: bf16[512,128], index: 0, kind: input, shape index: {}]
  %s1 = inlined_call_operand.hbm [shape: bf16[128,512], index: 1, kind: input, shape index: {}]
  %s2 = inlined_call_operand.hbm [shape: bf16[256,128], index: 2, kind: input, shape index: {}]
  %s3 = inlined_call_operand.hbm [shape: bf16[512,128], index: 3, kind: output, shape index: {}]
  %s4 = sld [smem:[#allocation0]]
  $region65: #{tpu_custom_call.1} parent=0
    _
  %s6 = ssub.s32 1, %s4
  %s7 = scalar_select 0, %s6, %s4
  $region1: #{tpu_custom_call.1} parent=0
    #allocation3 [shape = 'u8[131072]{0}', space=vmem, size = 0x20000, scoped, tag = 'input window, operand 0']
    #allocation4 [shape = 's32[2]{0}', space=sflag, size = 0x8, scoped, tag = 'scoped memory for tpu_custom_call.1']
    #allocation5 [shape = 's32[2]{0}', space=sflag, size = 0x8, scoped, tag = 'scoped memory for tpu_custom_call.1']
    #allocation6 [shape = 'u8[131072]{0}', space=vmem, size = 0x20000, scoped, tag = 'input window, operand 1, single buffered']
    #allocation7 [shape = 's32[1]{0}', space=sflag, size = 0x4, scoped, tag = 'scoped memory for tpu_custom_call.1']
    #allocation8 [shape = 'u8[65536]{0}', space=vmem, size = 0x10000, scoped, tag = 'input window, operand 2, single buffered']
    #allocation9 [shape = 'u8[131072]{0}', space=vmem, size = 0x20000, scoped, tag = 'output window, operand 0']
    %8 = vsyncpa [#allocation4], 0
    %s9 = scalar_lea.sflag [#allocation4], 1
    %10 = vsyncpa %s9, 0
    %11 = vsyncpa [#allocation7], 0
    %12 = vsyncpa [#allocation5], 0
    %s13 = scalar_lea.sflag [#allocation5], 1
    %14 = vsyncpa %s13, 0
    loop: start=0, step=1, limit=4
    $region2: #{tpu_custom_call.1} parent=1 // loop_pre_header
      _
    $region3: #{tpu_custom_call.1} parent=1 // loop_header
      %s16 = sphi 0, %s20
      %p17 = scmp.ge.s32.totalorder %s16, 4
      %s23 = sphi 0, %s35
      %s24 = sphi 0, %s31
      %s25 = sphi 0, %s23
      %s26 = sphi 0, %s24
      %s27 = sphi 0, %s25
      %s28 = sphi 0, %s26
      %s38 = sphi 0, %s40
      %s41 = sphi 0, %s38
      %s42 = sphi 0, %s41
      %s58 = sphi 0, %s42
      %s64 = sphi 0, %s66
      %s67 = sphi 0, %s64
      %s68 = sphi 0, %s67
      %s84 = sphi 0, %s68
      %s90 = sphi 0, %s92
      %s93 = sphi 0, %s90
      %s94 = sphi 0, %s93
      %s110 = sphi 0, %s94
      %s116 = sphi 0, %s118
      %s119 = sphi 0, %s116
      %s120 = sphi 0, %s119
      %s136 = sphi 0, %s120
    $region4: #{tpu_custom_call.1} parent=1 // loop_header_branch
      %19 = sbr.rel (%p17) target = $region8
    $region5: #{tpu_custom_call.1} parent=1 // loop_body
      %s21 = ssub.s32 %s16, 1
      %s22 = ssub.s32 %s16, 2
      %s29 = sadd.s32 1, %s24
      %p30 = scmp.ge.s32.totalorder %s29, 1
      %s31 = scalar_select %p30, 0, %s29
      %s32 = sadd.s32 1, %s23
      %s33 = scalar_select %p30, %s32, %s23
      %p34 = scmp.ge.s32.totalorder %s33, 2
      %s35 = scalar_select %p34, 0, %s33
      %s36 = ssub.s32 %s23, %s35
      %p37 = scmp.eq.s32.totalorder %s36, 0
      %s39 = sadd.s32 %s38, 1
      %s40 = scalar_select %p37, %s38, %s39
      %p43 = pneg %p37
      %p44 = scmp.eq.s32.totalorder %s16, 1
      %p45 = por %p43, %p44
      %p46 = scmp.ne.s32.totalorder %s38, %s41
      %p47 = scmp.eq.s32.totalorder %s16, 0
      %p48 = por %p46, %p47
      %p49 = scmp.ne.s32.totalorder %s38, %s41
      %p50 = scmp.eq.s32.totalorder %s21, 1
      %p51 = por %p49, %p50
      %p52 = scmp.ne.s32.totalorder %s41, %s42
      %p53 = scmp.eq.s32.totalorder %s21, 0
      %p54 = por %p52, %p53
      %p55 = scmp.ne.s32.totalorder %s41, %s42
      %p56 = scmp.eq.s32.totalorder %s22, 1
      %p57 = por %p55, %p56
      %p59 = scmp.ne.s32.totalorder %s42, %s58
      %p60 = scmp.eq.s32.totalorder %s22, 0
      %p61 = por %p59, %p60
      %s62 = ssub.s32 %s24, %s31
      %p63 = scmp.eq.s32.totalorder %s62, 0
      %s65 = sadd.s32 %s64, 1
      %s66 = scalar_select %p63, %s64, %s65
      %p69 = pneg %p63
      %p70 = scmp.eq.s32.totalorder %s16, 1
      %p71 = por %p69, %p70
      %p72 = scmp.ne.s32.totalorder %s64, %s67
      %p73 = scmp.eq.s32.totalorder %s16, 0
      %p74 = por %p72, %p73
      %p75 = scmp.ne.s32.totalorder %s64, %s67
      %p76 = scmp.eq.s32.totalorder %s21, 1
      %p77 = por %p75, %p76
      %p78 = scmp.ne.s32.totalorder %s67, %s68
      %p79 = scmp.eq.s32.totalorder %s21, 0
      %p80 = por %p78, %p79
      %p81 = scmp.ne.s32.totalorder %s67, %s68
      %p82 = scmp.eq.s32.totalorder %s22, 1
      %p83 = por %p81, %p82
      %p85 = scmp.ne.s32.totalorder %s68, %s84
      %p86 = scmp.eq.s32.totalorder %s22, 0
      %p87 = por %p85, %p86
      %s88 = ssub.s32 %s24, %s31
      %p89 = scmp.eq.s32.totalorder %s88, 0
      %s91 = sadd.s32 %s90, 1
      %s92 = scalar_select %p89, %s90, %s91
      %p95 = pneg %p89
      %p96 = scmp.eq.s32.totalorder %s16, 1
      %p97 = por %p95, %p96
      %p98 = scmp.ne.s32.totalorder %s90, %s93
      %p99 = scmp.eq.s32.totalorder %s16, 0
      %p100 = por %p98, %p99
      %p101 = scmp.ne.s32.totalorder %s90, %s93
      %p102 = scmp.eq.s32.totalorder %s21, 1
      %p103 = por %p101, %p102
      %p104 = scmp.ne.s32.totalorder %s93, %s94
      %p105 = scmp.eq.s32.totalorder %s21, 0
      %p106 = por %p104, %p105
      %p107 = scmp.ne.s32.totalorder %s93, %s94
      %p108 = scmp.eq.s32.totalorder %s22, 1
      %p109 = por %p107, %p108
      %p111 = scmp.ne.s32.totalorder %s94, %s110
      %p112 = scmp.eq.s32.totalorder %s22, 0
      %p113 = por %p111, %p112
      %s114 = ssub.s32 %s23, %s35
      %p115 = scmp.eq.s32.totalorder %s114, 0
      %s117 = sadd.s32 %s116, 1
      %s118 = scalar_select %p115, %s116, %s117
      %p121 = pneg %p115
      %p122 = scmp.eq.s32.totalorder %s16, 1
      %p123 = por %p121, %p122
      %p124 = scmp.ne.s32.totalorder %s116, %s119
      %p125 = scmp.eq.s32.totalorder %s16, 0
      %p126 = por %p124, %p125
      %p127 = scmp.ne.s32.totalorder %s116, %s119
      %p128 = scmp.eq.s32.totalorder %s21, 1
      %p129 = por %p127, %p128
      %p130 = scmp.ne.s32.totalorder %s119, %s120
      %p131 = scmp.eq.s32.totalorder %s21, 0
      %p132 = por %p130, %p131
      %p133 = scmp.ne.s32.totalorder %s119, %s120
      %p134 = scmp.eq.s32.totalorder %s22, 1
      %p135 = por %p133, %p134
      %p137 = scmp.ne.s32.totalorder %s120, %s136
      %p138 = scmp.eq.s32.totalorder %s22, 0
      %p139 = por %p137, %p138
      %p140 = scmp.le.s32.totalorder 1, %s16
      %p141 = scmp.lt.s32.totalorder %s16, 3
      %p142 = pnand %p140, %p141
      %p143 = pneg %p142
      // Predicated region
      $region9: #{tpu_custom_call.1} parent=5 // pred_check
        _
      $region10: #{tpu_custom_call.1} parent=5 // pred_check_branch
        %145 = sbr.rel (%p142) target = $region12
      $region11: #{tpu_custom_call.1} parent=5 // pred_region
        %s146 = ssub.s32 %s16, 1
        // Predicated region
        $region13: #{tpu_custom_call.1} parent=11 // pred_check
          %p147 = pneg %p80
        $region14: #{tpu_custom_call.1} parent=11 // pred_check_branch
          %149 = sbr.rel (%p147) target = $region16
        $region15: #{tpu_custom_call.1} parent=11 // pred_region
          %s150 = smul.u32 4, %s26
          %152 = vsyncadd [#allocation7], 0
          %s153 = smul.addr %s150, 4
          %s154 = scalar_lea.hbm %s1, %s153
          %s155 = sshll.u32 %s154, 4
          %s156 = int_to_ptr.hbm [resolvable:$true] %s155
          %s157 = sshll.u32 [#allocation6], 4
          %s158 = int_to_ptr.vmem [resolvable:$true] %s157
          %163 = dma.hbm_to_vmem [thread:$0]  %s156, 4096, %s158, [#allocation7], 256, 256, 16
        $region16: #{tpu_custom_call.1} parent=11 // pred_fallthru
          _
        // Predicated region
        $region17: #{tpu_custom_call.1} parent=11 // pred_check
          %p164 = pneg %p106
        $region18: #{tpu_custom_call.1} parent=11 // pred_check_branch
          %166 = sbr.rel (%p164) target = $region20
        $region19: #{tpu_custom_call.1} parent=11 // pred_region
          %s167 = smul.u32 32, %s26
          %169 = vsyncadd [#allocation7], 0
          %s170 = smul.addr %s167, 4
          %s171 = scalar_lea.hbm %s2, %s170
          %s172 = sshll.u32 %s171, 4
          %s173 = int_to_ptr.hbm [resolvable:$true] %s172
          %s174 = sshll.u32 [#allocation8], 4
          %s175 = int_to_ptr.vmem [resolvable:$true] %s174
          %180 = dma.hbm_to_vmem [thread:$0]  %s173, 2048, %s175, [#allocation7], 64, 64, 4
        $region20: #{tpu_custom_call.1} parent=11 // pred_fallthru
          _
      $region12: #{tpu_custom_call.1} parent=5 // pred_fallthru
        _
      %p181 = scmp.lt.s32.totalorder %s16, 2
      // Predicated region
      $region21: #{tpu_custom_call.1} parent=5 // pred_check
        %p182 = pneg %p181
      $region22: #{tpu_custom_call.1} parent=5 // pred_check_branch
        %184 = sbr.rel (%p182) target = $region24
      $region23: #{tpu_custom_call.1} parent=5 // pred_region
        // Predicated region
        $region25: #{tpu_custom_call.1} parent=23 // pred_check
          %p185 = pneg %p48
        $region26: #{tpu_custom_call.1} parent=23 // pred_check_branch
          %187 = sbr.rel (%p185) target = $region28
        $region27: #{tpu_custom_call.1} parent=23 // pred_region
          %s188 = sand.u32 %s38, 1
          %s189 = scalar_lea.sflag [#allocation4], %s188
          %s190 = sand.u32 %s38, 1
          %s191 = smul.addr %s190, 128
          %s192 = scalar_lea.vmem [#allocation3], %s191
          %s193 = smul.u32 32, %s23
          %195 = vsyncadd %s189, 0
          %s196 = smul.addr %s193, 4
          %s197 = scalar_lea.hbm %s0, %s196
          %s198 = sshll.u32 %s197, 4
          %s199 = int_to_ptr.hbm [resolvable:$true] %s198
          %s200 = sshll.u32 %s192, 4
          %s201 = int_to_ptr.vmem [resolvable:$true] %s200
          %206 = dma.hbm_to_vmem [thread:$0]  %s199, 2048, %s201, %s189, 64, 64, 4
        $region28: #{tpu_custom_call.1} parent=23 // pred_fallthru
          _
      $region24: #{tpu_custom_call.1} parent=5 // pred_fallthru
        _
      %p207 = scmp.le.s32.totalorder 1, %s16
      %p208 = scmp.lt.s32.totalorder %s16, 3
      %p209 = pnand %p207, %p208
      %p210 = pneg %p209
      // Predicated region
      $region29: #{tpu_custom_call.1} parent=5 // pred_check
        _
      $region30: #{tpu_custom_call.1} parent=5 // pred_check_branch
        %212 = sbr.rel (%p209) target = $region32
      $region31: #{tpu_custom_call.1} parent=5 // pred_region
        %s213 = ssub.s32 %s16, 1
        %s214 = sand.u32 %s41, 1
        %s215 = scalar_lea.sflag [#allocation4], %s214
        %s216 = sand.u32 %s41, 1
        %s217 = smul.addr %s216, 128
        %s218 = scalar_lea.vmem [#allocation3], %s217
        // Predicated region
        $region33: #{tpu_custom_call.1} parent=31 // pred_check
          %p219 = pneg %p54
        $region34: #{tpu_custom_call.1} parent=31 // pred_check_branch
          %221 = sbr.rel (%p219) target = $region36
        $region35: #{tpu_custom_call.1} parent=31 // pred_region
          %223 = dma.done %s215, 2048
        $region36: #{tpu_custom_call.1} parent=31 // pred_fallthru
          _
        // Predicated region
        $region37: #{tpu_custom_call.1} parent=31 // pred_check
          %p224 = pneg %p80
        $region38: #{tpu_custom_call.1} parent=31 // pred_check_branch
          %226 = sbr.rel (%p224) target = $region40
        $region39: #{tpu_custom_call.1} parent=31 // pred_region
          %228 = dma.done [#allocation7], 4096
        $region40: #{tpu_custom_call.1} parent=31 // pred_fallthru
          _
        // Predicated region
        $region41: #{tpu_custom_call.1} parent=31 // pred_check
          %p229 = pneg %p106
        $region42: #{tpu_custom_call.1} parent=31 // pred_check_branch
          %231 = sbr.rel (%p229) target = $region44
        $region43: #{tpu_custom_call.1} parent=31 // pred_region
          %233 = dma.done [#allocation7], 2048
        $region44: #{tpu_custom_call.1} parent=31 // pred_fallthru
          _
        %s234 = sand.u32 %s41, 1
        %s235 = scalar_lea.sflag [#allocation4], %s234
        %s236 = sand.u32 %s41, 1
        %s237 = smul.addr %s236, 128
        %s238 = scalar_lea.vmem [#allocation3], %s237
        %p239 = pneg %p54
        %p240 = pneg %p51
        %p241 = pneg %p80
        %p242 = pneg %p77
        %p243 = pneg %p106
        %p244 = pneg %p103
        %p245 = pneg %p132
        %p246 = pneg %p129
        %s247 = sand.u32 %s119, 1
        %s248 = scalar_lea.sflag [#allocation5], %s247
        %s249 = sand.u32 %s119, 1
        %s250 = smul.addr %s249, 128
        %s251 = scalar_lea.vmem [#allocation9], %s250
        %s252 = smul.u32 32, %s25
        %s253 = smul.u32 4, %s26
        %s254 = smul.u32 32, %s26
        %s255 = smul.u32 32, %s25
        %p256 = scmp.eq.s32.totalorder %s26, 0
        // Predicated region
        $region45: #{tpu_custom_call.1} parent=31 // pred_check
          %p257 = pneg %p256
        $region46: #{tpu_custom_call.1} parent=31 // pred_check_branch
          %259 = sbr.rel (%p257) target = $region48
        $region47: #{tpu_custom_call.1} parent=31 // pred_region
          %260 = vst [vmem:[#allocation2] sm:$0xff] 0.0
          %261 = vst [vmem:[#allocation2 + $0x8] sm:$0xff] 0.0
          %262 = vst [vmem:[#allocation2 + $0x10] sm:$0xff] 0.0
          %263 = vst [vmem:[#allocation2 + $0x18] sm:$0xff] 0.0
          %264 = vst [vmem:[#allocation2 + $0x20] sm:$0xff] 0.0
          %265 = vst [vmem:[#allocation2 + $0x28] sm:$0xff] 0.0
          %266 = vst [vmem:[#allocation2 + $0x30] sm:$0xff] 0.0
          %267 = vst [vmem:[#allocation2 + $0x38] sm:$0xff] 0.0
          %268 = vst [vmem:[#allocation2 + $0x40] sm:$0xff] 0.0
          %269 = vst [vmem:[#allocation2 + $0x48] sm:$0xff] 0.0
          %270 = vst [vmem:[#allocation2 + $0x50] sm:$0xff] 0.0
          %271 = vst [vmem:[#allocation2 + $0x58] sm:$0xff] 0.0
          %272 = vst [vmem:[#allocation2 + $0x60] sm:$0xff] 0.0
          %273 = vst [vmem:[#allocation2 + $0x68] sm:$0xff] 0.0
          %274 = vst [vmem:[#allocation2 + $0x70] sm:$0xff] 0.0
          %275 = vst [vmem:[#allocation2 + $0x78] sm:$0xff] 0.0
          %276 = vst [vmem:[#allocation2 + $0x80] sm:$0xff] 0.0
          %277 = vst [vmem:[#allocation2 + $0x88] sm:$0xff] 0.0
          %278 = vst [vmem:[#allocation2 + $0x90] sm:$0xff] 0.0
          %279 = vst [vmem:[#allocation2 + $0x98] sm:$0xff] 0.0
          %280 = vst [vmem:[#allocation2 + $0xa0] sm:$0xff] 0.0
          %281 = vst [vmem:[#allocation2 + $0xa8] sm:$0xff] 0.0
          %282 = vst [vmem:[#allocation2 + $0xb0] sm:$0xff] 0.0
          %283 = vst [vmem:[#allocation2 + $0xb8] sm:$0xff] 0.0
          %284 = vst [vmem:[#allocation2 + $0xc0] sm:$0xff] 0.0
          %285 = vst [vmem:[#allocation2 + $0xc8] sm:$0xff] 0.0
          %286 = vst [vmem:[#allocation2 + $0xd0] sm:$0xff] 0.0
          %287 = vst [vmem:[#allocation2 + $0xd8] sm:$0xff] 0.0
          %288 = vst [vmem:[#allocation2 + $0xe0] sm:$0xff] 0.0
          %289 = vst [vmem:[#allocation2 + $0xe8] sm:$0xff] 0.0
          %290 = vst [vmem:[#allocation2 + $0xf0] sm:$0xff] 0.0
          %291 = vst [vmem:[#allocation2 + $0xf8] sm:$0xff] 0.0
        $region48: #{tpu_custom_call.1} parent=31 // pred_fallthru
          _
        %v292 = vld [vmem:[%s218] sm:$0xf]
        %v293 = vld [vmem:[%s218 + $0x4] sm:$0xf]
        %v294 = vld [vmem:[%s218 + $0x8] sm:$0xf]
        %v295 = vld [vmem:[%s218 + $0xc] sm:$0xf]
        %v296 = vld [vmem:[%s218 + $0x10] sm:$0xf]
        %v297 = vld [vmem:[%s218 + $0x14] sm:$0xf]
        %v298 = vld [vmem:[%s218 + $0x18] sm:$0xf]
        %v299 = vld [vmem:[%s218 + $0x1c] sm:$0xf]
        %v300 = vld [vmem:[%s218 + $0x20] sm:$0xf]
        %v301 = vld [vmem:[%s218 + $0x24] sm:$0xf]
        %v302 = vld [vmem:[%s218 + $0x28] sm:$0xf]
        %v303 = vld [vmem:[%s218 + $0x2c] sm:$0xf]
        %v304 = vld [vmem:[%s218 + $0x30] sm:$0xf]
        %v305 = vld [vmem:[%s218 + $0x34] sm:$0xf]
        %v306 = vld [vmem:[%s218 + $0x38] sm:$0xf]
        %v307 = vld [vmem:[%s218 + $0x3c] sm:$0xf]
        %v308 = vld [vmem:[%s218 + $0x40] sm:$0xf]
        %v309 = vld [vmem:[%s218 + $0x44] sm:$0xf]
        %v310 = vld [vmem:[%s218 + $0x48] sm:$0xf]
        %v311 = vld [vmem:[%s218 + $0x4c] sm:$0xf]
        %v312 = vld [vmem:[%s218 + $0x50] sm:$0xf]
        %v313 = vld [vmem:[%s218 + $0x54] sm:$0xf]
        %v314 = vld [vmem:[%s218 + $0x58] sm:$0xf]
        %v315 = vld [vmem:[%s218 + $0x5c] sm:$0xf]
        %v316 = vld [vmem:[%s218 + $0x60] sm:$0xf]
        %v317 = vld [vmem:[%s218 + $0x64] sm:$0xf]
        %v318 = vld [vmem:[%s218 + $0x68] sm:$0xf]
        %v319 = vld [vmem:[%s218 + $0x6c] sm:$0xf]
        %v320 = vld [vmem:[%s218 + $0x70] sm:$0xf]
        %v321 = vld [vmem:[%s218 + $0x74] sm:$0xf]
        %v322 = vld [vmem:[%s218 + $0x78] sm:$0xf]
        %v323 = vld [vmem:[%s218 + $0x7c] sm:$0xf]
        %v324 = vld [vmem:[#allocation6] sm:$0xff]
        %v325 = vld [vmem:[#allocation6 + $0x8] sm:$0xff]
        %v326 = vld [vmem:[#allocation6 + $0x10] sm:$0xff]
        %v327 = vld [vmem:[#allocation6 + $0x18] sm:$0xff]
        %v328 = vld [vmem:[#allocation6 + $0x20] sm:$0xff]
        %v329 = vld [vmem:[#allocation6 + $0x28] sm:$0xff]
        %v330 = vld [vmem:[#allocation6 + $0x30] sm:$0xff]
        %v331 = vld [vmem:[#allocation6 + $0x38] sm:$0xff]
        %v332 = vld [vmem:[#allocation6 + $0x40] sm:$0xff]
        %v333 = vld [vmem:[#allocation6 + $0x48] sm:$0xff]
        %v334 = vld [vmem:[#allocation6 + $0x50] sm:$0xff]
        %v335 = vld [vmem:[#allocation6 + $0x58] sm:$0xff]
        %v336 = vld [vmem:[#allocation6 + $0x60] sm:$0xff]
        %v337 = vld [vmem:[#allocation6 + $0x68] sm:$0xff]
        %v338 = vld [vmem:[#allocation6 + $0x70] sm:$0xff]
        %v339 = vld [vmem:[#allocation6 + $0x78] sm:$0xff]
        %v340 = vld [vmem:[#allocation6 + $0x80] sm:$0xff]
        %v341 = vld [vmem:[#allocation6 + $0x88] sm:$0xff]
        %v342 = vld [vmem:[#allocation6 + $0x90] sm:$0xff]
        %v343 = vld [vmem:[#allocation6 + $0x98] sm:$0xff]
        %v344 = vld [vmem:[#allocation6 + $0xa0] sm:$0xff]
        %v345 = vld [vmem:[#allocation6 + $0xa8] sm:$0xff]
        %v346 = vld [vmem:[#allocation6 + $0xb0] sm:$0xff]
        %v347 = vld [vmem:[#allocation6 + $0xb8] sm:$0xff]
        %v348 = vld [vmem:[#allocation6 + $0xc0] sm:$0xff]
        %v349 = vld [vmem:[#allocation6 + $0xc8] sm:$0xff]
        %v350 = vld [vmem:[#allocation6 + $0xd0] sm:$0xff]
        %v351 = vld [vmem:[#allocation6 + $0xd8] sm:$0xff]
        %v352 = vld [vmem:[#allocation6 + $0xe0] sm:$0xff]
        %v353 = vld [vmem:[#allocation6 + $0xe8] sm:$0xff]
        %v354 = vld [vmem:[#allocation6 + $0xf0] sm:$0xff]
        %v355 = vld [vmem:[#allocation6 + $0xf8] sm:$0xff]
        %v388 = vunpack.c.l.b16 %v292
        %v389 = vunpack.c.l.b16 %v293
        %v390 = vunpack.c.l.b16 %v294
        %v391 = vunpack.c.l.b16 %v295
        %v392 = vunpack.c.l.b16 %v296
        %v393 = vunpack.c.l.b16 %v297
        %v394 = vunpack.c.l.b16 %v298
        %v395 = vunpack.c.l.b16 %v299
        %v396 = vunpack.c.l.b16 %v300
        %v397 = vunpack.c.l.b16 %v301
        %v398 = vunpack.c.l.b16 %v302
        %v399 = vunpack.c.l.b16 %v303
        %v400 = vunpack.c.l.b16 %v304
        %v401 = vunpack.c.l.b16 %v305
        %v402 = vunpack.c.l.b16 %v306
        %v403 = vunpack.c.l.b16 %v307
        %v404 = vunpack.c.l.b16 %v308
        %v405 = vunpack.c.l.b16 %v309
        %v406 = vunpack.c.l.b16 %v310
        %v407 = vunpack.c.l.b16 %v311
        %v408 = vunpack.c.l.b16 %v312
        %v409 = vunpack.c.l.b16 %v313
        %v410 = vunpack.c.l.b16 %v314
        %v411 = vunpack.c.l.b16 %v315
        %v412 = vunpack.c.l.b16 %v316
        %v413 = vunpack.c.l.b16 %v317
        %v414 = vunpack.c.l.b16 %v318
        %v415 = vunpack.c.l.b16 %v319
        %v416 = vunpack.c.l.b16 %v320
        %v417 = vunpack.c.l.b16 %v321
        %v418 = vunpack.c.l.b16 %v322
        %v419 = vunpack.c.l.b16 %v323
        %v420 = vpack.c.b16 %v389, %v388
        %v421 = vpack.c.b16 %v391, %v390
        %v422 = vpack.c.b16 %v393, %v392
        %v423 = vpack.c.b16 %v395, %v394
        %v424 = vpack.c.b16 %v397, %v396
        %v425 = vpack.c.b16 %v399, %v398
        %v426 = vpack.c.b16 %v401, %v400
        %v427 = vpack.c.b16 %v403, %v402
        %v428 = vpack.c.b16 %v405, %v404
        %v429 = vpack.c.b16 %v407, %v406
        %v430 = vpack.c.b16 %v409, %v408
        %v431 = vpack.c.b16 %v411, %v410
        %v432 = vpack.c.b16 %v413, %v412
        %v433 = vpack.c.b16 %v415, %v414
        %v434 = vpack.c.b16 %v417, %v416
        %v435 = vpack.c.b16 %v419, %v418
        %v484 = vunpack.c.l.b16 %v324
        %v485 = vunpack.c.h.b16 %v324
        %v486 = vunpack.c.l.b16 %v325
        %v487 = vunpack.c.h.b16 %v325
        %v488 = vunpack.c.l.b16 %v326
        %v489 = vunpack.c.h.b16 %v326
        %v490 = vunpack.c.l.b16 %v327
        %v491 = vunpack.c.h.b16 %v327
        %v492 = vunpack.c.l.b16 %v328
        %v493 = vunpack.c.h.b16 %v328
        %v494 = vunpack.c.l.b16 %v329
        %v495 = vunpack.c.h.b16 %v329
        %v496 = vunpack.c.l.b16 %v330
        %v497 = vunpack.c.h.b16 %v330
        %v498 = vunpack.c.l.b16 %v331
        %v499 = vunpack.c.h.b16 %v331
        %v500 = vunpack.c.l.b16 %v332
        %v501 = vunpack.c.h.b16 %v332
        %v502 = vunpack.c.l.b16 %v333
        %v503 = vunpack.c.h.b16 %v333
        %v504 = vunpack.c.l.b16 %v334
        %v505 = vunpack.c.h.b16 %v334
        %v506 = vunpack.c.l.b16 %v335
        %v507 = vunpack.c.h.b16 %v335
        %v508 = vunpack.c.l.b16 %v336
        %v509 = vunpack.c.h.b16 %v336
        %v510 = vunpack.c.l.b16 %v337
        %v511 = vunpack.c.h.b16 %v337
        %v512 = vunpack.c.l.b16 %v338
        %v513 = vunpack.c.h.b16 %v338
        %v514 = vunpack.c.l.b16 %v339
        %v515 = vunpack.c.h.b16 %v339
        %v516 = vunpack.c.l.b16 %v340
        %v517 = vunpack.c.h.b16 %v340
        %v518 = vunpack.c.l.b16 %v341
        %v519 = vunpack.c.h.b16 %v341
        %v520 = vunpack.c.l.b16 %v342
        %v521 = vunpack.c.h.b16 %v342
        %v522 = vunpack.c.l.b16 %v343
        %v523 = vunpack.c.h.b16 %v343
        %v524 = vunpack.c.l.b16 %v344
        %v525 = vunpack.c.h.b16 %v344
        %v526 = vunpack.c.l.b16 %v345
        %v527 = vunpack.c.h.b16 %v345
        %v528 = vunpack.c.l.b16 %v346
        %v529 = vunpack.c.h.b16 %v346
        %v530 = vunpack.c.l.b16 %v347
        %v531 = vunpack.c.h.b16 %v347
        %v532 = vunpack.c.l.b16 %v348
        %v533 = vunpack.c.h.b16 %v348
        %v534 = vunpack.c.l.b16 %v349
        %v535 = vunpack.c.h.b16 %v349
        %v536 = vunpack.c.l.b16 %v350
        %v537 = vunpack.c.h.b16 %v350
        %v538 = vunpack.c.l.b16 %v351
        %v539 = vunpack.c.h.b16 %v351
        %v540 = vunpack.c.l.b16 %v352
        %v541 = vunpack.c.h.b16 %v352
        %v542 = vunpack.c.l.b16 %v353
        %v543 = vunpack.c.h.b16 %v353
        %v544 = vunpack.c.l.b16 %v354
        %v545 = vunpack.c.h.b16 %v354
        %v546 = vunpack.c.l.b16 %v355
        %v547 = vunpack.c.h.b16 %v355
        %v548 = vpack.c.b16 %v488, %v484
        %v549 = vpack.c.b16 %v489, %v485
        %v550 = vpack.c.b16 %v490, %v486
        %v551 = vpack.c.b16 %v491, %v487
        %v552 = vpack.c.b16 %v496, %v492
        %v553 = vpack.c.b16 %v497, %v493
        %v554 = vpack.c.b16 %v498, %v494
        %v555 = vpack.c.b16 %v499, %v495
        %v556 = vpack.c.b16 %v504, %v500
        %v557 = vpack.c.b16 %v505, %v501
        %v558 = vpack.c.b16 %v506, %v502
        %v559 = vpack.c.b16 %v507, %v503
        %v560 = vpack.c.b16 %v512, %v508
        %v561 = vpack.c.b16 %v513, %v509
        %v562 = vpack.c.b16 %v514, %v510
        %v563 = vpack.c.b16 %v515, %v511
        %v564 = vpack.c.b16 %v520, %v516
        %v565 = vpack.c.b16 %v521, %v517
        %v566 = vpack.c.b16 %v522, %v518
        %v567 = vpack.c.b16 %v523, %v519
        %v568 = vpack.c.b16 %v528, %v524
        %v569 = vpack.c.b16 %v529, %v525
        %v570 = vpack.c.b16 %v530, %v526
        %v571 = vpack.c.b16 %v531, %v527
        %v572 = vpack.c.b16 %v536, %v532
        %v573 = vpack.c.b16 %v537, %v533
        %v574 = vpack.c.b16 %v538, %v534
        %v575 = vpack.c.b16 %v539, %v535
        %v576 = vpack.c.b16 %v544, %v540
        %v577 = vpack.c.b16 %v545, %v541
        %v578 = vpack.c.b16 %v546, %v542
        %v579 = vpack.c.b16 %v547, %v543
        %612 = vmatpush.bf16.msra.mxu0 %v576
        %613 = vmatpush.bf16.msra.mxu0 %v572
        %614 = vmatpush.bf16.msra.mxu0 %v568
        %615 = vmatpush.bf16.msra.mxu0 %v564
        %616 = vmatpush.bf16.msra.mxu0 %v560
        %617 = vmatpush.bf16.msra.mxu0 %v556
        %618 = vmatpush.bf16.msra.mxu0 %v552
        %619 = vmatpush.bf16.msra.mxu0 %v548
        %620 = vmatmul.bf16.gmra.mxu0 %v420
        %v621 = vpop.f32.mrf.mxu0
        %v622 = vadd.f32 0.0, %v621
        %v623 = vpop.f32.mrf.mxu0
        %v624 = vadd.f32 0.0, %v623
        %625 = vmatmul.bf16.gmra.mxu0 %v421
        %v626 = vpop.f32.mrf.mxu0
        %v627 = vadd.f32 0.0, %v626
        %v628 = vpop.f32.mrf.mxu0
        %v629 = vadd.f32 0.0, %v628
        %630 = vmatmul.bf16.gmra.mxu0 %v422
        %v631 = vpop.f32.mrf.mxu0
        %v632 = vadd.f32 0.0, %v631
        %v633 = vpop.f32.mrf.mxu0
        %v634 = vadd.f32 0.0, %v633
        %635 = vmatmul.bf16.gmra.mxu0 %v423
        %v636 = vpop.f32.mrf.mxu0
        %v637 = vadd.f32 0.0, %v636
        %v638 = vpop.f32.mrf.mxu0
        %v639 = vadd.f32 0.0, %v638
        %640 = vmatmul.bf16.gmra.mxu0 %v424
        %v641 = vpop.f32.mrf.mxu0
        %v642 = vadd.f32 0.0, %v641
        %v643 = vpop.f32.mrf.mxu0
        %v644 = vadd.f32 0.0, %v643
        %645 = vmatmul.bf16.gmra.mxu0 %v425
        %v646 = vpop.f32.mrf.mxu0
        %v647 = vadd.f32 0.0, %v646
        %v648 = vpop.f32.mrf.mxu0
        %v649 = vadd.f32 0.0, %v648
        %650 = vmatmul.bf16.gmra.mxu0 %v426
        %v651 = vpop.f32.mrf.mxu0
        %v652 = vadd.f32 0.0, %v651
        %v653 = vpop.f32.mrf.mxu0
        %v654 = vadd.f32 0.0, %v653
        %655 = vmatmul.bf16.gmra.mxu0 %v427
        %v656 = vpop.f32.mrf.mxu0
        %v657 = vadd.f32 0.0, %v656
        %v658 = vpop.f32.mrf.mxu0
        %v659 = vadd.f32 0.0, %v658
        %660 = vmatmul.bf16.gmra.mxu0 %v428
        %v661 = vpop.f32.mrf.mxu0
        %v662 = vadd.f32 0.0, %v661
        %v663 = vpop.f32.mrf.mxu0
        %v664 = vadd.f32 0.0, %v663
        %665 = vmatmul.bf16.gmra.mxu0 %v429
        %v666 = vpop.f32.mrf.mxu0
        %v667 = vadd.f32 0.0, %v666
        %v668 = vpop.f32.mrf.mxu0
        %v669 = vadd.f32 0.0, %v668
        %670 = vmatmul.bf16.gmra.mxu0 %v430
        %v671 = vpop.f32.mrf.mxu0
        %v672 = vadd.f32 0.0, %v671
        %v673 = vpop.f32.mrf.mxu0
        %v674 = vadd.f32 0.0, %v673
        %675 = vmatmul.bf16.gmra.mxu0 %v431
        %v676 = vpop.f32.mrf.mxu0
        %v677 = vadd.f32 0.0, %v676
        %v678 = vpop.f32.mrf.mxu0
        %v679 = vadd.f32 0.0, %v678
        %680 = vmatmul.bf16.gmra.mxu0 %v432
        %v681 = vpop.f32.mrf.mxu0
        %v682 = vadd.f32 0.0, %v681
        %v683 = vpop.f32.mrf.mxu0
        %v684 = vadd.f32 0.0, %v683
        %685 = vmatmul.bf16.gmra.mxu0 %v433
        %v686 = vpop.f32.mrf.mxu0
        %v687 = vadd.f32 0.0, %v686
        %v688 = vpop.f32.mrf.mxu0
        %v689 = vadd.f32 0.0, %v688
        %690 = vmatmul.bf16.gmra.mxu0 %v434
        %v691 = vpop.f32.mrf.mxu0
        %v692 = vadd.f32 0.0, %v691
        %v693 = vpop.f32.mrf.mxu0
        %v694 = vadd.f32 0.0, %v693
        %695 = vmatmul.bf16.gmra.mxu0 %v435
        %v696 = vpop.f32.mrf.mxu0
        %v697 = vadd.f32 0.0, %v696
        %v698 = vpop.f32.mrf.mxu0
        %v699 = vadd.f32 0.0, %v698
        %700 = vdwg.mxu0
        %701 = vmatpush.bf16.msra.mxu0 %v577
        %702 = vmatpush.bf16.msra.mxu0 %v573
        %703 = vmatpush.bf16.msra.mxu0 %v569
        %704 = vmatpush.bf16.msra.mxu0 %v565
        %705 = vmatpush.bf16.msra.mxu0 %v561
        %706 = vmatpush.bf16.msra.mxu0 %v557
        %707 = vmatpush.bf16.msra.mxu0 %v553
        %708 = vmatpush.bf16.msra.mxu0 %v549
        %709 = vmatmul.bf16.gmra.mxu0 %v420
        %v710 = vpop.f32.mrf.mxu0
        %v711 = vadd.f32 0.0, %v710
        %v712 = vpop.f32.mrf.mxu0
        %v713 = vadd.f32 0.0, %v712
        %714 = vmatmul.bf16.gmra.mxu0 %v421
        %v715 = vpop.f32.mrf.mxu0
        %v716 = vadd.f32 0.0, %v715
        %v717 = vpop.f32.mrf.mxu0
        %v718 = vadd.f32 0.0, %v717
        %719 = vmatmul.bf16.gmra.mxu0 %v422
        %v720 = vpop.f32.mrf.mxu0
        %v721 = vadd.f32 0.0, %v720
        %v722 = vpop.f32.mrf.mxu0
        %v723 = vadd.f32 0.0, %v722
        %724 = vmatmul.bf16.gmra.mxu0 %v423
        %v725 = vpop.f32.mrf.mxu0
        %v726 = vadd.f32 0.0, %v725
        %v727 = vpop.f32.mrf.mxu0
        %v728 = vadd.f32 0.0, %v727
        %729 = vmatmul.bf16.gmra.mxu0 %v424
        %v730 = vpop.f32.mrf.mxu0
        %v731 = vadd.f32 0.0, %v730
        %v732 = vpop.f32.mrf.mxu0
        %v733 = vadd.f32 0.0, %v732
        %734 = vmatmul.bf16.gmra.mxu0 %v425
        %v735 = vpop.f32.mrf.mxu0
        %v736 = vadd.f32 0.0, %v735
        %v737 = vpop.f32.mrf.mxu0
        %v738 = vadd.f32 0.0, %v737
        %739 = vmatmul.bf16.gmra.mxu0 %v426
        %v740 = vpop.f32.mrf.mxu0
        %v741 = vadd.f32 0.0, %v740
        %v742 = vpop.f32.mrf.mxu0
        %v743 = vadd.f32 0.0, %v742
        %744 = vmatmul.bf16.gmra.mxu0 %v427
        %v745 = vpop.f32.mrf.mxu0
        %v746 = vadd.f32 0.0, %v745
        %v747 = vpop.f32.mrf.mxu0
        %v748 = vadd.f32 0.0, %v747
        %749 = vmatmul.bf16.gmra.mxu0 %v428
        %v750 = vpop.f32.mrf.mxu0
        %v751 = vadd.f32 0.0, %v750
        %v752 = vpop.f32.mrf.mxu0
        %v753 = vadd.f32 0.0, %v752
        %754 = vmatmul.bf16.gmra.mxu0 %v429
        %v755 = vpop.f32.mrf.mxu0
        %v756 = vadd.f32 0.0, %v755
        %v757 = vpop.f32.mrf.mxu0
        %v758 = vadd.f32 0.0, %v757
        %759 = vmatmul.bf16.gmra.mxu0 %v430
        %v760 = vpop.f32.mrf.mxu0
        %v761 = vadd.f32 0.0, %v760
        %v762 = vpop.f32.mrf.mxu0
        %v763 = vadd.f32 0.0, %v762
        %764 = vmatmul.bf16.gmra.mxu0 %v431
        %v765 = vpop.f32.mrf.mxu0
        %v766 = vadd.f32 0.0, %v765
        %v767 = vpop.f32.mrf.mxu0
        %v768 = vadd.f32 0.0, %v767
        %769 = vmatmul.bf16.gmra.mxu0 %v432
        %v770 = vpop.f32.mrf.mxu0
        %v771 = vadd.f32 0.0, %v770
        %v772 = vpop.f32.mrf.mxu0
        %v773 = vadd.f32 0.0, %v772
        %774 = vmatmul.bf16.gmra.mxu0 %v433
        %v775 = vpop.f32.mrf.mxu0
        %v776 = vadd.f32 0.0, %v775
        %v777 = vpop.f32.mrf.mxu0
        %v778 = vadd.f32 0.0, %v777
        %779 = vmatmul.bf16.gmra.mxu0 %v434
        %v780 = vpop.f32.mrf.mxu0
        %v781 = vadd.f32 0.0, %v780
        %v782 = vpop.f32.mrf.mxu0
        %v783 = vadd.f32 0.0, %v782
        %784 = vmatmul.bf16.gmra.mxu0 %v435
        %v785 = vpop.f32.mrf.mxu0
        %v786 = vadd.f32 0.0, %v785
        %v787 = vpop.f32.mrf.mxu0
        %v788 = vadd.f32 0.0, %v787
        %789 = vdwg.mxu0
        %790 = vmatpush.bf16.msra.mxu0 %v578
        %791 = vmatpush.bf16.msra.mxu0 %v574
        %792 = vmatpush.bf16.msra.mxu0 %v570
        %793 = vmatpush.bf16.msra.mxu0 %v566
        %794 = vmatpush.bf16.msra.mxu0 %v562
        %795 = vmatpush.bf16.msra.mxu0 %v558
        %796 = vmatpush.bf16.msra.mxu0 %v554
        %797 = vmatpush.bf16.msra.mxu0 %v550
        %798 = vmatmul.bf16.gmra.mxu0 %v420
        %v799 = vpop.f32.mrf.mxu0
        %v800 = vadd.f32 0.0, %v799
        %v801 = vpop.f32.mrf.mxu0
        %v802 = vadd.f32 0.0, %v801
        %803 = vmatmul.bf16.gmra.mxu0 %v421
        %v804 = vpop.f32.mrf.mxu0
        %v805 = vadd.f32 0.0, %v804
        %v806 = vpop.f32.mrf.mxu0
        %v807 = vadd.f32 0.0, %v806
        %808 = vmatmul.bf16.gmra.mxu0 %v422
        %v809 = vpop.f32.mrf.mxu0
        %v810 = vadd.f32 0.0, %v809
        %v811 = vpop.f32.mrf.mxu0
        %v812 = vadd.f32 0.0, %v811
        %813 = vmatmul.bf16.gmra.mxu0 %v423
        %v814 = vpop.f32.mrf.mxu0
        %v815 = vadd.f32 0.0, %v814
        %v816 = vpop.f32.mrf.mxu0
        %v817 = vadd.f32 0.0, %v816
        %818 = vmatmul.bf16.gmra.mxu0 %v424
        %v819 = vpop.f32.mrf.mxu0
        %v820 = vadd.f32 0.0, %v819
        %v821 = vpop.f32.mrf.mxu0
        %v822 = vadd.f32 0.0, %v821
        %823 = vmatmul.bf16.gmra.mxu0 %v425
        %v824 = vpop.f32.mrf.mxu0
        %v825 = vadd.f32 0.0, %v824
        %v826 = vpop.f32.mrf.mxu0
        %v827 = vadd.f32 0.0, %v826
        %828 = vmatmul.bf16.gmra.mxu0 %v426
        %v829 = vpop.f32.mrf.mxu0
        %v830 = vadd.f32 0.0, %v829
        %v831 = vpop.f32.mrf.mxu0
        %v832 = vadd.f32 0.0, %v831
        %833 = vmatmul.bf16.gmra.mxu0 %v427
        %v834 = vpop.f32.mrf.mxu0
        %v835 = vadd.f32 0.0, %v834
        %v836 = vpop.f32.mrf.mxu0
        %v837 = vadd.f32 0.0, %v836
        %838 = vmatmul.bf16.gmra.mxu0 %v428
        %v839 = vpop.f32.mrf.mxu0
        %v840 = vadd.f32 0.0, %v839
        %v841 = vpop.f32.mrf.mxu0
        %v842 = vadd.f32 0.0, %v841
        %843 = vmatmul.bf16.gmra.mxu0 %v429
        %v844 = vpop.f32.mrf.mxu0
        %v845 = vadd.f32 0.0, %v844
        %v846 = vpop.f32.mrf.mxu0
        %v847 = vadd.f32 0.0, %v846
        %848 = vmatmul.bf16.gmra.mxu0 %v430
        %v849 = vpop.f32.mrf.mxu0
        %v850 = vadd.f32 0.0, %v849
        %v851 = vpop.f32.mrf.mxu0
        %v852 = vadd.f32 0.0, %v851
        %853 = vmatmul.bf16.gmra.mxu0 %v431
        %v854 = vpop.f32.mrf.mxu0
        %v855 = vadd.f32 0.0, %v854
        %v856 = vpop.f32.mrf.mxu0
        %v857 = vadd.f32 0.0, %v856
        %858 = vmatmul.bf16.gmra.mxu0 %v432
        %v859 = vpop.f32.mrf.mxu0
        %v860 = vadd.f32 0.0, %v859
        %v861 = vpop.f32.mrf.mxu0
        %v862 = vadd.f32 0.0, %v861
        %863 = vmatmul.bf16.gmra.mxu0 %v433
        %v864 = vpop.f32.mrf.mxu0
        %v865 = vadd.f32 0.0, %v864
        %v866 = vpop.f32.mrf.mxu0
        %v867 = vadd.f32 0.0, %v866
        %868 = vmatmul.bf16.gmra.mxu0 %v434
        %v869 = vpop.f32.mrf.mxu0
        %v870 = vadd.f32 0.0, %v869
        %v871 = vpop.f32.mrf.mxu0
        %v872 = vadd.f32 0.0, %v871
        %873 = vmatmul.bf16.gmra.mxu0 %v435
        %v874 = vpop.f32.mrf.mxu0
        %v875 = vadd.f32 0.0, %v874
        %v876 = vpop.f32.mrf.mxu0
        %v877 = vadd.f32 0.0, %v876
        %878 = vdwg.mxu0
        %879 = vmatpush.bf16.msra.mxu0 %v579
        %880 = vmatpush.bf16.msra.mxu0 %v575
        %881 = vmatpush.bf16.msra.mxu0 %v571
        %882 = vmatpush.bf16.msra.mxu0 %v567
        %883 = vmatpush.bf16.msra.mxu0 %v563
        %884 = vmatpush.bf16.msra.mxu0 %v559
        %885 = vmatpush.bf16.msra.mxu0 %v555
        %886 = vmatpush.bf16.msra.mxu0 %v551
        %887 = vmatmul.bf16.gmra.mxu0 %v420
        %v888 = vpop.f32.mrf.mxu0
        %v889 = vadd.f32 0.0, %v888
        %v890 = vpop.f32.mrf.mxu0
        %v891 = vadd.f32 0.0, %v890
        %892 = vmatmul.bf16.gmra.mxu0 %v421
        %v893 = vpop.f32.mrf.mxu0
        %v894 = vadd.f32 0.0, %v893
        %v895 = vpop.f32.mrf.mxu0
        %v896 = vadd.f32 0.0, %v895
        %897 = vmatmul.bf16.gmra.mxu0 %v422
        %v898 = vpop.f32.mrf.mxu0
        %v899 = vadd.f32 0.0, %v898
        %v900 = vpop.f32.mrf.mxu0
        %v901 = vadd.f32 0.0, %v900
        %902 = vmatmul.bf16.gmra.mxu0 %v423
        %v903 = vpop.f32.mrf.mxu0
        %v904 = vadd.f32 0.0, %v903
        %v905 = vpop.f32.mrf.mxu0
        %v906 = vadd.f32 0.0, %v905
        %907 = vmatmul.bf16.gmra.mxu0 %v424
        %v908 = vpop.f32.mrf.mxu0
        %v909 = vadd.f32 0.0, %v908
        %v910 = vpop.f32.mrf.mxu0
        %v911 = vadd.f32 0.0, %v910
        %912 = vmatmul.bf16.gmra.mxu0 %v425
        %v913 = vpop.f32.mrf.mxu0
        %v914 = vadd.f32 0.0, %v913
        %v915 = vpop.f32.mrf.mxu0
        %v916 = vadd.f32 0.0, %v915
        %917 = vmatmul.bf16.gmra.mxu0 %v426
        %v918 = vpop.f32.mrf.mxu0
        %v919 = vadd.f32 0.0, %v918
        %v920 = vpop.f32.mrf.mxu0
        %v921 = vadd.f32 0.0, %v920
        %922 = vmatmul.bf16.gmra.mxu0 %v427
        %v923 = vpop.f32.mrf.mxu0
        %v924 = vadd.f32 0.0, %v923
        %v925 = vpop.f32.mrf.mxu0
        %v926 = vadd.f32 0.0, %v925
        %927 = vmatmul.bf16.gmra.mxu0 %v428
        %v928 = vpop.f32.mrf.mxu0
        %v929 = vadd.f32 0.0, %v928
        %v930 = vpop.f32.mrf.mxu0
        %v931 = vadd.f32 0.0, %v930
        %932 = vmatmul.bf16.gmra.mxu0 %v429
        %v933 = vpop.f32.mrf.mxu0
        %v934 = vadd.f32 0.0, %v933
        %v935 = vpop.f32.mrf.mxu0
        %v936 = vadd.f32 0.0, %v935
        %937 = vmatmul.bf16.gmra.mxu0 %v430
        %v938 = vpop.f32.mrf.mxu0
        %v939 = vadd.f32 0.0, %v938
        %v940 = vpop.f32.mrf.mxu0
        %v941 = vadd.f32 0.0, %v940
        %942 = vmatmul.bf16.gmra.mxu0 %v431
        %v943 = vpop.f32.mrf.mxu0
        %v944 = vadd.f32 0.0, %v943
        %v945 = vpop.f32.mrf.mxu0
        %v946 = vadd.f32 0.0, %v945
        %947 = vmatmul.bf16.gmra.mxu0 %v432
        %v948 = vpop.f32.mrf.mxu0
        %v949 = vadd.f32 0.0, %v948
        %v950 = vpop.f32.mrf.mxu0
        %v951 = vadd.f32 0.0, %v950
        %952 = vmatmul.bf16.gmra.mxu0 %v433
        %v953 = vpop.f32.mrf.mxu0
        %v954 = vadd.f32 0.0, %v953
        %v955 = vpop.f32.mrf.mxu0
        %v956 = vadd.f32 0.0, %v955
        %957 = vmatmul.bf16.gmra.mxu0 %v434
        %v958 = vpop.f32.mrf.mxu0
        %v959 = vadd.f32 0.0, %v958
        %v960 = vpop.f32.mrf.mxu0
        %v961 = vadd.f32 0.0, %v960
        %962 = vmatmul.bf16.gmra.mxu0 %v435
        %v963 = vpop.f32.mrf.mxu0
        %v964 = vadd.f32 0.0, %v963
        %v965 = vpop.f32.mrf.mxu0
        %v966 = vadd.f32 0.0, %v965
        %967 = vdwg.mxu0
        %v968 = vmul.f32 %v622, 0.035677407
        %v969 = vmul.f32 %v711, 0.035677407
        %v970 = vmul.f32 %v624, 0.035677407
        %v971 = vmul.f32 %v713, 0.035677407
        %v972 = vmul.f32 %v627, 0.035677407
        %v973 = vmul.f32 %v716, 0.035677407
        %v974 = vmul.f32 %v629, 0.035677407
        %v975 = vmul.f32 %v718, 0.035677407
        %v976 = vmul.f32 %v632, 0.035677407
        %v977 = vmul.f32 %v721, 0.035677407
        %v978 = vmul.f32 %v634, 0.035677407
        %v979 = vmul.f32 %v723, 0.035677407
        %v980 = vmul.f32 %v637, 0.035677407
        %v981 = vmul.f32 %v726, 0.035677407
        %v982 = vmul.f32 %v639, 0.035677407
        %v983 = vmul.f32 %v728, 0.035677407
        %v984 = vmul.f32 %v642, 0.035677407
        %v985 = vmul.f32 %v731, 0.035677407
        %v986 = vmul.f32 %v644, 0.035677407
        %v987 = vmul.f32 %v733, 0.035677407
        %v988 = vmul.f32 %v647, 0.035677407
        %v989 = vmul.f32 %v736, 0.035677407
        %v990 = vmul.f32 %v649, 0.035677407
        %v991 = vmul.f32 %v738, 0.035677407
        %v992 = vmul.f32 %v652, 0.035677407
        %v993 = vmul.f32 %v741, 0.035677407
        %v994 = vmul.f32 %v654, 0.035677407
        %v995 = vmul.f32 %v743, 0.035677407
        %v996 = vmul.f32 %v657, 0.035677407
        %v997 = vmul.f32 %v746, 0.035677407
        %v998 = vmul.f32 %v659, 0.035677407
        %v999 = vmul.f32 %v748, 0.035677407
        %v1000 = vmul.f32 %v662, 0.035677407
        %v1001 = vmul.f32 %v751, 0.035677407
        %v1002 = vmul.f32 %v664, 0.035677407
        %v1003 = vmul.f32 %v753, 0.035677407
        %v1004 = vmul.f32 %v667, 0.035677407
        %v1005 = vmul.f32 %v756, 0.035677407
        %v1006 = vmul.f32 %v669, 0.035677407
        %v1007 = vmul.f32 %v758, 0.035677407
        %v1008 = vmul.f32 %v672, 0.035677407
        %v1009 = vmul.f32 %v761, 0.035677407
        %v1010 = vmul.f32 %v674, 0.035677407
        %v1011 = vmul.f32 %v763, 0.035677407
        %v1012 = vmul.f32 %v677, 0.035677407
        %v1013 = vmul.f32 %v766, 0.035677407
        %v1014 = vmul.f32 %v679, 0.035677407
        %v1015 = vmul.f32 %v768, 0.035677407
        %v1016 = vmul.f32 %v682, 0.035677407
        %v1017 = vmul.f32 %v771, 0.035677407
        %v1018 = vmul.f32 %v684, 0.035677407
        %v1019 = vmul.f32 %v773, 0.035677407
        %v1020 = vmul.f32 %v687, 0.035677407
        %v1021 = vmul.f32 %v776, 0.035677407
        %v1022 = vmul.f32 %v689, 0.035677407
        %v1023 = vmul.f32 %v778, 0.035677407
        %v1024 = vmul.f32 %v692, 0.035677407
        %v1025 = vmul.f32 %v781, 0.035677407
        %v1026 = vmul.f32 %v694, 0.035677407
        %v1027 = vmul.f32 %v783, 0.035677407
        %v1028 = vmul.f32 %v697, 0.035677407
        %v1029 = vmul.f32 %v786, 0.035677407
        %v1030 = vmul.f32 %v699, 0.035677407
        %v1031 = vmul.f32 %v788, 0.035677407
        %v1032 = vmul.f32 %v968, %v622
        %v1033 = vmul.f32 %v969, %v711
        %v1034 = vmul.f32 %v970, %v624
        %v1035 = vmul.f32 %v971, %v713
        %v1036 = vmul.f32 %v972, %v627
        %v1037 = vmul.f32 %v973, %v716
        %v1038 = vmul.f32 %v974, %v629
        %v1039 = vmul.f32 %v975, %v718
        %v1040 = vmul.f32 %v976, %v632
        %v1041 = vmul.f32 %v977, %v721
        %v1042 = vmul.f32 %v978, %v634
        %v1043 = vmul.f32 %v979, %v723
        %v1044 = vmul.f32 %v980, %v637
        %v1045 = vmul.f32 %v981, %v726
        %v1046 = vmul.f32 %v982, %v639
        %v1047 = vmul.f32 %v983, %v728
        %v1048 = vmul.f32 %v984, %v642
        %v1049 = vmul.f32 %v985, %v731
        %v1050 = vmul.f32 %v986, %v644
        %v1051 = vmul.f32 %v987, %v733
        %v1052 = vmul.f32 %v988, %v647
        %v1053 = vmul.f32 %v989, %v736
        %v1054 = vmul.f32 %v990, %v649
        %v1055 = vmul.f32 %v991, %v738
        %v1056 = vmul.f32 %v992, %v652
        %v1057 = vmul.f32 %v993, %v741
        %v1058 = vmul.f32 %v994, %v654
        %v1059 = vmul.f32 %v995, %v743
        %v1060 = vmul.f32 %v996, %v657
        %v1061 = vmul.f32 %v997, %v746
        %v1062 = vmul.f32 %v998, %v659
        %v1063 = vmul.f32 %v999, %v748
        %v1064 = vmul.f32 %v1000, %v662
        %v1065 = vmul.f32 %v1001, %v751
        %v1066 = vmul.f32 %v1002, %v664
        %v1067 = vmul.f32 %v1003, %v753
        %v1068 = vmul.f32 %v1004, %v667
        %v1069 = vmul.f32 %v1005, %v756
        %v1070 = vmul.f32 %v1006, %v669
        %v1071 = vmul.f32 %v1007, %v758
        %v1072 = vmul.f32 %v1008, %v672
        %v1073 = vmul.f32 %v1009, %v761
        %v1074 = vmul.f32 %v1010, %v674
        %v1075 = vmul.f32 %v1011, %v763
        %v1076 = vmul.f32 %v1012, %v677
        %v1077 = vmul.f32 %v1013, %v766
        %v1078 = vmul.f32 %v1014, %v679
        %v1079 = vmul.f32 %v1015, %v768
        %v1080 = vmul.f32 %v1016, %v682
        %v1081 = vmul.f32 %v1017, %v771
        %v1082 = vmul.f32 %v1018, %v684
        %v1083 = vmul.f32 %v1019, %v773
        %v1084 = vmul.f32 %v1020, %v687
        %v1085 = vmul.f32 %v1021, %v776
        %v1086 = vmul.f32 %v1022, %v689
        %v1087 = vmul.f32 %v1023, %v778
        %v1088 = vmul.f32 %v1024, %v692
        %v1089 = vmul.f32 %v1025, %v781
        %v1090 = vmul.f32 %v1026, %v694
        %v1091 = vmul.f32 %v1027, %v783
        %v1092 = vmul.f32 %v1028, %v697
        %v1093 = vmul.f32 %v1029, %v786
        %v1094 = vmul.f32 %v1030, %v699
        %v1095 = vmul.f32 %v1031, %v788
        %v1096 = vadd.f32 %v1032, 0.7978846
        %v1097 = vadd.f32 %v1033, 0.7978846
        %v1098 = vadd.f32 %v1034, 0.7978846
        %v1099 = vadd.f32 %v1035, 0.7978846
        %v1100 = vadd.f32 %v1036, 0.7978846
        %v1101 = vadd.f32 %v1037, 0.7978846
        %v1102 = vadd.f32 %v1038, 0.7978846
        %v1103 = vadd.f32 %v1039, 0.7978846
        %v1104 = vadd.f32 %v1040, 0.7978846
        %v1105 = vadd.f32 %v1041, 0.7978846
        %v1106 = vadd.f32 %v1042, 0.7978846
        %v1107 = vadd.f32 %v1043, 0.7978846
        %v1108 = vadd.f32 %v1044, 0.7978846
        %v1109 = vadd.f32 %v1045, 0.7978846
        %v1110 = vadd.f32 %v1046, 0.7978846
        %v1111 = vadd.f32 %v1047, 0.7978846
        %v1112 = vadd.f32 %v1048, 0.7978846
        %v1113 = vadd.f32 %v1049, 0.7978846
        %v1114 = vadd.f32 %v1050, 0.7978846
        %v1115 = vadd.f32 %v1051, 0.7978846
        %v1116 = vadd.f32 %v1052, 0.7978846
        %v1117 = vadd.f32 %v1053, 0.7978846
        %v1118 = vadd.f32 %v1054, 0.7978846
        %v1119 = vadd.f32 %v1055, 0.7978846
        %v1120 = vadd.f32 %v1056, 0.7978846
        %v1121 = vadd.f32 %v1057, 0.7978846
        %v1122 = vadd.f32 %v1058, 0.7978846
        %v1123 = vadd.f32 %v1059, 0.7978846
        %v1124 = vadd.f32 %v1060, 0.7978846
        %v1125 = vadd.f32 %v1061, 0.7978846
        %v1126 = vadd.f32 %v1062, 0.7978846
        %v1127 = vadd.f32 %v1063, 0.7978846
        %v1128 = vadd.f32 %v1064, 0.7978846
        %v1129 = vadd.f32 %v1065, 0.7978846
        %v1130 = vadd.f32 %v1066, 0.7978846
        %v1131 = vadd.f32 %v1067, 0.7978846
        %v1132 = vadd.f32 %v1068, 0.7978846
        %v1133 = vadd.f32 %v1069, 0.7978846
        %v1134 = vadd.f32 %v1070, 0.7978846
        %v1135 = vadd.f32 %v1071, 0.7978846
        %v1136 = vadd.f32 %v1072, 0.7978846
        %v1137 = vadd.f32 %v1073, 0.7978846
        %v1138 = vadd.f32 %v1074, 0.7978846
        %v1139 = vadd.f32 %v1075, 0.7978846
        %v1140 = vadd.f32 %v1076, 0.7978846
        %v1141 = vadd.f32 %v1077, 0.7978846
        %v1142 = vadd.f32 %v1078, 0.7978846
        %v1143 = vadd.f32 %v1079, 0.7978846
        %v1144 = vadd.f32 %v1080, 0.7978846
        %v1145 = vadd.f32 %v1081, 0.7978846
        %v1146 = vadd.f32 %v1082, 0.7978846
        %v1147 = vadd.f32 %v1083, 0.7978846
        %v1148 = vadd.f32 %v1084, 0.7978846
        %v1149 = vadd.f32 %v1085, 0.7978846
        %v1150 = vadd.f32 %v1086, 0.7978846
        %v1151 = vadd.f32 %v1087, 0.7978846
        %v1152 = vadd.f32 %v1088, 0.7978846
        %v1153 = vadd.f32 %v1089, 0.7978846
        %v1154 = vadd.f32 %v1090, 0.7978846
        %v1155 = vadd.f32 %v1091, 0.7978846
        %v1156 = vadd.f32 %v1092, 0.7978846
        %v1157 = vadd.f32 %v1093, 0.7978846
        %v1158 = vadd.f32 %v1094, 0.7978846
        %v1159 = vadd.f32 %v1095, 0.7978846
        %v1160 = vmul.f32 %v622, %v1096
        %v1161 = vmul.f32 %v711, %v1097
        %v1162 = vmul.f32 %v624, %v1098
        %v1163 = vmul.f32 %v713, %v1099
        %v1164 = vmul.f32 %v627, %v1100
        %v1165 = vmul.f32 %v716, %v1101
        %v1166 = vmul.f32 %v629, %v1102
        %v1167 = vmul.f32 %v718, %v1103
        %v1168 = vmul.f32 %v632, %v1104
        %v1169 = vmul.f32 %v721, %v1105
        %v1170 = vmul.f32 %v634, %v1106
        %v1171 = vmul.f32 %v723, %v1107
        %v1172 = vmul.f32 %v637, %v1108
        %v1173 = vmul.f32 %v726, %v1109
        %v1174 = vmul.f32 %v639, %v1110
        %v1175 = vmul.f32 %v728, %v1111
        %v1176 = vmul.f32 %v642, %v1112
        %v1177 = vmul.f32 %v731, %v1113
        %v1178 = vmul.f32 %v644, %v1114
        %v1179 = vmul.f32 %v733, %v1115
        %v1180 = vmul.f32 %v647, %v1116
        %v1181 = vmul.f32 %v736, %v1117
        %v1182 = vmul.f32 %v649, %v1118
        %v1183 = vmul.f32 %v738, %v1119
        %v1184 = vmul.f32 %v652, %v1120
        %v1185 = vmul.f32 %v741, %v1121
        %v1186 = vmul.f32 %v654, %v1122
        %v1187 = vmul.f32 %v743, %v1123
        %v1188 = vmul.f32 %v657, %v1124
        %v1189 = vmul.f32 %v746, %v1125
        %v1190 = vmul.f32 %v659, %v1126
        %v1191 = vmul.f32 %v748, %v1127
        %v1192 = vmul.f32 %v662, %v1128
        %v1193 = vmul.f32 %v751, %v1129
        %v1194 = vmul.f32 %v664, %v1130
        %v1195 = vmul.f32 %v753, %v1131
        %v1196 = vmul.f32 %v667, %v1132
        %v1197 = vmul.f32 %v756, %v1133
        %v1198 = vmul.f32 %v669, %v1134
        %v1199 = vmul.f32 %v758, %v1135
        %v1200 = vmul.f32 %v672, %v1136
        %v1201 = vmul.f32 %v761, %v1137
        %v1202 = vmul.f32 %v674, %v1138
        %v1203 = vmul.f32 %v763, %v1139
        %v1204 = vmul.f32 %v677, %v1140
        %v1205 = vmul.f32 %v766, %v1141
        %v1206 = vmul.f32 %v679, %v1142
        %v1207 = vmul.f32 %v768, %v1143
        %v1208 = vmul.f32 %v682, %v1144
        %v1209 = vmul.f32 %v771, %v1145
        %v1210 = vmul.f32 %v684, %v1146
        %v1211 = vmul.f32 %v773, %v1147
        %v1212 = vmul.f32 %v687, %v1148
        %v1213 = vmul.f32 %v776, %v1149
        %v1214 = vmul.f32 %v689, %v1150
        %v1215 = vmul.f32 %v778, %v1151
        %v1216 = vmul.f32 %v692, %v1152
        %v1217 = vmul.f32 %v781, %v1153
        %v1218 = vmul.f32 %v694, %v1154
        %v1219 = vmul.f32 %v783, %v1155
        %v1220 = vmul.f32 %v697, %v1156
        %v1221 = vmul.f32 %v786, %v1157
        %v1222 = vmul.f32 %v699, %v1158
        %v1223 = vmul.f32 %v788, %v1159
        %v1224 = vmul.f32 %v622, 0.5
        %v1225 = vmul.f32 %v711, 0.5
        %v1226 = vmul.f32 %v624, 0.5
        %v1227 = vmul.f32 %v713, 0.5
        %v1228 = vmul.f32 %v627, 0.5
        %v1229 = vmul.f32 %v716, 0.5
        %v1230 = vmul.f32 %v629, 0.5
        %v1231 = vmul.f32 %v718, 0.5
        %v1232 = vmul.f32 %v632, 0.5
        %v1233 = vmul.f32 %v721, 0.5
        %v1234 = vmul.f32 %v634, 0.5
        %v1235 = vmul.f32 %v723, 0.5
        %v1236 = vmul.f32 %v637, 0.5
        %v1237 = vmul.f32 %v726, 0.5
        %v1238 = vmul.f32 %v639, 0.5
        %v1239 = vmul.f32 %v728, 0.5
        %v1240 = vmul.f32 %v642, 0.5
        %v1241 = vmul.f32 %v731, 0.5
        %v1242 = vmul.f32 %v644, 0.5
        %v1243 = vmul.f32 %v733, 0.5
        %v1244 = vmul.f32 %v647, 0.5
        %v1245 = vmul.f32 %v736, 0.5
        %v1246 = vmul.f32 %v649, 0.5
        %v1247 = vmul.f32 %v738, 0.5
        %v1248 = vmul.f32 %v652, 0.5
        %v1249 = vmul.f32 %v741, 0.5
        %v1250 = vmul.f32 %v654, 0.5
        %v1251 = vmul.f32 %v743, 0.5
        %v1252 = vmul.f32 %v657, 0.5
        %v1253 = vmul.f32 %v746, 0.5
        %v1254 = vmul.f32 %v659, 0.5
        %v1255 = vmul.f32 %v748, 0.5
        %v1256 = vmul.f32 %v662, 0.5
        %v1257 = vmul.f32 %v751, 0.5
        %v1258 = vmul.f32 %v664, 0.5
        %v1259 = vmul.f32 %v753, 0.5
        %v1260 = vmul.f32 %v667, 0.5
        %v1261 = vmul.f32 %v756, 0.5
        %v1262 = vmul.f32 %v669, 0.5
        %v1263 = vmul.f32 %v758, 0.5
        %v1264 = vmul.f32 %v672, 0.5
        %v1265 = vmul.f32 %v761, 0.5
        %v1266 = vmul.f32 %v674, 0.5
        %v1267 = vmul.f32 %v763, 0.5
        %v1268 = vmul.f32 %v677, 0.5
        %v1269 = vmul.f32 %v766, 0.5
        %v1270 = vmul.f32 %v679, 0.5
        %v1271 = vmul.f32 %v768, 0.5
        %v1272 = vmul.f32 %v682, 0.5
        %v1273 = vmul.f32 %v771, 0.5
        %v1274 = vmul.f32 %v684, 0.5
        %v1275 = vmul.f32 %v773, 0.5
        %v1276 = vmul.f32 %v687, 0.5
        %v1277 = vmul.f32 %v776, 0.5
        %v1278 = vmul.f32 %v689, 0.5
        %v1279 = vmul.f32 %v778, 0.5
        %v1280 = vmul.f32 %v692, 0.5
        %v1281 = vmul.f32 %v781, 0.5
        %v1282 = vmul.f32 %v694, 0.5
        %v1283 = vmul.f32 %v783, 0.5
        %v1284 = vmul.f32 %v697, 0.5
        %v1285 = vmul.f32 %v786, 0.5
        %v1286 = vmul.f32 %v699, 0.5
        %v1287 = vmul.f32 %v788, 0.5
        %v1288 = vtanh.pop %v1160
        %v1289 = vtanh.pop %v1161
        %v1290 = vtanh.pop %v1162
        %v1291 = vtanh.pop %v1163
        %v1292 = vtanh.pop %v1164
        %v1293 = vtanh.pop %v1165
        %v1294 = vtanh.pop %v1166
        %v1295 = vtanh.pop %v1167
        %v1296 = vtanh.pop %v1168
        %v1297 = vtanh.pop %v1169
        %v1298 = vtanh.pop %v1170
        %v1299 = vtanh.pop %v1171
        %v1300 = vtanh.pop %v1172
        %v1301 = vtanh.pop %v1173
        %v1302 = vtanh.pop %v1174
        %v1303 = vtanh.pop %v1175
        %v1304 = vtanh.pop %v1176
        %v1305 = vtanh.pop %v1177
        %v1306 = vtanh.pop %v1178
        %v1307 = vtanh.pop %v1179
        %v1308 = vtanh.pop %v1180
        %v1309 = vtanh.pop %v1181
        %v1310 = vtanh.pop %v1182
        %v1311 = vtanh.pop %v1183
        %v1312 = vtanh.pop %v1184
        %v1313 = vtanh.pop %v1185
        %v1314 = vtanh.pop %v1186
        %v1315 = vtanh.pop %v1187
        %v1316 = vtanh.pop %v1188
        %v1317 = vtanh.pop %v1189
        %v1318 = vtanh.pop %v1190
        %v1319 = vtanh.pop %v1191
        %v1320 = vtanh.pop %v1192
        %v1321 = vtanh.pop %v1193
        %v1322 = vtanh.pop %v1194
        %v1323 = vtanh.pop %v1195
        %v1324 = vtanh.pop %v1196
        %v1325 = vtanh.pop %v1197
        %v1326 = vtanh.pop %v1198
        %v1327 = vtanh.pop %v1199
        %v1328 = vtanh.pop %v1200
        %v1329 = vtanh.pop %v1201
        %v1330 = vtanh.pop %v1202
        %v1331 = vtanh.pop %v1203
        %v1332 = vtanh.pop %v1204
        %v1333 = vtanh.pop %v1205
        %v1334 = vtanh.pop %v1206
        %v1335 = vtanh.pop %v1207
        %v1336 = vtanh.pop %v1208
        %v1337 = vtanh.pop %v1209
        %v1338 = vtanh.pop %v1210
        %v1339 = vtanh.pop %v1211
        %v1340 = vtanh.pop %v1212
        %v1341 = vtanh.pop %v1213
        %v1342 = vtanh.pop %v1214
        %v1343 = vtanh.pop %v1215
        %v1344 = vtanh.pop %v1216
        %v1345 = vtanh.pop %v1217
        %v1346 = vtanh.pop %v1218
        %v1347 = vtanh.pop %v1219
        %v1348 = vtanh.pop %v1220
        %v1349 = vtanh.pop %v1221
        %v1350 = vtanh.pop %v1222
        %v1351 = vtanh.pop %v1223
        %v1352 = vadd.f32 %v1288, 1.0
        %v1353 = vadd.f32 %v1289, 1.0
        %v1354 = vadd.f32 %v1290, 1.0
        %v1355 = vadd.f32 %v1291, 1.0
        %v1356 = vadd.f32 %v1292, 1.0
        %v1357 = vadd.f32 %v1293, 1.0
        %v1358 = vadd.f32 %v1294, 1.0
        %v1359 = vadd.f32 %v1295, 1.0
        %v1360 = vadd.f32 %v1296, 1.0
        %v1361 = vadd.f32 %v1297, 1.0
        %v1362 = vadd.f32 %v1298, 1.0
        %v1363 = vadd.f32 %v1299, 1.0
        %v1364 = vadd.f32 %v1300, 1.0
        %v1365 = vadd.f32 %v1301, 1.0
        %v1366 = vadd.f32 %v1302, 1.0
        %v1367 = vadd.f32 %v1303, 1.0
        %v1368 = vadd.f32 %v1304, 1.0
        %v1369 = vadd.f32 %v1305, 1.0
        %v1370 = vadd.f32 %v1306, 1.0
        %v1371 = vadd.f32 %v1307, 1.0
        %v1372 = vadd.f32 %v1308, 1.0
        %v1373 = vadd.f32 %v1309, 1.0
        %v1374 = vadd.f32 %v1310, 1.0
        %v1375 = vadd.f32 %v1311, 1.0
        %v1376 = vadd.f32 %v1312, 1.0
        %v1377 = vadd.f32 %v1313, 1.0
        %v1378 = vadd.f32 %v1314, 1.0
        %v1379 = vadd.f32 %v1315, 1.0
        %v1380 = vadd.f32 %v1316, 1.0
        %v1381 = vadd.f32 %v1317, 1.0
        %v1382 = vadd.f32 %v1318, 1.0
        %v1383 = vadd.f32 %v1319, 1.0
        %v1384 = vadd.f32 %v1320, 1.0
        %v1385 = vadd.f32 %v1321, 1.0
        %v1386 = vadd.f32 %v1322, 1.0
        %v1387 = vadd.f32 %v1323, 1.0
        %v1388 = vadd.f32 %v1324, 1.0
        %v1389 = vadd.f32 %v1325, 1.0
        %v1390 = vadd.f32 %v1326, 1.0
        %v1391 = vadd.f32 %v1327, 1.0
        %v1392 = vadd.f32 %v1328, 1.0
        %v1393 = vadd.f32 %v1329, 1.0
        %v1394 = vadd.f32 %v1330, 1.0
        %v1395 = vadd.f32 %v1331, 1.0
        %v1396 = vadd.f32 %v1332, 1.0
        %v1397 = vadd.f32 %v1333, 1.0
        %v1398 = vadd.f32 %v1334, 1.0
        %v1399 = vadd.f32 %v1335, 1.0
        %v1400 = vadd.f32 %v1336, 1.0
        %v1401 = vadd.f32 %v1337, 1.0
        %v1402 = vadd.f32 %v1338, 1.0
        %v1403 = vadd.f32 %v1339, 1.0
        %v1404 = vadd.f32 %v1340, 1.0
        %v1405 = vadd.f32 %v1341, 1.0
        %v1406 = vadd.f32 %v1342, 1.0
        %v1407 = vadd.f32 %v1343, 1.0
        %v1408 = vadd.f32 %v1344, 1.0
        %v1409 = vadd.f32 %v1345, 1.0
        %v1410 = vadd.f32 %v1346, 1.0
        %v1411 = vadd.f32 %v1347, 1.0
        %v1412 = vadd.f32 %v1348, 1.0
        %v1413 = vadd.f32 %v1349, 1.0
        %v1414 = vadd.f32 %v1350, 1.0
        %v1415 = vadd.f32 %v1351, 1.0
        %v1416 = vmul.f32 %v1224, %v1352
        %v1417 = vmul.f32 %v1225, %v1353
        %v1418 = vmul.f32 %v1226, %v1354
        %v1419 = vmul.f32 %v1227, %v1355
        %v1420 = vmul.f32 %v1228, %v1356
        %v1421 = vmul.f32 %v1229, %v1357
        %v1422 = vmul.f32 %v1230, %v1358
        %v1423 = vmul.f32 %v1231, %v1359
        %v1424 = vmul.f32 %v1232, %v1360
        %v1425 = vmul.f32 %v1233, %v1361
        %v1426 = vmul.f32 %v1234, %v1362
        %v1427 = vmul.f32 %v1235, %v1363
        %v1428 = vmul.f32 %v1236, %v1364
        %v1429 = vmul.f32 %v1237, %v1365
        %v1430 = vmul.f32 %v1238, %v1366
        %v1431 = vmul.f32 %v1239, %v1367
        %v1432 = vmul.f32 %v1240, %v1368
        %v1433 = vmul.f32 %v1241, %v1369
        %v1434 = vmul.f32 %v1242, %v1370
        %v1435 = vmul.f32 %v1243, %v1371
        %v1436 = vmul.f32 %v1244, %v1372
        %v1437 = vmul.f32 %v1245, %v1373
        %v1438 = vmul.f32 %v1246, %v1374
        %v1439 = vmul.f32 %v1247, %v1375
        %v1440 = vmul.f32 %v1248, %v1376
        %v1441 = vmul.f32 %v1249, %v1377
        %v1442 = vmul.f32 %v1250, %v1378
        %v1443 = vmul.f32 %v1251, %v1379
        %v1444 = vmul.f32 %v1252, %v1380
        %v1445 = vmul.f32 %v1253, %v1381
        %v1446 = vmul.f32 %v1254, %v1382
        %v1447 = vmul.f32 %v1255, %v1383
        %v1448 = vmul.f32 %v1256, %v1384
        %v1449 = vmul.f32 %v1257, %v1385
        %v1450 = vmul.f32 %v1258, %v1386
        %v1451 = vmul.f32 %v1259, %v1387
        %v1452 = vmul.f32 %v1260, %v1388
        %v1453 = vmul.f32 %v1261, %v1389
        %v1454 = vmul.f32 %v1262, %v1390
        %v1455 = vmul.f32 %v1263, %v1391
        %v1456 = vmul.f32 %v1264, %v1392
        %v1457 = vmul.f32 %v1265, %v1393
        %v1458 = vmul.f32 %v1266, %v1394
        %v1459 = vmul.f32 %v1267, %v1395
        %v1460 = vmul.f32 %v1268, %v1396
        %v1461 = vmul.f32 %v1269, %v1397
        %v1462 = vmul.f32 %v1270, %v1398
        %v1463 = vmul.f32 %v1271, %v1399
        %v1464 = vmul.f32 %v1272, %v1400
        %v1465 = vmul.f32 %v1273, %v1401
        %v1466 = vmul.f32 %v1274, %v1402
        %v1467 = vmul.f32 %v1275, %v1403
        %v1468 = vmul.f32 %v1276, %v1404
        %v1469 = vmul.f32 %v1277, %v1405
        %v1470 = vmul.f32 %v1278, %v1406
        %v1471 = vmul.f32 %v1279, %v1407
        %v1472 = vmul.f32 %v1280, %v1408
        %v1473 = vmul.f32 %v1281, %v1409
        %v1474 = vmul.f32 %v1282, %v1410
        %v1475 = vmul.f32 %v1283, %v1411
        %v1476 = vmul.f32 %v1284, %v1412
        %v1477 = vmul.f32 %v1285, %v1413
        %v1478 = vmul.f32 %v1286, %v1414
        %v1479 = vmul.f32 %v1287, %v1415
        %v1480 = vmul.f32 %v1416, %v800
        %v1481 = vmul.f32 %v1417, %v889
        %v1482 = vmul.f32 %v1418, %v802
        %v1483 = vmul.f32 %v1419, %v891
        %v1484 = vmul.f32 %v1420, %v805
        %v1485 = vmul.f32 %v1421, %v894
        %v1486 = vmul.f32 %v1422, %v807
        %v1487 = vmul.f32 %v1423, %v896
        %v1488 = vmul.f32 %v1424, %v810
        %v1489 = vmul.f32 %v1425, %v899
        %v1490 = vmul.f32 %v1426, %v812
        %v1491 = vmul.f32 %v1427, %v901
        %v1492 = vmul.f32 %v1428, %v815
        %v1493 = vmul.f32 %v1429, %v904
        %v1494 = vmul.f32 %v1430, %v817
        %v1495 = vmul.f32 %v1431, %v906
        %v1496 = vmul.f32 %v1432, %v820
        %v1497 = vmul.f32 %v1433, %v909
        %v1498 = vmul.f32 %v1434, %v822
        %v1499 = vmul.f32 %v1435, %v911
        %v1500 = vmul.f32 %v1436, %v825
        %v1501 = vmul.f32 %v1437, %v914
        %v1502 = vmul.f32 %v1438, %v827
        %v1503 = vmul.f32 %v1439, %v916
        %v1504 = vmul.f32 %v1440, %v830
        %v1505 = vmul.f32 %v1441, %v919
        %v1506 = vmul.f32 %v1442, %v832
        %v1507 = vmul.f32 %v1443, %v921
        %v1508 = vmul.f32 %v1444, %v835
        %v1509 = vmul.f32 %v1445, %v924
        %v1510 = vmul.f32 %v1446, %v837
        %v1511 = vmul.f32 %v1447, %v926
        %v1512 = vmul.f32 %v1448, %v840
        %v1513 = vmul.f32 %v1449, %v929
        %v1514 = vmul.f32 %v1450, %v842
        %v1515 = vmul.f32 %v1451, %v931
        %v1516 = vmul.f32 %v1452, %v845
        %v1517 = vmul.f32 %v1453, %v934
        %v1518 = vmul.f32 %v1454, %v847
        %v1519 = vmul.f32 %v1455, %v936
        %v1520 = vmul.f32 %v1456, %v850
        %v1521 = vmul.f32 %v1457, %v939
        %v1522 = vmul.f32 %v1458, %v852
        %v1523 = vmul.f32 %v1459, %v941
        %v1524 = vmul.f32 %v1460, %v855
        %v1525 = vmul.f32 %v1461, %v944
        %v1526 = vmul.f32 %v1462, %v857
        %v1527 = vmul.f32 %v1463, %v946
        %v1528 = vmul.f32 %v1464, %v860
        %v1529 = vmul.f32 %v1465, %v949
        %v1530 = vmul.f32 %v1466, %v862
        %v1531 = vmul.f32 %v1467, %v951
        %v1532 = vmul.f32 %v1468, %v865
        %v1533 = vmul.f32 %v1469, %v954
        %v1534 = vmul.f32 %v1470, %v867
        %v1535 = vmul.f32 %v1471, %v956
        %v1536 = vmul.f32 %v1472, %v870
        %v1537 = vmul.f32 %v1473, %v959
        %v1538 = vmul.f32 %v1474, %v872
        %v1539 = vmul.f32 %v1475, %v961
        %v1540 = vmul.f32 %v1476, %v875
        %v1541 = vmul.f32 %v1477, %v964
        %v1542 = vmul.f32 %v1478, %v877
        %v1543 = vmul.f32 %v1479, %v966
        %v1544 = vpack.c.bf16 %v1482, %v1480
        %v1545 = vpack.c.bf16 %v1483, %v1481
        %v1546 = vpack.c.bf16 %v1486, %v1484
        %v1547 = vpack.c.bf16 %v1487, %v1485
        %v1548 = vpack.c.bf16 %v1490, %v1488
        %v1549 = vpack.c.bf16 %v1491, %v1489
        %v1550 = vpack.c.bf16 %v1494, %v1492
        %v1551 = vpack.c.bf16 %v1495, %v1493
        %v1552 = vpack.c.bf16 %v1498, %v1496
        %v1553 = vpack.c.bf16 %v1499, %v1497
        %v1554 = vpack.c.bf16 %v1502, %v1500
        %v1555 = vpack.c.bf16 %v1503, %v1501
        %v1556 = vpack.c.bf16 %v1506, %v1504
        %v1557 = vpack.c.bf16 %v1507, %v1505
        %v1558 = vpack.c.bf16 %v1510, %v1508
        %v1559 = vpack.c.bf16 %v1511, %v1509
        %v1560 = vpack.c.bf16 %v1514, %v1512
        %v1561 = vpack.c.bf16 %v1515, %v1513
        %v1562 = vpack.c.bf16 %v1518, %v1516
        %v1563 = vpack.c.bf16 %v1519, %v1517
        %v1564 = vpack.c.bf16 %v1522, %v1520
        %v1565 = vpack.c.bf16 %v1523, %v1521
        %v1566 = vpack.c.bf16 %v1526, %v1524
        %v1567 = vpack.c.bf16 %v1527, %v1525
        %v1568 = vpack.c.bf16 %v1530, %v1528
        %v1569 = vpack.c.bf16 %v1531, %v1529
        %v1570 = vpack.c.bf16 %v1534, %v1532
        %v1571 = vpack.c.bf16 %v1535, %v1533
        %v1572 = vpack.c.bf16 %v1538, %v1536
        %v1573 = vpack.c.bf16 %v1539, %v1537
        %v1574 = vpack.c.bf16 %v1542, %v1540
        %v1575 = vpack.c.bf16 %v1543, %v1541
        %v1576 = vld [vmem:[#allocation2] sm:$0xff]
        %v1577 = vld [vmem:[#allocation2 + $0x8] sm:$0xff]
        %v1578 = vld [vmem:[#allocation2 + $0x10] sm:$0xff]
        %v1579 = vld [vmem:[#allocation2 + $0x18] sm:$0xff]
        %v1580 = vld [vmem:[#allocation2 + $0x20] sm:$0xff]
        %v1581 = vld [vmem:[#allocation2 + $0x28] sm:$0xff]
        %v1582 = vld [vmem:[#allocation2 + $0x30] sm:$0xff]
        %v1583 = vld [vmem:[#allocation2 + $0x38] sm:$0xff]
        %v1584 = vld [vmem:[#allocation2 + $0x40] sm:$0xff]
        %v1585 = vld [vmem:[#allocation2 + $0x48] sm:$0xff]
        %v1586 = vld [vmem:[#allocation2 + $0x50] sm:$0xff]
        %v1587 = vld [vmem:[#allocation2 + $0x58] sm:$0xff]
        %v1588 = vld [vmem:[#allocation2 + $0x60] sm:$0xff]
        %v1589 = vld [vmem:[#allocation2 + $0x68] sm:$0xff]
        %v1590 = vld [vmem:[#allocation2 + $0x70] sm:$0xff]
        %v1591 = vld [vmem:[#allocation2 + $0x78] sm:$0xff]
        %v1592 = vld [vmem:[#allocation2 + $0x80] sm:$0xff]
        %v1593 = vld [vmem:[#allocation2 + $0x88] sm:$0xff]
        %v1594 = vld [vmem:[#allocation2 + $0x90] sm:$0xff]
        %v1595 = vld [vmem:[#allocation2 + $0x98] sm:$0xff]
        %v1596 = vld [vmem:[#allocation2 + $0xa0] sm:$0xff]
        %v1597 = vld [vmem:[#allocation2 + $0xa8] sm:$0xff]
        %v1598 = vld [vmem:[#allocation2 + $0xb0] sm:$0xff]
        %v1599 = vld [vmem:[#allocation2 + $0xb8] sm:$0xff]
        %v1600 = vld [vmem:[#allocation2 + $0xc0] sm:$0xff]
        %v1601 = vld [vmem:[#allocation2 + $0xc8] sm:$0xff]
        %v1602 = vld [vmem:[#allocation2 + $0xd0] sm:$0xff]
        %v1603 = vld [vmem:[#allocation2 + $0xd8] sm:$0xff]
        %v1604 = vld [vmem:[#allocation2 + $0xe0] sm:$0xff]
        %v1605 = vld [vmem:[#allocation2 + $0xe8] sm:$0xff]
        %v1606 = vld [vmem:[#allocation2 + $0xf0] sm:$0xff]
        %v1607 = vld [vmem:[#allocation2 + $0xf8] sm:$0xff]
        %v1608 = vld [vmem:[#allocation8] sm:$0xf]
        %v1609 = vld [vmem:[#allocation8 + $0x4] sm:$0xf]
        %v1610 = vld [vmem:[#allocation8 + $0x8] sm:$0xf]
        %v1611 = vld [vmem:[#allocation8 + $0xc] sm:$0xf]
        %v1612 = vld [vmem:[#allocation8 + $0x10] sm:$0xf]
        %v1613 = vld [vmem:[#allocation8 + $0x14] sm:$0xf]
        %v1614 = vld [vmem:[#allocation8 + $0x18] sm:$0xf]
        %v1615 = vld [vmem:[#allocation8 + $0x1c] sm:$0xf]
        %v1616 = vld [vmem:[#allocation8 + $0x20] sm:$0xf]
        %v1617 = vld [vmem:[#allocation8 + $0x24] sm:$0xf]
        %v1618 = vld [vmem:[#allocation8 + $0x28] sm:$0xf]
        %v1619 = vld [vmem:[#allocation8 + $0x2c] sm:$0xf]
        %v1620 = vld [vmem:[#allocation8 + $0x30] sm:$0xf]
        %v1621 = vld [vmem:[#allocation8 + $0x34] sm:$0xf]
        %v1622 = vld [vmem:[#allocation8 + $0x38] sm:$0xf]
        %v1623 = vld [vmem:[#allocation8 + $0x3c] sm:$0xf]
        %v1624 = vld [vmem:[#allocation8 + $0x40] sm:$0xf]
        %v1625 = vld [vmem:[#allocation8 + $0x44] sm:$0xf]
        %v1626 = vld [vmem:[#allocation8 + $0x48] sm:$0xf]
        %v1627 = vld [vmem:[#allocation8 + $0x4c] sm:$0xf]
        %v1628 = vld [vmem:[#allocation8 + $0x50] sm:$0xf]
        %v1629 = vld [vmem:[#allocation8 + $0x54] sm:$0xf]
        %v1630 = vld [vmem:[#allocation8 + $0x58] sm:$0xf]
        %v1631 = vld [vmem:[#allocation8 + $0x5c] sm:$0xf]
        %v1632 = vld [vmem:[#allocation8 + $0x60] sm:$0xf]
        %v1633 = vld [vmem:[#allocation8 + $0x64] sm:$0xf]
        %v1634 = vld [vmem:[#allocation8 + $0x68] sm:$0xf]
        %v1635 = vld [vmem:[#allocation8 + $0x6c] sm:$0xf]
        %v1636 = vld [vmem:[#allocation8 + $0x70] sm:$0xf]
        %v1637 = vld [vmem:[#allocation8 + $0x74] sm:$0xf]
        %v1638 = vld [vmem:[#allocation8 + $0x78] sm:$0xf]
        %v1639 = vld [vmem:[#allocation8 + $0x7c] sm:$0xf]
        %v1672 = vunpack.c.l.b16 %v1608
        %v1673 = vunpack.c.l.b16 %v1609
        %v1674 = vunpack.c.l.b16 %v1610
        %v1675 = vunpack.c.l.b16 %v1611
        %v1676 = vunpack.c.l.b16 %v1612
        %v1677 = vunpack.c.l.b16 %v1613
        %v1678 = vunpack.c.l.b16 %v1614
        %v1679 = vunpack.c.l.b16 %v1615
        %v1680 = vunpack.c.l.b16 %v1616
        %v1681 = vunpack.c.l.b16 %v1617
        %v1682 = vunpack.c.l.b16 %v1618
        %v1683 = vunpack.c.l.b16 %v1619
        %v1684 = vunpack.c.l.b16 %v1620
        %v1685 = vunpack.c.l.b16 %v1621
        %v1686 = vunpack.c.l.b16 %v1622
        %v1687 = vunpack.c.l.b16 %v1623
        %v1688 = vunpack.c.l.b16 %v1624
        %v1689 = vunpack.c.l.b16 %v1625
        %v1690 = vunpack.c.l.b16 %v1626
        %v1691 = vunpack.c.l.b16 %v1627
        %v1692 = vunpack.c.l.b16 %v1628
        %v1693 = vunpack.c.l.b16 %v1629
        %v1694 = vunpack.c.l.b16 %v1630
        %v1695 = vunpack.c.l.b16 %v1631
        %v1696 = vunpack.c.l.b16 %v1632
        %v1697 = vunpack.c.l.b16 %v1633
        %v1698 = vunpack.c.l.b16 %v1634
        %v1699 = vunpack.c.l.b16 %v1635
        %v1700 = vunpack.c.l.b16 %v1636
        %v1701 = vunpack.c.l.b16 %v1637
        %v1702 = vunpack.c.l.b16 %v1638
        %v1703 = vunpack.c.l.b16 %v1639
        %v1704 = vpack.c.b16 %v1673, %v1672
        %v1705 = vpack.c.b16 %v1675, %v1674
        %v1706 = vpack.c.b16 %v1677, %v1676
        %v1707 = vpack.c.b16 %v1679, %v1678
        %v1708 = vpack.c.b16 %v1681, %v1680
        %v1709 = vpack.c.b16 %v1683, %v1682
        %v1710 = vpack.c.b16 %v1685, %v1684
        %v1711 = vpack.c.b16 %v1687, %v1686
        %v1712 = vpack.c.b16 %v1689, %v1688
        %v1713 = vpack.c.b16 %v1691, %v1690
        %v1714 = vpack.c.b16 %v1693, %v1692
        %v1715 = vpack.c.b16 %v1695, %v1694
        %v1716 = vpack.c.b16 %v1697, %v1696
        %v1717 = vpack.c.b16 %v1699, %v1698
        %v1718 = vpack.c.b16 %v1701, %v1700
        %v1719 = vpack.c.b16 %v1703, %v1702
        %1736 = vmatpush.bf16.msra.mxu0 %v1711
        %1737 = vmatpush.bf16.msra.mxu0 %v1710
        %1738 = vmatpush.bf16.msra.mxu0 %v1709
        %1739 = vmatpush.bf16.msra.mxu0 %v1708
        %1740 = vmatpush.bf16.msra.mxu0 %v1707
        %1741 = vmatpush.bf16.msra.mxu0 %v1706
        %1742 = vmatpush.bf16.msra.mxu0 %v1705
        %1743 = vmatpush.bf16.msra.mxu0 %v1704
        %1744 = vmatmul.bf16.gmra.mxu0 %v1544
        %v1745 = vpop.f32.mrf.mxu0
        %v1746 = vadd.f32 0.0, %v1745
        %v1747 = vpop.f32.mrf.mxu0
        %v1748 = vadd.f32 0.0, %v1747
        %1749 = vmatmul.bf16.gmra.mxu0 %v1546
        %v1750 = vpop.f32.mrf.mxu0
        %v1751 = vadd.f32 0.0, %v1750
        %v1752 = vpop.f32.mrf.mxu0
        %v1753 = vadd.f32 0.0, %v1752
        %1754 = vmatmul.bf16.gmra.mxu0 %v1548
        %v1755 = vpop.f32.mrf.mxu0
        %v1756 = vadd.f32 0.0, %v1755
        %v1757 = vpop.f32.mrf.mxu0
        %v1758 = vadd.f32 0.0, %v1757
        %1759 = vmatmul.bf16.gmra.mxu0 %v1550
        %v1760 = vpop.f32.mrf.mxu0
        %v1761 = vadd.f32 0.0, %v1760
        %v1762 = vpop.f32.mrf.mxu0
        %v1763 = vadd.f32 0.0, %v1762
        %1764 = vmatmul.bf16.gmra.mxu0 %v1552
        %v1765 = vpop.f32.mrf.mxu0
        %v1766 = vadd.f32 0.0, %v1765
        %v1767 = vpop.f32.mrf.mxu0
        %v1768 = vadd.f32 0.0, %v1767
        %1769 = vmatmul.bf16.gmra.mxu0 %v1554
        %v1770 = vpop.f32.mrf.mxu0
        %v1771 = vadd.f32 0.0, %v1770
        %v1772 = vpop.f32.mrf.mxu0
        %v1773 = vadd.f32 0.0, %v1772
        %1774 = vmatmul.bf16.gmra.mxu0 %v1556
        %v1775 = vpop.f32.mrf.mxu0
        %v1776 = vadd.f32 0.0, %v1775
        %v1777 = vpop.f32.mrf.mxu0
        %v1778 = vadd.f32 0.0, %v1777
        %1779 = vmatmul.bf16.gmra.mxu0 %v1558
        %v1780 = vpop.f32.mrf.mxu0
        %v1781 = vadd.f32 0.0, %v1780
        %v1782 = vpop.f32.mrf.mxu0
        %v1783 = vadd.f32 0.0, %v1782
        %1784 = vmatmul.bf16.gmra.mxu0 %v1560
        %v1785 = vpop.f32.mrf.mxu0
        %v1786 = vadd.f32 0.0, %v1785
        %v1787 = vpop.f32.mrf.mxu0
        %v1788 = vadd.f32 0.0, %v1787
        %1789 = vmatmul.bf16.gmra.mxu0 %v1562
        %v1790 = vpop.f32.mrf.mxu0
        %v1791 = vadd.f32 0.0, %v1790
        %v1792 = vpop.f32.mrf.mxu0
        %v1793 = vadd.f32 0.0, %v1792
        %1794 = vmatmul.bf16.gmra.mxu0 %v1564
        %v1795 = vpop.f32.mrf.mxu0
        %v1796 = vadd.f32 0.0, %v1795
        %v1797 = vpop.f32.mrf.mxu0
        %v1798 = vadd.f32 0.0, %v1797
        %1799 = vmatmul.bf16.gmra.mxu0 %v1566
        %v1800 = vpop.f32.mrf.mxu0
        %v1801 = vadd.f32 0.0, %v1800
        %v1802 = vpop.f32.mrf.mxu0
        %v1803 = vadd.f32 0.0, %v1802
        %1804 = vmatmul.bf16.gmra.mxu0 %v1568
        %v1805 = vpop.f32.mrf.mxu0
        %v1806 = vadd.f32 0.0, %v1805
        %v1807 = vpop.f32.mrf.mxu0
        %v1808 = vadd.f32 0.0, %v1807
        %1809 = vmatmul.bf16.gmra.mxu0 %v1570
        %v1810 = vpop.f32.mrf.mxu0
        %v1811 = vadd.f32 0.0, %v1810
        %v1812 = vpop.f32.mrf.mxu0
        %v1813 = vadd.f32 0.0, %v1812
        %1814 = vmatmul.bf16.gmra.mxu0 %v1572
        %v1815 = vpop.f32.mrf.mxu0
        %v1816 = vadd.f32 0.0, %v1815
        %v1817 = vpop.f32.mrf.mxu0
        %v1818 = vadd.f32 0.0, %v1817
        %1819 = vmatmul.bf16.gmra.mxu0 %v1574
        %v1820 = vpop.f32.mrf.mxu0
        %v1821 = vadd.f32 0.0, %v1820
        %v1822 = vpop.f32.mrf.mxu0
        %v1823 = vadd.f32 0.0, %v1822
        %1824 = vdwg.mxu0
        %1825 = vmatpush.bf16.msra.mxu0 %v1719
        %1826 = vmatpush.bf16.msra.mxu0 %v1718
        %1827 = vmatpush.bf16.msra.mxu0 %v1717
        %1828 = vmatpush.bf16.msra.mxu0 %v1716
        %1829 = vmatpush.bf16.msra.mxu0 %v1715
        %1830 = vmatpush.bf16.msra.mxu0 %v1714
        %1831 = vmatpush.bf16.msra.mxu0 %v1713
        %1832 = vmatpush.bf16.msra.mxu0 %v1712
        %1833 = vmatmul.bf16.gmra.mxu0 %v1545
        %v1834 = vpop.f32.mrf.mxu0
        %v1835 = vadd.f32 %v1746, %v1834
        %v1836 = vpop.f32.mrf.mxu0
        %v1837 = vadd.f32 %v1748, %v1836
        %1838 = vmatmul.bf16.gmra.mxu0 %v1547
        %v1839 = vpop.f32.mrf.mxu0
        %v1840 = vadd.f32 %v1751, %v1839
        %v1841 = vpop.f32.mrf.mxu0
        %v1842 = vadd.f32 %v1753, %v1841
        %1843 = vmatmul.bf16.gmra.mxu0 %v1549
        %v1844 = vpop.f32.mrf.mxu0
        %v1845 = vadd.f32 %v1756, %v1844
        %v1846 = vpop.f32.mrf.mxu0
        %v1847 = vadd.f32 %v1758, %v1846
        %1848 = vmatmul.bf16.gmra.mxu0 %v1551
        %v1849 = vpop.f32.mrf.mxu0
        %v1850 = vadd.f32 %v1761, %v1849
        %v1851 = vpop.f32.mrf.mxu0
        %v1852 = vadd.f32 %v1763, %v1851
        %1853 = vmatmul.bf16.gmra.mxu0 %v1553
        %v1854 = vpop.f32.mrf.mxu0
        %v1855 = vadd.f32 %v1766, %v1854
        %v1856 = vpop.f32.mrf.mxu0
        %v1857 = vadd.f32 %v1768, %v1856
        %1858 = vmatmul.bf16.gmra.mxu0 %v1555
        %v1859 = vpop.f32.mrf.mxu0
        %v1860 = vadd.f32 %v1771, %v1859
        %v1861 = vpop.f32.mrf.mxu0
        %v1862 = vadd.f32 %v1773, %v1861
        %1863 = vmatmul.bf16.gmra.mxu0 %v1557
        %v1864 = vpop.f32.mrf.mxu0
        %v1865 = vadd.f32 %v1776, %v1864
        %v1866 = vpop.f32.mrf.mxu0
        %v1867 = vadd.f32 %v1778, %v1866
        %1868 = vmatmul.bf16.gmra.mxu0 %v1559
        %v1869 = vpop.f32.mrf.mxu0
        %v1870 = vadd.f32 %v1781, %v1869
        %v1871 = vpop.f32.mrf.mxu0
        %v1872 = vadd.f32 %v1783, %v1871
        %1873 = vmatmul.bf16.gmra.mxu0 %v1561
        %v1874 = vpop.f32.mrf.mxu0
        %v1875 = vadd.f32 %v1786, %v1874
        %v1876 = vpop.f32.mrf.mxu0
        %v1877 = vadd.f32 %v1788, %v1876
        %1878 = vmatmul.bf16.gmra.mxu0 %v1563
        %v1879 = vpop.f32.mrf.mxu0
        %v1880 = vadd.f32 %v1791, %v1879
        %v1881 = vpop.f32.mrf.mxu0
        %v1882 = vadd.f32 %v1793, %v1881
        %1883 = vmatmul.bf16.gmra.mxu0 %v1565
        %v1884 = vpop.f32.mrf.mxu0
        %v1885 = vadd.f32 %v1796, %v1884
        %v1886 = vpop.f32.mrf.mxu0
        %v1887 = vadd.f32 %v1798, %v1886
        %1888 = vmatmul.bf16.gmra.mxu0 %v1567
        %v1889 = vpop.f32.mrf.mxu0
        %v1890 = vadd.f32 %v1801, %v1889
        %v1891 = vpop.f32.mrf.mxu0
        %v1892 = vadd.f32 %v1803, %v1891
        %1893 = vmatmul.bf16.gmra.mxu0 %v1569
        %v1894 = vpop.f32.mrf.mxu0
        %v1895 = vadd.f32 %v1806, %v1894
        %v1896 = vpop.f32.mrf.mxu0
        %v1897 = vadd.f32 %v1808, %v1896
        %1898 = vmatmul.bf16.gmra.mxu0 %v1571
        %v1899 = vpop.f32.mrf.mxu0
        %v1900 = vadd.f32 %v1811, %v1899
        %v1901 = vpop.f32.mrf.mxu0
        %v1902 = vadd.f32 %v1813, %v1901
        %1903 = vmatmul.bf16.gmra.mxu0 %v1573
        %v1904 = vpop.f32.mrf.mxu0
        %v1905 = vadd.f32 %v1816, %v1904
        %v1906 = vpop.f32.mrf.mxu0
        %v1907 = vadd.f32 %v1818, %v1906
        %1908 = vmatmul.bf16.gmra.mxu0 %v1575
        %v1909 = vpop.f32.mrf.mxu0
        %v1910 = vadd.f32 %v1821, %v1909
        %v1911 = vpop.f32.mrf.mxu0
        %v1912 = vadd.f32 %v1823, %v1911
        %1913 = vdwg.mxu0
        %v1914 = vadd.f32 %v1576, %v1835
        %v1915 = vadd.f32 %v1577, %v1837
        %v1916 = vadd.f32 %v1578, %v1840
        %v1917 = vadd.f32 %v1579, %v1842
        %v1918 = vadd.f32 %v1580, %v1845
        %v1919 = vadd.f32 %v1581, %v1847
        %v1920 = vadd.f32 %v1582, %v1850
        %v1921 = vadd.f32 %v1583, %v1852
        %v1922 = vadd.f32 %v1584, %v1855
        %v1923 = vadd.f32 %v1585, %v1857
        %v1924 = vadd.f32 %v1586, %v1860
        %v1925 = vadd.f32 %v1587, %v1862
        %v1926 = vadd.f32 %v1588, %v1865
        %v1927 = vadd.f32 %v1589, %v1867
        %v1928 = vadd.f32 %v1590, %v1870
        %v1929 = vadd.f32 %v1591, %v1872
        %v1930 = vadd.f32 %v1592, %v1875
        %v1931 = vadd.f32 %v1593, %v1877
        %v1932 = vadd.f32 %v1594, %v1880
        %v1933 = vadd.f32 %v1595, %v1882
        %v1934 = vadd.f32 %v1596, %v1885
        %v1935 = vadd.f32 %v1597, %v1887
        %v1936 = vadd.f32 %v1598, %v1890
        %v1937 = vadd.f32 %v1599, %v1892
        %v1938 = vadd.f32 %v1600, %v1895
        %v1939 = vadd.f32 %v1601, %v1897
        %v1940 = vadd.f32 %v1602, %v1900
        %v1941 = vadd.f32 %v1603, %v1902
        %v1942 = vadd.f32 %v1604, %v1905
        %v1943 = vadd.f32 %v1605, %v1907
        %v1944 = vadd.f32 %v1606, %v1910
        %v1945 = vadd.f32 %v1607, %v1912
        %1946 = vst [vmem:[#allocation2] sm:$0xff] %v1914
        %1947 = vst [vmem:[#allocation2 + $0x8] sm:$0xff] %v1915
        %1948 = vst [vmem:[#allocation2 + $0x10] sm:$0xff] %v1916
        %1949 = vst [vmem:[#allocation2 + $0x18] sm:$0xff] %v1917
        %1950 = vst [vmem:[#allocation2 + $0x20] sm:$0xff] %v1918
        %1951 = vst [vmem:[#allocation2 + $0x28] sm:$0xff] %v1919
        %1952 = vst [vmem:[#allocation2 + $0x30] sm:$0xff] %v1920
        %1953 = vst [vmem:[#allocation2 + $0x38] sm:$0xff] %v1921
        %1954 = vst [vmem:[#allocation2 + $0x40] sm:$0xff] %v1922
        %1955 = vst [vmem:[#allocation2 + $0x48] sm:$0xff] %v1923
        %1956 = vst [vmem:[#allocation2 + $0x50] sm:$0xff] %v1924
        %1957 = vst [vmem:[#allocation2 + $0x58] sm:$0xff] %v1925
        %1958 = vst [vmem:[#allocation2 + $0x60] sm:$0xff] %v1926
        %1959 = vst [vmem:[#allocation2 + $0x68] sm:$0xff] %v1927
        %1960 = vst [vmem:[#allocation2 + $0x70] sm:$0xff] %v1928
        %1961 = vst [vmem:[#allocation2 + $0x78] sm:$0xff] %v1929
        %1962 = vst [vmem:[#allocation2 + $0x80] sm:$0xff] %v1930
        %1963 = vst [vmem:[#allocation2 + $0x88] sm:$0xff] %v1931
        %1964 = vst [vmem:[#allocation2 + $0x90] sm:$0xff] %v1932
        %1965 = vst [vmem:[#allocation2 + $0x98] sm:$0xff] %v1933
        %1966 = vst [vmem:[#allocation2 + $0xa0] sm:$0xff] %v1934
        %1967 = vst [vmem:[#allocation2 + $0xa8] sm:$0xff] %v1935
        %1968 = vst [vmem:[#allocation2 + $0xb0] sm:$0xff] %v1936
        %1969 = vst [vmem:[#allocation2 + $0xb8] sm:$0xff] %v1937
        %1970 = vst [vmem:[#allocation2 + $0xc0] sm:$0xff] %v1938
        %1971 = vst [vmem:[#allocation2 + $0xc8] sm:$0xff] %v1939
        %1972 = vst [vmem:[#allocation2 + $0xd0] sm:$0xff] %v1940
        %1973 = vst [vmem:[#allocation2 + $0xd8] sm:$0xff] %v1941
        %1974 = vst [vmem:[#allocation2 + $0xe0] sm:$0xff] %v1942
        %1975 = vst [vmem:[#allocation2 + $0xe8] sm:$0xff] %v1943
        %1976 = vst [vmem:[#allocation2 + $0xf0] sm:$0xff] %v1944
        %1977 = vst [vmem:[#allocation2 + $0xf8] sm:$0xff] %v1945
        // Predicated region
        $region49: #{tpu_custom_call.1} parent=31 // pred_check
          %p1978 = pneg %p256
        $region50: #{tpu_custom_call.1} parent=31 // pred_check_branch
          %1980 = sbr.rel (%p1978) target = $region52
        $region51: #{tpu_custom_call.1} parent=31 // pred_region
          %v1981 = vld [vmem:[#allocation2] sm:$0xff]
          %v1982 = vld [vmem:[#allocation2 + $0x8] sm:$0xff]
          %v1983 = vld [vmem:[#allocation2 + $0x10] sm:$0xff]
          %v1984 = vld [vmem:[#allocation2 + $0x18] sm:$0xff]
          %v1985 = vld [vmem:[#allocation2 + $0x20] sm:$0xff]
          %v1986 = vld [vmem:[#allocation2 + $0x28] sm:$0xff]
          %v1987 = vld [vmem:[#allocation2 + $0x30] sm:$0xff]
          %v1988 = vld [vmem:[#allocation2 + $0x38] sm:$0xff]
          %v1989 = vld [vmem:[#allocation2 + $0x40] sm:$0xff]
          %v1990 = vld [vmem:[#allocation2 + $0x48] sm:$0xff]
          %v1991 = vld [vmem:[#allocation2 + $0x50] sm:$0xff]
          %v1992 = vld [vmem:[#allocation2 + $0x58] sm:$0xff]
          %v1993 = vld [vmem:[#allocation2 + $0x60] sm:$0xff]
          %v1994 = vld [vmem:[#allocation2 + $0x68] sm:$0xff]
          %v1995 = vld [vmem:[#allocation2 + $0x70] sm:$0xff]
          %v1996 = vld [vmem:[#allocation2 + $0x78] sm:$0xff]
          %v1997 = vld [vmem:[#allocation2 + $0x80] sm:$0xff]
          %v1998 = vld [vmem:[#allocation2 + $0x88] sm:$0xff]
          %v1999 = vld [vmem:[#allocation2 + $0x90] sm:$0xff]
          %v2000 = vld [vmem:[#allocation2 + $0x98] sm:$0xff]
          %v2001 = vld [vmem:[#allocation2 + $0xa0] sm:$0xff]
          %v2002 = vld [vmem:[#allocation2 + $0xa8] sm:$0xff]
          %v2003 = vld [vmem:[#allocation2 + $0xb0] sm:$0xff]
          %v2004 = vld [vmem:[#allocation2 + $0xb8] sm:$0xff]
          %v2005 = vld [vmem:[#allocation2 + $0xc0] sm:$0xff]
          %v2006 = vld [vmem:[#allocation2 + $0xc8] sm:$0xff]
          %v2007 = vld [vmem:[#allocation2 + $0xd0] sm:$0xff]
          %v2008 = vld [vmem:[#allocation2 + $0xd8] sm:$0xff]
          %v2009 = vld [vmem:[#allocation2 + $0xe0] sm:$0xff]
          %v2010 = vld [vmem:[#allocation2 + $0xe8] sm:$0xff]
          %v2011 = vld [vmem:[#allocation2 + $0xf0] sm:$0xff]
          %v2012 = vld [vmem:[#allocation2 + $0xf8] sm:$0xff]
          %v2013 = vpack.c.bf16 %v1981, %v1981
          %v2014 = vpack.c.bf16 %v1982, %v1982
          %v2015 = vpack.c.bf16 %v1983, %v1983
          %v2016 = vpack.c.bf16 %v1984, %v1984
          %v2017 = vpack.c.bf16 %v1985, %v1985
          %v2018 = vpack.c.bf16 %v1986, %v1986
          %v2019 = vpack.c.bf16 %v1987, %v1987
          %v2020 = vpack.c.bf16 %v1988, %v1988
          %v2021 = vpack.c.bf16 %v1989, %v1989
          %v2022 = vpack.c.bf16 %v1990, %v1990
          %v2023 = vpack.c.bf16 %v1991, %v1991
          %v2024 = vpack.c.bf16 %v1992, %v1992
          %v2025 = vpack.c.bf16 %v1993, %v1993
          %v2026 = vpack.c.bf16 %v1994, %v1994
          %v2027 = vpack.c.bf16 %v1995, %v1995
          %v2028 = vpack.c.bf16 %v1996, %v1996
          %v2029 = vpack.c.bf16 %v1997, %v1997
          %v2030 = vpack.c.bf16 %v1998, %v1998
          %v2031 = vpack.c.bf16 %v1999, %v1999
          %v2032 = vpack.c.bf16 %v2000, %v2000
          %v2033 = vpack.c.bf16 %v2001, %v2001
          %v2034 = vpack.c.bf16 %v2002, %v2002
          %v2035 = vpack.c.bf16 %v2003, %v2003
          %v2036 = vpack.c.bf16 %v2004, %v2004
          %v2037 = vpack.c.bf16 %v2005, %v2005
          %v2038 = vpack.c.bf16 %v2006, %v2006
          %v2039 = vpack.c.bf16 %v2007, %v2007
          %v2040 = vpack.c.bf16 %v2008, %v2008
          %v2041 = vpack.c.bf16 %v2009, %v2009
          %v2042 = vpack.c.bf16 %v2010, %v2010
          %v2043 = vpack.c.bf16 %v2011, %v2011
          %v2044 = vpack.c.bf16 %v2012, %v2012
          %2045 = vst [vmem:[%s251] sm:$0xf] %v2013
          %2046 = vst [vmem:[%s251 + $0x4] sm:$0xf] %v2014
          %2047 = vst [vmem:[%s251 + $0x8] sm:$0xf] %v2015
          %2048 = vst [vmem:[%s251 + $0xc] sm:$0xf] %v2016
          %2049 = vst [vmem:[%s251 + $0x10] sm:$0xf] %v2017
          %2050 = vst [vmem:[%s251 + $0x14] sm:$0xf] %v2018
          %2051 = vst [vmem:[%s251 + $0x18] sm:$0xf] %v2019
          %2052 = vst [vmem:[%s251 + $0x1c] sm:$0xf] %v2020
          %2053 = vst [vmem:[%s251 + $0x20] sm:$0xf] %v2021
          %2054 = vst [vmem:[%s251 + $0x24] sm:$0xf] %v2022
          %2055 = vst [vmem:[%s251 + $0x28] sm:$0xf] %v2023
          %2056 = vst [vmem:[%s251 + $0x2c] sm:$0xf] %v2024
          %2057 = vst [vmem:[%s251 + $0x30] sm:$0xf] %v2025
          %2058 = vst [vmem:[%s251 + $0x34] sm:$0xf] %v2026
          %2059 = vst [vmem:[%s251 + $0x38] sm:$0xf] %v2027
          %2060 = vst [vmem:[%s251 + $0x3c] sm:$0xf] %v2028
          %2061 = vst [vmem:[%s251 + $0x40] sm:$0xf] %v2029
          %2062 = vst [vmem:[%s251 + $0x44] sm:$0xf] %v2030
          %2063 = vst [vmem:[%s251 + $0x48] sm:$0xf] %v2031
          %2064 = vst [vmem:[%s251 + $0x4c] sm:$0xf] %v2032
          %2065 = vst [vmem:[%s251 + $0x50] sm:$0xf] %v2033
          %2066 = vst [vmem:[%s251 + $0x54] sm:$0xf] %v2034
          %2067 = vst [vmem:[%s251 + $0x58] sm:$0xf] %v2035
          %2068 = vst [vmem:[%s251 + $0x5c] sm:$0xf] %v2036
          %2069 = vst [vmem:[%s251 + $0x60] sm:$0xf] %v2037
          %2070 = vst [vmem:[%s251 + $0x64] sm:$0xf] %v2038
          %2071 = vst [vmem:[%s251 + $0x68] sm:$0xf] %v2039
          %2072 = vst [vmem:[%s251 + $0x6c] sm:$0xf] %v2040
          %2073 = vst [vmem:[%s251 + $0x70] sm:$0xf] %v2041
          %2074 = vst [vmem:[%s251 + $0x74] sm:$0xf] %v2042
          %2075 = vst [vmem:[%s251 + $0x78] sm:$0xf] %v2043
          %2076 = vst [vmem:[%s251 + $0x7c] sm:$0xf] %v2044
        $region52: #{tpu_custom_call.1} parent=31 // pred_fallthru
          _
        %s2077 = sand.u32 %s119, 1
        %s2078 = scalar_lea.sflag [#allocation5], %s2077
        %s2079 = sand.u32 %s119, 1
        %s2080 = smul.addr %s2079, 128
        %s2081 = scalar_lea.vmem [#allocation9], %s2080
        // Predicated region
        $region53: #{tpu_custom_call.1} parent=31 // pred_check
          %p2082 = pneg %p129
        $region54: #{tpu_custom_call.1} parent=31 // pred_check_branch
          %2084 = sbr.rel (%p2082) target = $region56
        $region55: #{tpu_custom_call.1} parent=31 // pred_region
          %s2085 = smul.u32 32, %s25
          %2087 = vsyncadd %s2078, 0
          %s2088 = smul.addr %s2085, 4
          %s2089 = scalar_lea.hbm %s3, %s2088
          %s2090 = sshll.u32 %s2081, 4
          %s2091 = int_to_ptr.vmem [resolvable:$true] %s2090
          %s2092 = sshll.u32 %s2089, 4
          %s2093 = int_to_ptr.hbm [resolvable:$true] %s2092
          %2098 = dma.vmem_to_hbm [thread:$0]  %s2091, 2048, %s2093, %s2078, 64, 64, 4
        $region56: #{tpu_custom_call.1} parent=31 // pred_fallthru
          _
      $region32: #{tpu_custom_call.1} parent=5 // pred_fallthru
        _
      %p2099 = scmp.le.s32.totalorder 2, %s16
      // Predicated region
      $region57: #{tpu_custom_call.1} parent=5 // pred_check
        %p2100 = pneg %p2099
      $region58: #{tpu_custom_call.1} parent=5 // pred_check_branch
        %2102 = sbr.rel (%p2100) target = $region60
      $region59: #{tpu_custom_call.1} parent=5 // pred_region
        %s2103 = ssub.s32 %s16, 2
        // Predicated region
        $region61: #{tpu_custom_call.1} parent=59 // pred_check
          %p2104 = pneg %p135
        $region62: #{tpu_custom_call.1} parent=59 // pred_check_branch
          %2106 = sbr.rel (%p2104) target = $region64
        $region63: #{tpu_custom_call.1} parent=59 // pred_region
          %s2107 = sand.u32 %s120, 1
          %s2108 = scalar_lea.sflag [#allocation5], %s2107
          %s2109 = sand.u32 %s120, 1
          %s2110 = smul.addr %s2109, 128
          %s2111 = scalar_lea.vmem [#allocation9], %s2110
          %2113 = dma.done %s2108, 2048
        $region64: #{tpu_custom_call.1} parent=59 // pred_fallthru
          _
      $region60: #{tpu_custom_call.1} parent=5 // pred_fallthru
        _
    $region6: #{tpu_custom_call.1} parent=1 // loop_footer
      %s20 = sadd.s32 1, %s16
    $region7: #{tpu_custom_call.1} parent=1 // loop_footer_branch
      %15 = sbr.rel target = $region3
    $region8: #{tpu_custom_call.1} parent=1 // loop_exit
      _
    %2114 = vsyncpa [#allocation4], 1
    %s2115 = scalar_lea.sflag [#allocation4], 1
    %2116 = vsyncpa %s2115, 1
    %2117 = vsyncpa [#allocation7], 1
    %2118 = vsyncpa [#allocation5], 1
    %s2119 = scalar_lea.sflag [#allocation5], 1
    %2120 = vsyncpa %s2119, 1

</llo_original>
